<compile_context>
chip_gen: v6e
topology: v6e:2x2x1
jax: 0.10.0
libtpu: 0.0.40
codegen_flags: <defaults>
</compile_context>

<pallas_src>
import functools
import math

import numpy as np
import jax
import jax.numpy as jnp
from jax.experimental import pallas as pl
from jax.experimental.pallas import tpu as pltpu

LN_EPS = 1e-5
LANE = 128

# rows of the packed bias / LayerNorm slab (b_slab: [16, DFF] f32)
R_B_EMB, R_G_EMB, R_BE_EMB = 0, 1, 2
R_BQ, R_BK, R_BV, R_BO = 3, 4, 5, 6
R_G1, R_BE1 = 7, 8
R_B_FF2, R_G2, R_BE2 = 9, 10, 11
R_BACT = 12
R_B_FF1 = 13
B_SLAB_ROWS = 16

# 128-lane column tiles of the packed weight slab (w_slab: [NFB, 6*128] f32)
C_FC_EMB, C_WQ, C_WK, C_WV, C_WO, C_WACT = 0, 128, 256, 384, 512, 640
W_SLAB_COLS = 6 * LANE


# ----------------------------- config ---------------------------------------
class Cfg:
    num_frames = 3            # T
    num_boxes = 4             # N
    image_size = (32, 32)     # H, W
    out_size = (8, 8)         # OH, OW (backbone feature map size)
    emb_features = 8          # D (total multiscale channels)
    crop_size = (2, 2)        # K
    num_features_boxes = 32   # NFB
    num_actions = 9
    dim_feedforward = 2048    # nn.TransformerEncoderLayer default


# ------------------------- pallas_call helpers --------------------------------
def _zero_map(ndim, i):
    return (0,) * ndim


def _full_spec(shape):
    return pl.BlockSpec(shape, functools.partial(_zero_map, len(shape)))


def _layernorm(x, gamma, beta):
    mu = jnp.mean(x, axis=-1, keepdims=True)
    var = jnp.mean((x - mu) ** 2, axis=-1, keepdims=True)
    return (x - mu) * jax.lax.rsqrt(var + LN_EPS) * gamma + beta


# ------------------------------ fused kernel -----------------------------------
def fused_kernel(roi_ref, enc_ref, w_ref, b_ref, wff1_ref, wff2_ref,
                 scores_ref, feat_ref):
    """fc_emb -> LN -> ReLU -> +enc -> TransformerEncoderLayer (post-norm)
    -> action head, fully fused.

    Rows are time-major:  row = t * (B*N) + (b*N + n), so each time-step is a
    contiguous block of BN rows and the attention track id is (row % BN).
    """
    M = roi_ref.shape[0]
    NFB = enc_ref.shape[1]
    BN = scores_ref.shape[0]
    T = M // BN
    LANES = scores_ref.shape[1]                                       # 128

    # ---- fc_emb_1 -> LayerNorm -> ReLU -> + (positional + temporal) encodings
    h = jnp.dot(roi_ref[...], w_ref[:, C_FC_EMB:C_FC_EMB + NFB],
                preferred_element_type=jnp.float32) + b_ref[R_B_EMB:R_B_EMB + 1, 0:NFB]
    h = _layernorm(h, b_ref[R_G_EMB:R_G_EMB + 1, 0:NFB],
                   b_ref[R_BE_EMB:R_BE_EMB + 1, 0:NFB])
    x = jnp.maximum(h, 0.0) + enc_ref[...]                            # [M, NFB]

    # ---- self-attention (nhead=1): one fused QKV matmul; each projection sits
    # on its own 128-lane tile so the slices below are free views (no relayout).
    qkv = jnp.dot(x, w_ref[:, C_WQ:C_WQ + 3 * LANE],
                  preferred_element_type=jnp.float32)                 # [M, 384]
    # padded lanes of Q/K (and their biases) are exactly zero, so contracting
    # over all 128 lanes equals the 32-lane contraction.
    q = qkv[:, 0:LANE] + b_ref[R_BQ:R_BQ + 1, 0:LANE]
    k = qkv[:, LANE:2 * LANE] + b_ref[R_BK:R_BK + 1, 0:LANE]
    v = qkv[:, 2 * LANE:2 * LANE + NFB] + b_ref[R_BV:R_BV + 1, 0:NFB]
    s = jax.lax.dot_general(q, k, (((1,), (1,)), ((), ())),
                            preferred_element_type=jnp.float32)       # [M, M]
    s = s * (1.0 / math.sqrt(NFB))
    # block-diagonal mask built in-kernel (same (b, n) track across time)
    rid = jax.lax.broadcasted_iota(jnp.int32, (M, M), 0)
    cid = jax.lax.broadcasted_iota(jnp.int32, (M, M), 1)
    s = jnp.where((rid % BN) == (cid % BN), s, -1e9)
    s = s - jnp.max(s, axis=-1, keepdims=True)
    p = jnp.exp(s)
    p = p * pl.reciprocal(jnp.sum(p, axis=-1, keepdims=True), approx=True)
    a = jnp.dot(p, v, preferred_element_type=jnp.float32)             # [M, NFB]
    a = jnp.dot(a, w_ref[:, C_WO:C_WO + NFB],
                preferred_element_type=jnp.float32) + b_ref[R_BO:R_BO + 1, 0:NFB]
    h1 = _layernorm(x + a, b_ref[R_G1:R_G1 + 1, 0:NFB],
                    b_ref[R_BE1:R_BE1 + 1, 0:NFB])                    # norm1

    # ---- FFN: bf16 MXU operands, f32 accumulation; elementwise stays f32 ----
    f = jnp.dot(h1.astype(jnp.bfloat16), wff1_ref[...],
                preferred_element_type=jnp.float32) + b_ref[R_B_FF1:R_B_FF1 + 1, :]
    f = jnp.maximum(f, 0.0)
    f = jnp.dot(f.astype(jnp.bfloat16), wff2_ref[...],
                preferred_element_type=jnp.float32) + b_ref[R_B_FF2:R_B_FF2 + 1, 0:NFB]
    y = _layernorm(h1 + f, b_ref[R_G2:R_G2 + 1, 0:NFB],
                   b_ref[R_BE2:R_BE2 + 1, 0:NFB])                     # norm2 [M,NFB]

    # ---- head: mean / max over T via contiguous BN-row blocks (time-major) ----
    acc = y[0:BN]
    mx = y[0:BN]
    for t in range(1, T):
        blk = y[t * BN:(t + 1) * BN]
        acc = acc + blk
        mx = jnp.maximum(mx, blk)
    x_mean = acc * (1.0 / T)

    # fc_actions is affine => mean(fc(x)) == fc(mean(x)); both outputs are
    # lane-padded to 128 so the stores are dense (no masked vst).
    scores_ref[...] = (jnp.dot(x_mean, w_ref[:, C_WACT:C_WACT + LANES],
                               preferred_element_type=jnp.float32)
                       + b_ref[R_BACT:R_BACT + 1, 0:LANES])
    feat_ref[...] = jnp.concatenate(
        [mx, jnp.zeros((BN, LANES - NFB), jnp.float32)], axis=1)


# ------------------------- positional encodings -------------------------------
def positionalencoding2d(d_model, height, width):
    pe = np.zeros((d_model, height, width), dtype=np.float32)
    dm = d_model // 2
    div_term = np.exp(np.arange(0.0, dm, 2) * -(math.log(10000.0) / dm))
    pos_w = np.arange(0.0, width)[:, None]
    pos_h = np.arange(0.0, height)[:, None]
    pe[0:dm:2, :, :] = np.repeat(np.sin(pos_w * div_term).T[:, None, :], height, axis=1)
    pe[1:dm:2, :, :] = np.repeat(np.cos(pos_w * div_term).T[:, None, :], height, axis=1)
    pe[dm::2, :, :] = np.repeat(np.sin(pos_h * div_term).T[:, :, None], width, axis=2)
    pe[dm + 1::2, :, :] = np.repeat(np.cos(pos_h * div_term).T[:, :, None], width, axis=2)
    return jnp.asarray(pe)


def positionalencoding1d(d_model, length):
    pe = np.zeros((length, d_model), dtype=np.float32)
    position = np.arange(0, length)[:, None]
    div_term = np.exp(np.arange(0, d_model, 2) * -(math.log(10000.0) / d_model))
    pe[:, 0::2] = np.sin(position * div_term)
    pe[:, 1::2] = np.cos(position * div_term)
    return jnp.asarray(pe)


# ------------------------------- glue ops --------------------------------------
def roi_align(feats, boxes, box_idx, K, sx, sy):
    """crop_and_resize style RoIAlign: K x K bilinear samples spanning the box.
    feats: [M_img, OH, OW, C] NHWC; boxes: [M, 4] (x1,y1,x2,y2) image coords."""
    # TODO(synk): exact sampling_ratio / aligned convention of the original
    # RoIAlign CUDA op is not reproduced; this uses align-corners grid sampling.
    M = boxes.shape[0]
    OH, OW = feats.shape[1], feats.shape[2]
    x1, y1, x2, y2 = boxes[:, 0] * sx, boxes[:, 1] * sy, boxes[:, 2] * sx, boxes[:, 3] * sy
    t = jnp.arange(K, dtype=jnp.float32) / max(K - 1, 1)
    xs = x1[:, None] + (x2 - x1)[:, None] * t[None, :]               # [M, K]
    ys = y1[:, None] + (y2 - y1)[:, None] * t[None, :]
    f = feats[box_idx]                                               # [M, OH, OW, C]
    x0 = jnp.clip(jnp.floor(xs), 0, OW - 1)
    y0 = jnp.clip(jnp.floor(ys), 0, OH - 1)
    x1i = jnp.clip(x0 + 1, 0, OW - 1).astype(jnp.int32)
    y1i = jnp.clip(y0 + 1, 0, OH - 1).astype(jnp.int32)
    wx = jnp.clip(xs - x0, 0.0, 1.0)
    wy = jnp.clip(ys - y0, 0.0, 1.0)
    x0 = x0.astype(jnp.int32)
    y0 = y0.astype(jnp.int32)
    bidx = jnp.arange(M)[:, None, None]

    def g(yi, xi):
        return f[bidx, yi[:, :, None], xi[:, None, :], :]            # [M, K, K, C]

    v00, v01, v10, v11 = g(y0, x0), g(y0, x1i), g(y1i, x0), g(y1i, x1i)
    wyk = wy[:, :, None, None]
    wxk = wx[:, None, :, None]
    out = (v00 * (1 - wyk) * (1 - wxk) + v01 * (1 - wyk) * wxk
           + v10 * wyk * (1 - wxk) + v11 * wyk * wxk)                # [M, K, K, C]
    return jnp.transpose(out, (0, 3, 1, 2))                          # [M, C, K, K]


# ------------------------------ parameters -------------------------------------
def init_params(cfg, key):
    K, D = cfg.crop_size[0], cfg.emb_features
    NFB, A, DFF = cfg.num_features_boxes, cfg.num_actions, cfg.dim_feedforward
    KKD = K * K * D
    assert KKD == NFB, "weight-slab packing assumes K*K*D == NFB"
    ks = jax.random.split(key, 24)

    def w(k, shape, fan_in):
        return jax.random.normal(k, shape, jnp.float32) / math.sqrt(fan_in)

    def b(k, n, scale=0.1):
        return scale * jax.random.normal(k, (n,), jnp.float32)

    fc_emb_w = w(ks[1], (KKD, NFB), KKD)
    wq = w(ks[2], (NFB, NFB), NFB)
    wk = w(ks[3], (NFB, NFB), NFB)
    wv = w(ks[4], (NFB, NFB), NFB)
    wo = w(ks[5], (NFB, NFB), NFB)
    w_ff1 = w(ks[6], (NFB, DFF), NFB)
    w_ff2 = w(ks[7], (DFF, NFB), DFF)
    wact = w(ks[8], (NFB, A), NFB)

    fc_emb_b = b(ks[9], NFB)
    ln_emb_g = 1.0 + b(ks[10], NFB)
    ln_emb_b = b(ks[11], NFB)
    bq, bk, bv, bo = b(ks[12], NFB), b(ks[13], NFB), b(ks[14], NFB), b(ks[15], NFB)
    ln1_g = 1.0 + b(ks[16], NFB)
    ln1_b = b(ks[17], NFB)
    b_ff1 = b(ks[18], DFF)
    b_ff2 = b(ks[19], NFB)
    ln2_g = 1.0 + b(ks[20], NFB)
    ln2_b = b(ks[21], NFB)
    fc_actions_b = b(ks[22], A)

    def pad_cols(m, width=LANE):
        return jnp.pad(m, ((0, 0), (0, width - m.shape[1])))

    # one weight slab: every sub-matrix starts on a 128-lane tile boundary.
    w_slab = jnp.concatenate(
        [pad_cols(fc_emb_w), pad_cols(wq), pad_cols(wk), pad_cols(wv),
         pad_cols(wo), pad_cols(wact)], axis=1)                       # [NFB, 768]
    assert w_slab.shape == (NFB, W_SLAB_COLS)

    def row(vec):
        v = jnp.asarray(vec, jnp.float32).reshape(1, -1)
        return jnp.pad(v, ((0, 0), (0, DFF - v.shape[1])))

    b_slab = jnp.concatenate(
        [row(fc_emb_b),                       # 0
         row(ln_emb_g), row(ln_emb_b),        # 1, 2
         row(bq), row(bk), row(bv), row(bo),  # 3, 4, 5, 6
         row(ln1_g), row(ln1_b),              # 7, 8
         row(b_ff2),                          # 9
         row(ln2_g), row(ln2_b),              # 10, 11
         row(fc_actions_b),                   # 12
         row(b_ff1),                          # 13
         jnp.zeros((B_SLAB_ROWS - 14, DFF), jnp.float32)], axis=0)    # [16, DFF]

    return {
        'backbone_w': w(ks[0], (3, D), 3),
        # packed operands consumed by the Pallas kernel
        'w_slab': w_slab, 'b_slab': b_slab,
        'w_ff1': w_ff1.astype(jnp.bfloat16), 'w_ff2': w_ff2.astype(jnp.bfloat16),
        # unpacked copies used only by the pure-JAX reference check
        'fc_emb_w': fc_emb_w, 'fc_emb_b': fc_emb_b,
        'ln_emb_g': ln_emb_g, 'ln_emb_b': ln_emb_b,
        'wq': wq, 'wk': wk, 'wv': wv, 'bq': bq, 'bk': bk, 'bv': bv,
        'wo': wo, 'bo': bo, 'ln1_g': ln1_g, 'ln1_b': ln1_b,
        'b_ff1': b_ff1, 'b_ff2': b_ff2, 'ln2_g': ln2_g, 'ln2_b': ln2_b,
        'fc_actions_w': wact, 'fc_actions_b': fc_actions_b,
    }


# ------------------------------ shared glue -------------------------------------
def _prepare_inputs(params, images_in, boxes_in, cfg):
    """Backbone stand-in, RoIAlign, encoding gathers, time-major permutation."""
    B, T = images_in.shape[0], images_in.shape[1]
    H, W = cfg.image_size
    OH, OW = cfg.out_size
    N, NFB = cfg.num_boxes, cfg.num_features_boxes
    D, K = cfg.emb_features, cfg.crop_size[0]
    M = B * T * N

    # prep_images: /255, -0.5, *2
    images_flat = images_in.reshape(B * T, 3, H, W)
    images_flat = (images_flat / 255.0 - 0.5) * 2.0
    images_nhwc = jnp.transpose(images_flat, (0, 2, 3, 1))           # NCHW -> NHWC

    # TODO(synk): pretrained Inception-v3/VGG backbone has no clean Pallas
    # equivalent; replaced by a deterministic stand-in (avg-pool to OHxOW +
    # 1x1 conv 3->D), which also subsumes the bilinear-resize + multiscale cat.
    pooled = images_nhwc.reshape(B * T, OH, H // OH, OW, W // OW, 3).mean(axis=(2, 4))
    feats = jnp.einsum('bhwc,cd->bhwd', pooled, params['backbone_w'])  # [BT,OH,OW,D]

    # RoIAlign
    boxes_flat = boxes_in.reshape(B * T * N, 4)
    box_idx = jnp.repeat(jnp.arange(B * T), N)
    roi = roi_align(feats, boxes_flat, box_idx, K, OW / W, OH / H)   # [BTN, D, K, K]
    roi = roi.reshape(M, D * K * K).astype(jnp.float32)

    # positional / temporal encodings (gathers stay in JAX glue); indices clipped
    pos_enc_ind = positionalencoding2d(NFB, H, W)
    tem_enc_ind = positionalencoding1d(NFB, 100)
    xc = jnp.clip(((boxes_in[..., 0] + boxes_in[..., 2]) / 2).reshape(-1),
                  0, W - 1).astype(jnp.int32)
    yc = jnp.clip(((boxes_in[..., 1] + boxes_in[..., 3]) / 2).reshape(-1),
                  0, H - 1).astype(jnp.int32)
    loc = pos_enc_ind[:, yc, xc].T                                    # [BTN, NFB]
    tem_idx = jnp.broadcast_to(jnp.arange(T)[None, :, None], (B, T, N)).reshape(-1)
    tem = tem_enc_ind[tem_idx]                                        # [BTN, NFB]
    enc = loc + tem                                                   # pre-added

    # permute rows (b,t,n) -> (t,b,n): time-major flat layout for the kernel
    def to_time_major(x):
        return x.reshape(B, T, N, -1).transpose(1, 0, 2, 3).reshape(M, -1)

    return to_time_major(roi), to_time_major(enc)


# ------------------------------- forward ----------------------------------------
def forward(params, images_in, boxes_in, cfg):
    B, T = images_in.shape[0], images_in.shape[1]
    N, NFB, A = cfg.num_boxes, cfg.num_features_boxes, cfg.num_actions
    BN = B * N

    roi_t, enc_t = _prepare_inputs(params, images_in, boxes_in, cfg)

    args = (roi_t, enc_t, params['w_slab'], params['b_slab'],
            params['w_ff1'], params['w_ff2'])

    scores_pad, feat_pad = pl.pallas_call(
        fused_kernel,
        grid=(1,),
        in_specs=[_full_spec(a.shape) for a in args],
        out_specs=(_full_spec((BN, LANE)), _full_spec((BN, LANE))),
        out_shape=(jax.ShapeDtypeStruct((BN, LANE), jnp.float32),
                   jax.ShapeDtypeStruct((BN, LANE), jnp.float32)),
        compiler_params=pltpu.CompilerParams(
            dimension_semantics=("arbitrary",),
            vmem_limit_bytes=32 * 1024 * 1024),
    )(*args)

    return {
        'pseudo_scores': scores_pad[:, :A],                           # [B*N, A]
        'person_features': feat_pad[:, :NFB].reshape(B, N, NFB),      # [B, N, NFB]
    }


# ---------------------- pure-JAX f32 reference (for validation) ------------------
def reference_forward(params, images_in, boxes_in, cfg):
    B, T = images_in.shape[0], images_in.shape[1]
    N, NFB, A = cfg.num_boxes, cfg.num_features_boxes, cfg.num_actions
    BN = B * N
    p = params

    roi_t, enc_t = _prepare_inputs(params, images_in, boxes_in, cfg)

    h = roi_t @ p['fc_emb_w'] + p['fc_emb_b']
    h = _layernorm(h, p['ln_emb_g'], p['ln_emb_b'])
    x = jnp.maximum(h, 0.0) + enc_t                                   # [M, NFB]

    xs = x.reshape(T, BN, NFB).transpose(1, 0, 2)                     # [BN, T, NFB]
    q = xs @ p['wq'] + p['bq']
    k = xs @ p['wk'] + p['bk']
    v = xs @ p['wv'] + p['bv']
    s = jnp.einsum('bqd,bkd->bqk', q, k) * (1.0 / math.sqrt(NFB))
    pr = jax.nn.softmax(s, axis=-1)
    a = jnp.einsum('bqk,bkd->bqd', pr, v) @ p['wo'] + p['bo']
    h1 = _layernorm(xs + a, p['ln1_g'], p['ln1_b'])
    f = jnp.maximum(h1 @ p['w_ff1'].astype(jnp.float32) + p['b_ff1'], 0.0)
    f = f @ p['w_ff2'].astype(jnp.float32) + p['b_ff2']
    y = _layernorm(h1 + f, p['ln2_g'], p['ln2_b'])                    # [BN, T, NFB]

    scores = (y @ p['fc_actions_w'] + p['fc_actions_b']).mean(axis=1)  # [BN, A]
    feat = y.max(axis=1)                                              # [BN, NFB]
    return {'pseudo_scores': scores, 'person_features': feat.reshape(B, N, NFB)}


# --------------------------------- main -----------------------------------------
if __name__ == "__main__":
    cfg = Cfg()
    key = jax.random.PRNGKey(0)
    kp, ki, kb = jax.random.split(key, 3)
    params = init_params(cfg, kp)

    B, T, N = 2, cfg.num_frames, cfg.num_boxes
    H, W = cfg.image_size

    images_in = jax.random.uniform(ki, (B, T, 3, H, W), jnp.float32, 0.0, 255.0)
    # boxes (x1, y1, x2, y2) in image-pixel coordinates, inside the image
    centers = jax.random.uniform(kb, (B, T, N, 2), jnp.float32, 4.0, 27.0)  # (cx, cy)
    half = jnp.full((B, T, N, 2), 3.0, jnp.float32)
    boxes_in = jnp.concatenate([centers - half, centers + half], axis=-1)

    fwd = jax.jit(lambda p, im, bx: forward(p, im, bx, cfg))
    out = fwd(params, images_in, boxes_in)
    jax.block_until_ready(out)

    assert out['pseudo_scores'].shape == (B * N, cfg.num_actions)
    assert out['person_features'].shape == (B, N, cfg.num_features_boxes)
    assert bool(jnp.all(jnp.isfinite(out['pseudo_scores'])))
    assert bool(jnp.all(jnp.isfinite(out['person_features'])))

    # validate against a pure-JAX f32 reference (bf16 FFN operands and
    # approx reciprocal in the kernel introduce only small drift)
    ref = jax.jit(lambda p, im, bx: reference_forward(p, im, bx, cfg))(
        params, images_in, boxes_in)
    jax.block_until_ready(ref)
    assert bool(jnp.allclose(out['pseudo_scores'], ref['pseudo_scores'],
                             atol=5e-2, rtol=5e-2))
    assert bool(jnp.allclose(out['person_features'], ref['person_features'],
                             atol=5e-2, rtol=5e-2))

    print("KERNEL_OK")
</pallas_src>

<mosaic_0001>
module attributes {stable_mosaic.version = 11 : i64} {
  func.func @fused_kernel(%arg0: i32, %arg1: memref<24x32xf32, #tpu.memory_space<vmem>>, %arg2: memref<24x32xf32, #tpu.memory_space<vmem>>, %arg3: memref<32x768xf32, #tpu.memory_space<vmem>>, %arg4: memref<16x2048xf32, #tpu.memory_space<vmem>>, %arg5: memref<32x2048xbf16, #tpu.memory_space<vmem>>, %arg6: memref<2048x32xbf16, #tpu.memory_space<vmem>>, %arg7: memref<8x128xf32, #tpu.memory_space<vmem>>, %arg8: memref<8x128xf32, #tpu.memory_space<vmem>>) attributes {dimension_semantics = [#tpu.dimension_semantics<arbitrary>], iteration_bounds = array<i64: 1>, scalar_prefetch = 0 : i64, scratch_operands = 0 : i64, tpu.core_type = #tpu.core_type<tc>, window_params = [{pipeline_mode = #tpu.pipeline_mode<synchronous>, transform_indices = @transform_0, window_bounds = array<i64: 24, 32>}, {pipeline_mode = #tpu.pipeline_mode<synchronous>, transform_indices = @transform_1, window_bounds = array<i64: 24, 32>}, {pipeline_mode = #tpu.pipeline_mode<synchronous>, transform_indices = @transform_2, window_bounds = array<i64: 32, 768>}, {pipeline_mode = #tpu.pipeline_mode<synchronous>, transform_indices = @transform_3, window_bounds = array<i64: 16, 2048>}, {pipeline_mode = #tpu.pipeline_mode<synchronous>, transform_indices = @transform_4, window_bounds = array<i64: 32, 2048>}, {pipeline_mode = #tpu.pipeline_mode<synchronous>, transform_indices = @transform_5, window_bounds = array<i64: 2048, 32>}, {pipeline_mode = #tpu.pipeline_mode<synchronous>, transform_indices = @transform_6, window_bounds = array<i64: 8, 128>}, {pipeline_mode = #tpu.pipeline_mode<synchronous>, transform_indices = @transform_7, window_bounds = array<i64: 8, 128>}]} {
    %c0 = arith.constant 0 : index
    %c0_0 = arith.constant 0 : index
    %0 = vector.load %arg1[%c0, %c0_0] : memref<24x32xf32, #tpu.memory_space<vmem>>, vector<24x32xf32>
    %c0_1 = arith.constant 0 : index
    %c0_2 = arith.constant 0 : index
    %1 = vector.load %arg3[%c0_1, %c0_2] : memref<32x768xf32, #tpu.memory_space<vmem>>, vector<32x32xf32>
    %cst = arith.constant dense<0.000000e+00> : vector<24x32xf32>
    %2 = tpu.matmul %0, %1, %cst {dimension_numbers = #tpu.dot_dimension_numbers<[1], [0], [0], [1], [0, 0, 1, 1], [], []>} : vector<24x32xf32>, vector<32x32xf32>, vector<24x32xf32> -> vector<24x32xf32>
    %c0_3 = arith.constant 0 : index
    %c0_4 = arith.constant 0 : index
    %3 = vector.load %arg4[%c0_3, %c0_4] : memref<16x2048xf32, #tpu.memory_space<vmem>>, vector<1x32xf32>
    %4 = vector.broadcast %3 : vector<1x32xf32> to vector<24x32xf32>
    %5 = arith.addf %2, %4 : vector<24x32xf32>
    %c1 = arith.constant 1 : index
    %c0_5 = arith.constant 0 : index
    %6 = vector.load %arg4[%c1, %c0_5] : memref<16x2048xf32, #tpu.memory_space<vmem>>, vector<1x32xf32>
    %c2 = arith.constant 2 : index
    %c0_6 = arith.constant 0 : index
    %7 = vector.load %arg4[%c2, %c0_6] : memref<16x2048xf32, #tpu.memory_space<vmem>>, vector<1x32xf32>
    %cst_7 = arith.constant dense<0.000000e+00> : vector<24xf32>
    %8 = vector.multi_reduction <add>, %5, %cst_7 [1] : vector<24x32xf32> to vector<24xf32>
    %9 = vector.shape_cast %8 : vector<24xf32> to vector<24x1xf32>
    %cst_8 = arith.constant 3.200000e+01 : f32
    %10 = vector.broadcast %cst_8 : f32 to vector<24x1xf32>
    %11 = arith.divf %9, %10 : vector<24x1xf32>
    %12 = vector.broadcast %11 : vector<24x1xf32> to vector<24x32xf32>
    %13 = arith.subf %5, %12 : vector<24x32xf32>
    %14 = arith.mulf %13, %13 : vector<24x32xf32>
    %cst_9 = arith.constant dense<0.000000e+00> : vector<24xf32>
    %15 = vector.multi_reduction <add>, %14, %cst_9 [1] : vector<24x32xf32> to vector<24xf32>
    %16 = vector.shape_cast %15 : vector<24xf32> to vector<24x1xf32>
    %cst_10 = arith.constant 3.200000e+01 : f32
    %17 = vector.broadcast %cst_10 : f32 to vector<24x1xf32>
    %18 = arith.divf %16, %17 : vector<24x1xf32>
    %19 = vector.broadcast %11 : vector<24x1xf32> to vector<24x32xf32>
    %20 = arith.subf %5, %19 : vector<24x32xf32>
    %cst_11 = arith.constant 9.99999974E-6 : f32
    %21 = vector.broadcast %cst_11 : f32 to vector<24x1xf32>
    %22 = arith.addf %18, %21 : vector<24x1xf32>
    %23 = math.rsqrt %22 : vector<24x1xf32>
    %24 = vector.broadcast %23 : vector<24x1xf32> to vector<24x32xf32>
    %25 = arith.mulf %20, %24 : vector<24x32xf32>
    %26 = vector.broadcast %6 : vector<1x32xf32> to vector<24x32xf32>
    %27 = arith.mulf %25, %26 : vector<24x32xf32>
    %28 = vector.broadcast %7 : vector<1x32xf32> to vector<24x32xf32>
    %29 = arith.addf %27, %28 : vector<24x32xf32>
    %cst_12 = arith.constant 0.000000e+00 : f32
    %30 = vector.broadcast %cst_12 : f32 to vector<24x32xf32>
    %31 = arith.maximumf %29, %30 : vector<24x32xf32>
    %c0_13 = arith.constant 0 : index
    %c0_14 = arith.constant 0 : index
    %32 = vector.load %arg2[%c0_13, %c0_14] : memref<24x32xf32, #tpu.memory_space<vmem>>, vector<24x32xf32>
    %33 = arith.addf %31, %32 : vector<24x32xf32>
    %c0_15 = arith.constant 0 : index
    %c128 = arith.constant 128 : index
    %34 = vector.load %arg3[%c0_15, %c128] : memref<32x768xf32, #tpu.memory_space<vmem>>, vector<32x384xf32>
    %cst_16 = arith.constant dense<0.000000e+00> : vector<24x384xf32>
    %35 = tpu.matmul %33, %34, %cst_16 {dimension_numbers = #tpu.dot_dimension_numbers<[1], [0], [0], [1], [0, 0, 1, 1], [], []>} : vector<24x32xf32>, vector<32x384xf32>, vector<24x384xf32> -> vector<24x384xf32>
    %36 = vector.extract_strided_slice %35 {offsets = [0, 0], sizes = [24, 128], strides = [1, 1]} : vector<24x384xf32> to vector<24x128xf32>
    %c3 = arith.constant 3 : index
    %c0_17 = arith.constant 0 : index
    %37 = vector.load %arg4[%c3, %c0_17] : memref<16x2048xf32, #tpu.memory_space<vmem>>, vector<1x128xf32>
    %38 = vector.broadcast %37 : vector<1x128xf32> to vector<24x128xf32>
    %39 = arith.addf %36, %38 : vector<24x128xf32>
    %40 = vector.extract_strided_slice %35 {offsets = [0, 128], sizes = [24, 128], strides = [1, 1]} : vector<24x384xf32> to vector<24x128xf32>
    %c4 = arith.constant 4 : index
    %c0_18 = arith.constant 0 : index
    %41 = vector.load %arg4[%c4, %c0_18] : memref<16x2048xf32, #tpu.memory_space<vmem>>, vector<1x128xf32>
    %42 = vector.broadcast %41 : vector<1x128xf32> to vector<24x128xf32>
    %43 = arith.addf %40, %42 : vector<24x128xf32>
    %44 = vector.extract_strided_slice %35 {offsets = [0, 256], sizes = [24, 32], strides = [1, 1]} : vector<24x384xf32> to vector<24x32xf32>
    %c5 = arith.constant 5 : index
    %c0_19 = arith.constant 0 : index
    %45 = vector.load %arg4[%c5, %c0_19] : memref<16x2048xf32, #tpu.memory_space<vmem>>, vector<1x32xf32>
    %46 = vector.broadcast %45 : vector<1x32xf32> to vector<24x32xf32>
    %47 = arith.addf %44, %46 : vector<24x32xf32>
    %cst_20 = arith.constant dense<0.000000e+00> : vector<24x24xf32>
    %48 = tpu.matmul %39, %43, %cst_20 {dimension_numbers = #tpu.dot_dimension_numbers<[1], [1], [0], [0], [0, 0, 1, 0], [], []>} : vector<24x128xf32>, vector<24x128xf32>, vector<24x24xf32> -> vector<24x24xf32>
    %cst_21 = arith.constant 0.176776692 : f32
    %49 = vector.broadcast %cst_21 : f32 to vector<24x24xf32>
    %50 = arith.mulf %48, %49 : vector<24x24xf32>
    %51 = tpu.iota {dimensions = array<i32: 0>} : vector<24x24xi32>
    %52 = tpu.iota {dimensions = array<i32: 1>} : vector<24x24xi32>
    %c8_i32 = arith.constant 8 : i32
    %c0_i32 = arith.constant 0 : i32
    %53 = arith.cmpi eq, %c8_i32, %c0_i32 : i32
    %c1_i32 = arith.constant 1 : i32
    %54 = arith.select %53, %c1_i32, %c8_i32 : i32
    %55 = vector.broadcast %54 : i32 to vector<24x24xi32>
    %56 = arith.remsi %51, %55 : vector<24x24xi32>
    %c0_i32_22 = arith.constant 0 : i32
    %57 = vector.broadcast %c0_i32_22 : i32 to vector<24x24xi32>
    %58 = arith.cmpi ne, %56, %57 : vector<24x24xi32>
    %c0_i32_23 = arith.constant 0 : i32
    %59 = vector.broadcast %c0_i32_23 : i32 to vector<24x24xi32>
    %60 = arith.cmpi slt, %56, %59 : vector<24x24xi32>
    %c0_i32_24 = arith.constant 0 : i32
    %61 = arith.cmpi slt, %54, %c0_i32_24 : i32
    %62 = vector.broadcast %61 : i1 to vector<24x24xi1>
    %63 = vector.broadcast %62 : vector<24x24xi1> to vector<24x24xi1>
    %64 = arith.xori %60, %63 : vector<24x24xi1>
    %65 = arith.andi %64, %58 : vector<24x24xi1>
    %66 = vector.broadcast %54 : i32 to vector<24x24xi32>
    %67 = arith.addi %56, %66 : vector<24x24xi32>
    %68 = arith.select %65, %67, %56 : vector<24x24xi1>, vector<24x24xi32>
    %c8_i32_25 = arith.constant 8 : i32
    %c0_i32_26 = arith.constant 0 : i32
    %69 = arith.cmpi eq, %c8_i32_25, %c0_i32_26 : i32
    %c1_i32_27 = arith.constant 1 : i32
    %70 = arith.select %69, %c1_i32_27, %c8_i32_25 : i32
    %71 = vector.broadcast %70 : i32 to vector<24x24xi32>
    %72 = arith.remsi %52, %71 : vector<24x24xi32>
    %c0_i32_28 = arith.constant 0 : i32
    %73 = vector.broadcast %c0_i32_28 : i32 to vector<24x24xi32>
    %74 = arith.cmpi ne, %72, %73 : vector<24x24xi32>
    %c0_i32_29 = arith.constant 0 : i32
    %75 = vector.broadcast %c0_i32_29 : i32 to vector<24x24xi32>
    %76 = arith.cmpi slt, %72, %75 : vector<24x24xi32>
    %c0_i32_30 = arith.constant 0 : i32
    %77 = arith.cmpi slt, %70, %c0_i32_30 : i32
    %78 = vector.broadcast %77 : i1 to vector<24x24xi1>
    %79 = vector.broadcast %78 : vector<24x24xi1> to vector<24x24xi1>
    %80 = arith.xori %76, %79 : vector<24x24xi1>
    %81 = arith.andi %80, %74 : vector<24x24xi1>
    %82 = vector.broadcast %70 : i32 to vector<24x24xi32>
    %83 = arith.addi %72, %82 : vector<24x24xi32>
    %84 = arith.select %81, %83, %72 : vector<24x24xi1>, vector<24x24xi32>
    %85 = arith.cmpi eq, %68, %84 : vector<24x24xi32>
    %cst_31 = arith.constant -1.000000e+09 : f32
    %86 = vector.broadcast %cst_31 : f32 to vector<24x24xf32>
    %87 = arith.select %85, %50, %86 : vector<24x24xi1>, vector<24x24xf32>
    %cst_32 = arith.constant dense<0xFF800000> : vector<24xf32>
    %88 = vector.multi_reduction <maximumf>, %87, %cst_32 [1] : vector<24x24xf32> to vector<24xf32>
    %89 = vector.shape_cast %88 : vector<24xf32> to vector<24x1xf32>
    %90 = vector.broadcast %89 : vector<24x1xf32> to vector<24x24xf32>
    %91 = arith.subf %87, %90 : vector<24x24xf32>
    %92 = math.exp %91 : vector<24x24xf32>
    %cst_33 = arith.constant dense<0.000000e+00> : vector<24xf32>
    %93 = vector.multi_reduction <add>, %92, %cst_33 [1] : vector<24x24xf32> to vector<24xf32>
    %94 = vector.shape_cast %93 : vector<24xf32> to vector<24x1xf32>
    %95 = tpu.reciprocal %94 {approx = true} : vector<24x1xf32> -> vector<24x1xf32>
    %96 = vector.broadcast %95 : vector<24x1xf32> to vector<24x24xf32>
    %97 = arith.mulf %92, %96 : vector<24x24xf32>
    %cst_34 = arith.constant dense<0.000000e+00> : vector<24x32xf32>
    %98 = tpu.matmul %97, %47, %cst_34 {dimension_numbers = #tpu.dot_dimension_numbers<[1], [0], [0], [1], [0, 0, 1, 1], [], []>} : vector<24x24xf32>, vector<24x32xf32>, vector<24x32xf32> -> vector<24x32xf32>
    %c0_35 = arith.constant 0 : index
    %c512 = arith.constant 512 : index
    %99 = vector.load %arg3[%c0_35, %c512] : memref<32x768xf32, #tpu.memory_space<vmem>>, vector<32x32xf32>
    %cst_36 = arith.constant dense<0.000000e+00> : vector<24x32xf32>
    %100 = tpu.matmul %98, %99, %cst_36 {dimension_numbers = #tpu.dot_dimension_numbers<[1], [0], [0], [1], [0, 0, 1, 1], [], []>} : vector<24x32xf32>, vector<32x32xf32>, vector<24x32xf32> -> vector<24x32xf32>
    %c6 = arith.constant 6 : index
    %c0_37 = arith.constant 0 : index
    %101 = vector.load %arg4[%c6, %c0_37] : memref<16x2048xf32, #tpu.memory_space<vmem>>, vector<1x32xf32>
    %102 = vector.broadcast %101 : vector<1x32xf32> to vector<24x32xf32>
    %103 = arith.addf %100, %102 : vector<24x32xf32>
    %104 = arith.addf %33, %103 : vector<24x32xf32>
    %c7 = arith.constant 7 : index
    %c0_38 = arith.constant 0 : index
    %105 = vector.load %arg4[%c7, %c0_38] : memref<16x2048xf32, #tpu.memory_space<vmem>>, vector<1x32xf32>
    %c8 = arith.constant 8 : index
    %c0_39 = arith.constant 0 : index
    %106 = vector.load %arg4[%c8, %c0_39] : memref<16x2048xf32, #tpu.memory_space<vmem>>, vector<1x32xf32>
    %cst_40 = arith.constant dense<0.000000e+00> : vector<24xf32>
    %107 = vector.multi_reduction <add>, %104, %cst_40 [1] : vector<24x32xf32> to vector<24xf32>
    %108 = vector.shape_cast %107 : vector<24xf32> to vector<24x1xf32>
    %cst_41 = arith.constant 3.200000e+01 : f32
    %109 = vector.broadcast %cst_41 : f32 to vector<24x1xf32>
    %110 = arith.divf %108, %109 : vector<24x1xf32>
    %111 = vector.broadcast %110 : vector<24x1xf32> to vector<24x32xf32>
    %112 = arith.subf %104, %111 : vector<24x32xf32>
    %113 = arith.mulf %112, %112 : vector<24x32xf32>
    %cst_42 = arith.constant dense<0.000000e+00> : vector<24xf32>
    %114 = vector.multi_reduction <add>, %113, %cst_42 [1] : vector<24x32xf32> to vector<24xf32>
    %115 = vector.shape_cast %114 : vector<24xf32> to vector<24x1xf32>
    %cst_43 = arith.constant 3.200000e+01 : f32
    %116 = vector.broadcast %cst_43 : f32 to vector<24x1xf32>
    %117 = arith.divf %115, %116 : vector<24x1xf32>
    %118 = vector.broadcast %110 : vector<24x1xf32> to vector<24x32xf32>
    %119 = arith.subf %104, %118 : vector<24x32xf32>
    %cst_44 = arith.constant 9.99999974E-6 : f32
    %120 = vector.broadcast %cst_44 : f32 to vector<24x1xf32>
    %121 = arith.addf %117, %120 : vector<24x1xf32>
    %122 = math.rsqrt %121 : vector<24x1xf32>
    %123 = vector.broadcast %122 : vector<24x1xf32> to vector<24x32xf32>
    %124 = arith.mulf %119, %123 : vector<24x32xf32>
    %125 = vector.broadcast %105 : vector<1x32xf32> to vector<24x32xf32>
    %126 = arith.mulf %124, %125 : vector<24x32xf32>
    %127 = vector.broadcast %106 : vector<1x32xf32> to vector<24x32xf32>
    %128 = arith.addf %126, %127 : vector<24x32xf32>
    %129 = arith.truncf %128 : vector<24x32xf32> to vector<24x32xbf16>
    %c0_45 = arith.constant 0 : index
    %c0_46 = arith.constant 0 : index
    %130 = vector.load %arg5[%c0_45, %c0_46] : memref<32x2048xbf16, #tpu.memory_space<vmem>>, vector<32x2048xbf16>
    %cst_47 = arith.constant dense<0.000000e+00> : vector<24x2048xf32>
    %131 = tpu.matmul %129, %130, %cst_47 {dimension_numbers = #tpu.dot_dimension_numbers<[1], [0], [0], [1], [0, 0, 1, 1], [], []>} : vector<24x32xbf16>, vector<32x2048xbf16>, vector<24x2048xf32> -> vector<24x2048xf32>
    %c13 = arith.constant 13 : index
    %c0_48 = arith.constant 0 : index
    %132 = vector.load %arg4[%c13, %c0_48] : memref<16x2048xf32, #tpu.memory_space<vmem>>, vector<1x2048xf32>
    %133 = vector.broadcast %132 : vector<1x2048xf32> to vector<24x2048xf32>
    %134 = arith.addf %131, %133 : vector<24x2048xf32>
    %cst_49 = arith.constant 0.000000e+00 : f32
    %135 = vector.broadcast %cst_49 : f32 to vector<24x2048xf32>
    %136 = arith.maximumf %134, %135 : vector<24x2048xf32>
    %137 = arith.truncf %136 : vector<24x2048xf32> to vector<24x2048xbf16>
    %c0_50 = arith.constant 0 : index
    %c0_51 = arith.constant 0 : index
    %138 = vector.load %arg6[%c0_50, %c0_51] : memref<2048x32xbf16, #tpu.memory_space<vmem>>, vector<2048x32xbf16>
    %cst_52 = arith.constant dense<0.000000e+00> : vector<24x32xf32>
    %139 = tpu.matmul %137, %138, %cst_52 {dimension_numbers = #tpu.dot_dimension_numbers<[1], [0], [0], [1], [0, 0, 1, 1], [], []>} : vector<24x2048xbf16>, vector<2048x32xbf16>, vector<24x32xf32> -> vector<24x32xf32>
    %c9 = arith.constant 9 : index
    %c0_53 = arith.constant 0 : index
    %140 = vector.load %arg4[%c9, %c0_53] : memref<16x2048xf32, #tpu.memory_space<vmem>>, vector<1x32xf32>
    %141 = vector.broadcast %140 : vector<1x32xf32> to vector<24x32xf32>
    %142 = arith.addf %139, %141 : vector<24x32xf32>
    %143 = arith.addf %128, %142 : vector<24x32xf32>
    %c10 = arith.constant 10 : index
    %c0_54 = arith.constant 0 : index
    %144 = vector.load %arg4[%c10, %c0_54] : memref<16x2048xf32, #tpu.memory_space<vmem>>, vector<1x32xf32>
    %c11 = arith.constant 11 : index
    %c0_55 = arith.constant 0 : index
    %145 = vector.load %arg4[%c11, %c0_55] : memref<16x2048xf32, #tpu.memory_space<vmem>>, vector<1x32xf32>
    %cst_56 = arith.constant dense<0.000000e+00> : vector<24xf32>
    %146 = vector.multi_reduction <add>, %143, %cst_56 [1] : vector<24x32xf32> to vector<24xf32>
    %147 = vector.shape_cast %146 : vector<24xf32> to vector<24x1xf32>
    %cst_57 = arith.constant 3.200000e+01 : f32
    %148 = vector.broadcast %cst_57 : f32 to vector<24x1xf32>
    %149 = arith.divf %147, %148 : vector<24x1xf32>
    %150 = vector.broadcast %149 : vector<24x1xf32> to vector<24x32xf32>
    %151 = arith.subf %143, %150 : vector<24x32xf32>
    %152 = arith.mulf %151, %151 : vector<24x32xf32>
    %cst_58 = arith.constant dense<0.000000e+00> : vector<24xf32>
    %153 = vector.multi_reduction <add>, %152, %cst_58 [1] : vector<24x32xf32> to vector<24xf32>
    %154 = vector.shape_cast %153 : vector<24xf32> to vector<24x1xf32>
    %cst_59 = arith.constant 3.200000e+01 : f32
    %155 = vector.broadcast %cst_59 : f32 to vector<24x1xf32>
    %156 = arith.divf %154, %155 : vector<24x1xf32>
    %157 = vector.broadcast %149 : vector<24x1xf32> to vector<24x32xf32>
    %158 = arith.subf %143, %157 : vector<24x32xf32>
    %cst_60 = arith.constant 9.99999974E-6 : f32
    %159 = vector.broadcast %cst_60 : f32 to vector<24x1xf32>
    %160 = arith.addf %156, %159 : vector<24x1xf32>
    %161 = math.rsqrt %160 : vector<24x1xf32>
    %162 = vector.broadcast %161 : vector<24x1xf32> to vector<24x32xf32>
    %163 = arith.mulf %158, %162 : vector<24x32xf32>
    %164 = vector.broadcast %144 : vector<1x32xf32> to vector<24x32xf32>
    %165 = arith.mulf %163, %164 : vector<24x32xf32>
    %166 = vector.broadcast %145 : vector<1x32xf32> to vector<24x32xf32>
    %167 = arith.addf %165, %166 : vector<24x32xf32>
    %168 = vector.extract_strided_slice %167 {offsets = [0, 0], sizes = [8, 32], strides = [1, 1]} : vector<24x32xf32> to vector<8x32xf32>
    %169 = vector.extract_strided_slice %167 {offsets = [0, 0], sizes = [8, 32], strides = [1, 1]} : vector<24x32xf32> to vector<8x32xf32>
    %170 = vector.extract_strided_slice %167 {offsets = [8, 0], sizes = [8, 32], strides = [1, 1]} : vector<24x32xf32> to vector<8x32xf32>
    %171 = arith.addf %168, %170 : vector<8x32xf32>
    %172 = arith.maximumf %169, %170 : vector<8x32xf32>
    %173 = vector.extract_strided_slice %167 {offsets = [16, 0], sizes = [8, 32], strides = [1, 1]} : vector<24x32xf32> to vector<8x32xf32>
    %174 = arith.addf %171, %173 : vector<8x32xf32>
    %175 = arith.maximumf %172, %173 : vector<8x32xf32>
    %cst_61 = arith.constant 0.333333343 : f32
    %176 = vector.broadcast %cst_61 : f32 to vector<8x32xf32>
    %177 = arith.mulf %174, %176 : vector<8x32xf32>
    %c0_62 = arith.constant 0 : index
    %c640 = arith.constant 640 : index
    %178 = vector.load %arg3[%c0_62, %c640] : memref<32x768xf32, #tpu.memory_space<vmem>>, vector<32x128xf32>
    %cst_63 = arith.constant dense<0.000000e+00> : vector<8x128xf32>
    %179 = tpu.matmul %177, %178, %cst_63 {dimension_numbers = #tpu.dot_dimension_numbers<[1], [0], [0], [1], [0, 0, 1, 1], [], []>} : vector<8x32xf32>, vector<32x128xf32>, vector<8x128xf32> -> vector<8x128xf32>
    %c12 = arith.constant 12 : index
    %c0_64 = arith.constant 0 : index
    %180 = vector.load %arg4[%c12, %c0_64] : memref<16x2048xf32, #tpu.memory_space<vmem>>, vector<1x128xf32>
    %181 = vector.broadcast %180 : vector<1x128xf32> to vector<8x128xf32>
    %182 = arith.addf %179, %181 : vector<8x128xf32>
    %c0_65 = arith.constant 0 : index
    %c0_66 = arith.constant 0 : index
    %183 = vector.load %arg7[%c0_65, %c0_66] : memref<8x128xf32, #tpu.memory_space<vmem>>, vector<8x128xf32>
    tpu.vector_store %arg7[%c0_65, %c0_66], %182 {strides = array<i32>} : memref<8x128xf32, #tpu.memory_space<vmem>>, vector<8x128xf32>,
    %cst_67 = arith.constant 0.000000e+00 : f32
    %184 = vector.broadcast %cst_67 : f32 to vector<8x96xf32>
    %185 = tpu.concatenate %175, %184 in 1 : vector<8x32xf32>, vector<8x96xf32> -> vector<8x128xf32>
    %c0_68 = arith.constant 0 : index
    %c0_69 = arith.constant 0 : index
    %186 = vector.load %arg8[%c0_68, %c0_69] : memref<8x128xf32, #tpu.memory_space<vmem>>, vector<8x128xf32>
    tpu.vector_store %arg8[%c0_68, %c0_69], %185 {strides = array<i32>} : memref<8x128xf32, #tpu.memory_space<vmem>>, vector<8x128xf32>,
    return
  }
  func.func @transform_0(%arg0: i32) -> (i32, i32) {
    %c0_i32 = arith.constant 0 : i32
    %c0_i32_0 = arith.constant 0 : i32
    %c0_i32_1 = arith.constant 0 : i32
    return %c0_i32, %c0_i32_0 : i32, i32
  }
  func.func @transform_1(%arg0: i32) -> (i32, i32) {
    %c0_i32 = arith.constant 0 : i32
    %c0_i32_0 = arith.constant 0 : i32
    %c0_i32_1 = arith.constant 0 : i32
    return %c0_i32, %c0_i32_0 : i32, i32
  }
  func.func @transform_2(%arg0: i32) -> (i32, i32) {
    %c0_i32 = arith.constant 0 : i32
    %c0_i32_0 = arith.constant 0 : i32
    %c0_i32_1 = arith.constant 0 : i32
    return %c0_i32, %c0_i32_0 : i32, i32
  }
  func.func @transform_3(%arg0: i32) -> (i32, i32) {
    %c0_i32 = arith.constant 0 : i32
    %c0_i32_0 = arith.constant 0 : i32
    %c0_i32_1 = arith.constant 0 : i32
    return %c0_i32, %c0_i32_0 : i32, i32
  }
  func.func @transform_4(%arg0: i32) -> (i32, i32) {
    %c0_i32 = arith.constant 0 : i32
    %c0_i32_0 = arith.constant 0 : i32
    %c0_i32_1 = arith.constant 0 : i32
    return %c0_i32, %c0_i32_0 : i32, i32
  }
  func.func @transform_5(%arg0: i32) -> (i32, i32) {
    %c0_i32 = arith.constant 0 : i32
    %c0_i32_0 = arith.constant 0 : i32
    %c0_i32_1 = arith.constant 0 : i32
    return %c0_i32, %c0_i32_0 : i32, i32
  }
  func.func @transform_6(%arg0: i32) -> (i32, i32) {
    %c0_i32 = arith.constant 0 : i32
    %c0_i32_0 = arith.constant 0 : i32
    %c0_i32_1 = arith.constant 0 : i32
    return %c0_i32, %c0_i32_0 : i32, i32
  }
  func.func @transform_7(%arg0: i32) -> (i32, i32) {
    %c0_i32 = arith.constant 0 : i32
    %c0_i32_0 = arith.constant 0 : i32
    %c0_i32_1 = arith.constant 0 : i32
    return %c0_i32, %c0_i32_0 : i32, i32
  }
}

</mosaic_0001>

<llo_original>
// kernel: _lambda_.1
$region0: #{_lambda_.1}
  #allocation0 [shape = 'u32[]', space=smem, size = 0x4, offset = 0x4, fixed_abs, tag = 'smem constant byte address 0x4 - core index']
  #allocation1 [shape = 'u32[144,128]{1,0:T(1,128)}', space=vmem, size = 0x12000, scoped, tag = 'internal scratch']
  %s0 = inlined_call_operand.vmem [shape: f32[24,32], index: 0, kind: input, shape index: {}]
  %s1 = inlined_call_operand.vmem [shape: f32[24,32], index: 1, kind: input, shape index: {}]
  %s2 = inlined_call_operand.vmem [shape: f32[32,768], index: 2, kind: input, shape index: {}]
  %s3 = inlined_call_operand.vmem [shape: f32[16,2048], index: 3, kind: input, shape index: {}]
  %s4 = inlined_call_operand.vmem [shape: bf16[32,2048], index: 4, kind: input, shape index: {}]
  %s5 = inlined_call_operand.vmem [shape: bf16[2048,32], index: 5, kind: input, shape index: {}]
  %s6 = inlined_call_operand.hbm [shape: f32[8,128], index: 6, kind: output, shape index: {0}]
  %s7 = inlined_call_operand.hbm [shape: f32[8,128], index: 7, kind: output, shape index: {1}]
  %8 = xla_tuple %s6, %s7
  %s9 = sld [smem:[#allocation0]]
  $region42: #{_lambda_.1} parent=0
    _
  %s11 = ssub.s32 1, %s9
  %s12 = scalar_select 0, %s11, %s9
  $region1: #{_lambda_.1} parent=0
    #allocation2 [shape = 'u8[4096]{0}', space=vmem, size = 0x1000, scoped, tag = 'output window, operand 0, single buffered']
    #allocation3 [shape = 's32[1]{0}', space=sflag, size = 0x4, scoped, tag = 'scoped memory for _lambda_.1']
    #allocation4 [shape = 'u8[4096]{0}', space=vmem, size = 0x1000, scoped, tag = 'output window, operand 1, single buffered']
    #allocation5 [shape = 's32[1]{0}', space=sflag, size = 0x4, scoped, tag = 'scoped memory for _lambda_.1']
    %13 = vsyncpa [#allocation3], 0
    %14 = vsyncpa [#allocation5], 0
    // Predicated region
    $region2: #{_lambda_.1} parent=1 // pred_check
      _
    $region3: #{_lambda_.1} parent=1 // pred_check_branch
      %16 = sbr.rel (0) target = $region5
    $region4: #{_lambda_.1} parent=1 // pred_region
      _
    $region5: #{_lambda_.1} parent=1 // pred_fallthru
      _
    // Predicated region
    $region6: #{_lambda_.1} parent=1 // pred_check
      _
    $region7: #{_lambda_.1} parent=1 // pred_check_branch
      %18 = sbr.rel (0) target = $region9
    $region8: #{_lambda_.1} parent=1 // pred_region
      _
    $region9: #{_lambda_.1} parent=1 // pred_fallthru
      _
    // Predicated region
    $region10: #{_lambda_.1} parent=1 // pred_check
      _
    $region11: #{_lambda_.1} parent=1 // pred_check_branch
      %20 = sbr.rel (0) target = $region13
    $region12: #{_lambda_.1} parent=1 // pred_region
      _
    $region13: #{_lambda_.1} parent=1 // pred_fallthru
      _
    // Predicated region
    $region14: #{_lambda_.1} parent=1 // pred_check
      _
    $region15: #{_lambda_.1} parent=1 // pred_check_branch
      %22 = sbr.rel (0) target = $region17
    $region16: #{_lambda_.1} parent=1 // pred_region
      _
    $region17: #{_lambda_.1} parent=1 // pred_fallthru
      _
    // Predicated region
    $region18: #{_lambda_.1} parent=1 // pred_check
      _
    $region19: #{_lambda_.1} parent=1 // pred_check_branch
      %24 = sbr.rel (0) target = $region21
    $region20: #{_lambda_.1} parent=1 // pred_region
      _
    $region21: #{_lambda_.1} parent=1 // pred_fallthru
      _
    // Predicated region
    $region22: #{_lambda_.1} parent=1 // pred_check
      _
    $region23: #{_lambda_.1} parent=1 // pred_check_branch
      %26 = sbr.rel (0) target = $region25
    $region24: #{_lambda_.1} parent=1 // pred_region
      _
    $region25: #{_lambda_.1} parent=1 // pred_fallthru
      _
    %v28 = vld [vmem:[%s0] sm:$0xff]
    %v29 = vld [vmem:[%s0 + $0x8] sm:$0xff]
    %v30 = vld [vmem:[%s0 + $0x10] sm:$0xff]
    %v31 = vld [vmem:[%s2] sm:$0xff]
    %v32 = vld [vmem:[%s2 + $0x30] sm:$0xff]
    %v33 = vld [vmem:[%s2 + $0x60] sm:$0xff]
    %v34 = vld [vmem:[%s2 + $0x90] sm:$0xff]
    %v35 = vld [vmem:[%s3] ss:$0 sm:$0xff]
    %vm36 = vcmask 261120
    %v38 = vsel %vm36, %v28, 0
    %v41 = vsel %vm36, %v29, 0
    %v44 = vsel %vm36, %v30, 0
    %46 = vmatprep.subr.mxu0 0.0
    %47 = vmatpush1.msra.mxu0 0.0
    %48 = vmatprep.subr.mxu0 0.0
    %49 = vmatpush1.msra.mxu0 0.0
    %50 = vmatprep.subr.mxu0 0.0
    %51 = vmatpush1.msra.mxu0 0.0
    %52 = vmatprep.subr.mxu0 0.0
    %53 = vmatpush1.msra.mxu0 0.0
    %54 = vmatprep.subr.mxu0 0.0
    %55 = vmatpush1.msra.mxu0 0.0
    %56 = vmatprep.subr.mxu0 0.0
    %57 = vmatpush1.msra.mxu0 0.0
    %58 = vmatprep.subr.mxu0 0.0
    %59 = vmatpush1.msra.mxu0 0.0
    %60 = vmatprep.subr.mxu0 0.0
    %61 = vmatpush1.msra.mxu0 0.0
    %62 = vmatprep.subr.mxu0 0.0
    %63 = vmatpush1.msra.mxu0 0.0
    %64 = vmatprep.subr.mxu0 0.0
    %65 = vmatpush1.msra.mxu0 0.0
    %66 = vmatprep.subr.mxu0 0.0
    %67 = vmatpush1.msra.mxu0 0.0
    %68 = vmatprep.subr.mxu0 0.0
    %69 = vmatpush1.msra.mxu0 0.0
    %70 = vmatprep.subr.mxu0 0.0
    %71 = vmatpush1.msra.mxu0 %v34
    %72 = vmatprep.subr.mxu0 0.0
    %73 = vmatpush1.msra.mxu0 %v33
    %74 = vmatprep.subr.mxu0 0.0
    %75 = vmatpush1.msra.mxu0 %v32
    %76 = vmatprep.subr.mxu0 0.0
    %77 = vmatpush1.msra.mxu0 %v31
    %78 = vmatprep.subr.mxu0 0.0
    %79 = vmatpush2.msra.mxu0 0.0
    %80 = vmatprep.subr.mxu0 0.0
    %81 = vmatpush2.msra.mxu0 0.0
    %82 = vmatprep.subr.mxu0 0.0
    %83 = vmatpush2.msra.mxu0 0.0
    %84 = vmatprep.subr.mxu0 0.0
    %85 = vmatpush2.msra.mxu0 0.0
    %86 = vmatprep.subr.mxu0 0.0
    %87 = vmatpush2.msra.mxu0 0.0
    %88 = vmatprep.subr.mxu0 0.0
    %89 = vmatpush2.msra.mxu0 0.0
    %90 = vmatprep.subr.mxu0 0.0
    %91 = vmatpush2.msra.mxu0 0.0
    %92 = vmatprep.subr.mxu0 0.0
    %93 = vmatpush2.msra.mxu0 0.0
    %94 = vmatprep.subr.mxu0 0.0
    %95 = vmatpush2.msra.mxu0 0.0
    %96 = vmatprep.subr.mxu0 0.0
    %97 = vmatpush2.msra.mxu0 0.0
    %98 = vmatprep.subr.mxu0 0.0
    %99 = vmatpush2.msra.mxu0 0.0
    %100 = vmatprep.subr.mxu0 0.0
    %101 = vmatpush2.msra.mxu0 0.0
    %102 = vmatprep.subr.mxu0 0.0
    %103 = vmatpush2.msra.mxu0 0.0
    %104 = vmatprep.subr.mxu0 0.0
    %105 = vmatpush2.msra.mxu0 0.0
    %106 = vmatprep.subr.mxu0 0.0
    %107 = vmatpush2.msra.mxu0 0.0
    %108 = vmatprep.subr.mxu0 0.0
    %109 = vmatpush2.msra.mxu0 0.0
    %110 = vmatprep.mubr.f32.mxu0 0.0
    %111 = vmatmul.mubr.f32.gmra.mxu0 %v38
    %v112 = vpop.f32.mrf.mxu0
    %v113 = vadd.f32 %v35, %v112
    %v114 = vpop.f32.mrf.mxu0
    %115 = vmatprep.mubr.f32.mxu0 0.0
    %116 = vmatmul.mubr.f32.gmra.mxu0 %v41
    %v117 = vpop.f32.mrf.mxu0
    %v118 = vadd.f32 %v35, %v117
    %v119 = vpop.f32.mrf.mxu0
    %120 = vmatprep.mubr.f32.mxu0 0.0
    %121 = vmatmul.mubr.f32.gmra.mxu0 %v44
    %v122 = vpop.f32.mrf.mxu0
    %v123 = vadd.f32 %v35, %v122
    %v124 = vpop.f32.mrf.mxu0
    %125 = vdwg.mxu0
    %v126 = vld [vmem:[%s3 + $0x1] ss:$0 sm:$0xff]
    %v127 = vld [vmem:[%s3 + $0x2] ss:$0 sm:$0xff]
    %v128 = vsel %vm36, %v113, 0.0
    %129 = vadd.xlane.f32.xlu0 %v128
    %v130 = vpop.xlane.xlu0 %129
    %v131 = vsel %vm36, %v118, 0.0
    %132 = vadd.xlane.f32.xlu0 %v131
    %v133 = vpop.xlane.xlu0 %132
    %v134 = vsel %vm36, %v123, 0.0
    %135 = vadd.xlane.f32.xlu0 %v134
    %v136 = vpop.xlane.xlu0 %135
    %v137 = vrcp.pop 32.0
    %v138 = vmul.f32 %v130, %v137
    %v139 = vmul.f32 %v133, %v137
    %v140 = vmul.f32 %v136, %v137
    %v141 = vsub.f32 %v113, %v138
    %v142 = vsub.f32 %v118, %v139
    %v143 = vsub.f32 %v123, %v140
    %v144 = vmul.f32 %v141, %v141
    %v145 = vmul.f32 %v142, %v142
    %v146 = vmul.f32 %v143, %v143
    %v147 = vsel %vm36, %v144, 0.0
    %148 = vadd.xlane.f32.xlu0 %v147
    %v149 = vpop.xlane.xlu0 %148
    %v150 = vsel %vm36, %v145, 0.0
    %151 = vadd.xlane.f32.xlu0 %v150
    %v152 = vpop.xlane.xlu0 %151
    %v153 = vsel %vm36, %v146, 0.0
    %154 = vadd.xlane.f32.xlu0 %v153
    %v155 = vpop.xlane.xlu0 %154
    %v156 = vmul.f32 %v149, %v137
    %v157 = vmul.f32 %v152, %v137
    %v158 = vmul.f32 %v155, %v137
    %v159 = vadd.f32 %v156, 1e-05
    %v160 = vadd.f32 %v157, 1e-05
    %v161 = vadd.f32 %v158, 1e-05
    %v162 = vrsqrt.pop %v159
    %v163 = vrsqrt.pop %v160
    %v164 = vrsqrt.pop %v161
    %v165 = vmul.f32 %v141, %v162
    %v166 = vmul.f32 %v142, %v163
    %v167 = vmul.f32 %v143, %v164
    %v168 = vmul.f32 %v165, %v126
    %v169 = vmul.f32 %v166, %v126
    %v170 = vmul.f32 %v167, %v126
    %v171 = vadd.f32 %v168, %v127
    %v172 = vadd.f32 %v169, %v127
    %v173 = vadd.f32 %v170, %v127
    %v174 = vmax.f32 %v171, 0.0
    %v175 = vmax.f32 %v172, 0.0
    %v176 = vmax.f32 %v173, 0.0
    %v177 = vld [vmem:[%s1] sm:$0xff]
    %v178 = vld [vmem:[%s1 + $0x8] sm:$0xff]
    %v179 = vld [vmem:[%s1 + $0x10] sm:$0xff]
    %v180 = vadd.f32 %v174, %v177
    %v181 = vadd.f32 %v175, %v178
    %v182 = vadd.f32 %v176, %v179
    %v183 = vld [vmem:[%s2 + $0x8] sm:$0xff]
    %v184 = vld [vmem:[%s2 + $0x10] sm:$0xff]
    %v185 = vld [vmem:[%s2 + $0x18] sm:$0xff]
    %v186 = vld [vmem:[%s2 + $0x38] sm:$0xff]
    %v187 = vld [vmem:[%s2 + $0x40] sm:$0xff]
    %v188 = vld [vmem:[%s2 + $0x48] sm:$0xff]
    %v189 = vld [vmem:[%s2 + $0x68] sm:$0xff]
    %v190 = vld [vmem:[%s2 + $0x70] sm:$0xff]
    %v191 = vld [vmem:[%s2 + $0x78] sm:$0xff]
    %v192 = vld [vmem:[%s2 + $0x98] sm:$0xff]
    %v193 = vld [vmem:[%s2 + $0xa0] sm:$0xff]
    %v194 = vld [vmem:[%s2 + $0xa8] sm:$0xff]
    %v196 = vsel %vm36, %v180, 0
    %v199 = vsel %vm36, %v181, 0
    %v202 = vsel %vm36, %v182, 0
    %204 = vmatprep.subr.mxu0 0.0
    %205 = vmatpush1.msra.mxu0 0.0
    %206 = vmatprep.subr.mxu0 0.0
    %207 = vmatpush1.msra.mxu0 0.0
    %208 = vmatprep.subr.mxu0 0.0
    %209 = vmatpush1.msra.mxu0 0.0
    %210 = vmatprep.subr.mxu0 0.0
    %211 = vmatpush1.msra.mxu0 0.0
    %212 = vmatprep.subr.mxu0 0.0
    %213 = vmatpush1.msra.mxu0 0.0
    %214 = vmatprep.subr.mxu0 0.0
    %215 = vmatpush1.msra.mxu0 0.0
    %216 = vmatprep.subr.mxu0 0.0
    %217 = vmatpush1.msra.mxu0 0.0
    %218 = vmatprep.subr.mxu0 0.0
    %219 = vmatpush1.msra.mxu0 0.0
    %220 = vmatprep.subr.mxu0 0.0
    %221 = vmatpush1.msra.mxu0 0.0
    %222 = vmatprep.subr.mxu0 0.0
    %223 = vmatpush1.msra.mxu0 0.0
    %224 = vmatprep.subr.mxu0 0.0
    %225 = vmatpush1.msra.mxu0 0.0
    %226 = vmatprep.subr.mxu0 0.0
    %227 = vmatpush1.msra.mxu0 0.0
    %228 = vmatprep.subr.mxu0 %v193
    %229 = vmatpush1.msra.mxu0 %v192
    %230 = vmatprep.subr.mxu0 %v190
    %231 = vmatpush1.msra.mxu0 %v189
    %232 = vmatprep.subr.mxu0 %v187
    %233 = vmatpush1.msra.mxu0 %v186
    %234 = vmatprep.subr.mxu0 %v184
    %235 = vmatpush1.msra.mxu0 %v183
    %236 = vmatprep.subr.mxu0 0.0
    %237 = vmatpush2.msra.mxu0 0.0
    %238 = vmatprep.subr.mxu0 0.0
    %239 = vmatpush2.msra.mxu0 0.0
    %240 = vmatprep.subr.mxu0 0.0
    %241 = vmatpush2.msra.mxu0 0.0
    %242 = vmatprep.subr.mxu0 0.0
    %243 = vmatpush2.msra.mxu0 0.0
    %244 = vmatprep.subr.mxu0 0.0
    %245 = vmatpush2.msra.mxu0 0.0
    %246 = vmatprep.subr.mxu0 0.0
    %247 = vmatpush2.msra.mxu0 0.0
    %248 = vmatprep.subr.mxu0 0.0
    %249 = vmatpush2.msra.mxu0 0.0
    %250 = vmatprep.subr.mxu0 0.0
    %251 = vmatpush2.msra.mxu0 0.0
    %252 = vmatprep.subr.mxu0 0.0
    %253 = vmatpush2.msra.mxu0 0.0
    %254 = vmatprep.subr.mxu0 0.0
    %255 = vmatpush2.msra.mxu0 0.0
    %256 = vmatprep.subr.mxu0 0.0
    %257 = vmatpush2.msra.mxu0 0.0
    %258 = vmatprep.subr.mxu0 0.0
    %259 = vmatpush2.msra.mxu0 0.0
    %260 = vmatprep.subr.mxu0 0.0
    %261 = vmatpush2.msra.mxu0 0.0
    %262 = vmatprep.subr.mxu0 0.0
    %263 = vmatpush2.msra.mxu0 0.0
    %264 = vmatprep.subr.mxu0 0.0
    %265 = vmatpush2.msra.mxu0 0.0
    %266 = vmatprep.subr.mxu0 0.0
    %267 = vmatpush2.msra.mxu0 0.0
    %268 = vmatprep.mubr.f32.mxu0 0.0
    %269 = vmatmul.mubr.f32.gmra.mxu0 %v196
    %v270 = vpop.f32.mrf.mxu0
    %v271 = vadd.f32 0.0, %v270
    %v272 = vpop.f32.mrf.mxu0
    %v273 = vadd.f32 0.0, %v272
    %274 = vmatprep.mubr.f32.mxu0 0.0
    %275 = vmatmul.mubr.f32.gmra.mxu0 %v199
    %v276 = vpop.f32.mrf.mxu0
    %v277 = vadd.f32 0.0, %v276
    %v278 = vpop.f32.mrf.mxu0
    %v279 = vadd.f32 0.0, %v278
    %280 = vmatprep.mubr.f32.mxu0 0.0
    %281 = vmatmul.mubr.f32.gmra.mxu0 %v202
    %v282 = vpop.f32.mrf.mxu0
    %v283 = vadd.f32 0.0, %v282
    %v284 = vpop.f32.mrf.mxu0
    %v285 = vadd.f32 0.0, %v284
    %286 = vdwg.mxu0
    %287 = vmatprep.subr.mxu0 0.0
    %288 = vmatpush1.msra.mxu0 0.0
    %289 = vmatprep.subr.mxu0 0.0
    %290 = vmatpush1.msra.mxu0 0.0
    %291 = vmatprep.subr.mxu0 0.0
    %292 = vmatpush1.msra.mxu0 0.0
    %293 = vmatprep.subr.mxu0 0.0
    %294 = vmatpush1.msra.mxu0 0.0
    %295 = vmatprep.subr.mxu0 0.0
    %296 = vmatpush1.msra.mxu0 0.0
    %297 = vmatprep.subr.mxu0 0.0
    %298 = vmatpush1.msra.mxu0 0.0
    %299 = vmatprep.subr.mxu0 0.0
    %300 = vmatpush1.msra.mxu0 0.0
    %301 = vmatprep.subr.mxu0 0.0
    %302 = vmatpush1.msra.mxu0 0.0
    %303 = vmatprep.subr.mxu0 0.0
    %304 = vmatpush1.msra.mxu0 0.0
    %305 = vmatprep.subr.mxu0 0.0
    %306 = vmatpush1.msra.mxu0 0.0
    %307 = vmatprep.subr.mxu0 0.0
    %308 = vmatpush1.msra.mxu0 0.0
    %309 = vmatprep.subr.mxu0 0.0
    %310 = vmatpush1.msra.mxu0 0.0
    %311 = vmatprep.subr.mxu0 0.0
    %312 = vmatpush1.msra.mxu0 %v194
    %313 = vmatprep.subr.mxu0 0.0
    %314 = vmatpush1.msra.mxu0 %v191
    %315 = vmatprep.subr.mxu0 0.0
    %316 = vmatpush1.msra.mxu0 %v188
    %317 = vmatprep.subr.mxu0 0.0
    %318 = vmatpush1.msra.mxu0 %v185
    %319 = vmatprep.subr.mxu0 0.0
    %320 = vmatpush2.msra.mxu0 0.0
    %321 = vmatprep.subr.mxu0 0.0
    %322 = vmatpush2.msra.mxu0 0.0
    %323 = vmatprep.subr.mxu0 0.0
    %324 = vmatpush2.msra.mxu0 0.0
    %325 = vmatprep.subr.mxu0 0.0
    %326 = vmatpush2.msra.mxu0 0.0
    %327 = vmatprep.subr.mxu0 0.0
    %328 = vmatpush2.msra.mxu0 0.0
    %329 = vmatprep.subr.mxu0 0.0
    %330 = vmatpush2.msra.mxu0 0.0
    %331 = vmatprep.subr.mxu0 0.0
    %332 = vmatpush2.msra.mxu0 0.0
    %333 = vmatprep.subr.mxu0 0.0
    %334 = vmatpush2.msra.mxu0 0.0
    %335 = vmatprep.subr.mxu0 0.0
    %336 = vmatpush2.msra.mxu0 0.0
    %337 = vmatprep.subr.mxu0 0.0
    %338 = vmatpush2.msra.mxu0 0.0
    %339 = vmatprep.subr.mxu0 0.0
    %340 = vmatpush2.msra.mxu0 0.0
    %341 = vmatprep.subr.mxu0 0.0
    %342 = vmatpush2.msra.mxu0 0.0
    %343 = vmatprep.subr.mxu0 0.0
    %344 = vmatpush2.msra.mxu0 0.0
    %345 = vmatprep.subr.mxu0 0.0
    %346 = vmatpush2.msra.mxu0 0.0
    %347 = vmatprep.subr.mxu0 0.0
    %348 = vmatpush2.msra.mxu0 0.0
    %349 = vmatprep.subr.mxu0 0.0
    %350 = vmatpush2.msra.mxu0 0.0
    %351 = vmatprep.mubr.f32.mxu0 0.0
    %352 = vmatmul.mubr.f32.gmra.mxu0 %v196
    %v353 = vpop.f32.mrf.mxu0
    %v354 = vadd.f32 0.0, %v353
    %v355 = vpop.f32.mrf.mxu0
    %356 = vmatprep.mubr.f32.mxu0 0.0
    %357 = vmatmul.mubr.f32.gmra.mxu0 %v199
    %v358 = vpop.f32.mrf.mxu0
    %v359 = vadd.f32 0.0, %v358
    %v360 = vpop.f32.mrf.mxu0
    %361 = vmatprep.mubr.f32.mxu0 0.0
    %362 = vmatmul.mubr.f32.gmra.mxu0 %v202
    %v363 = vpop.f32.mrf.mxu0
    %v364 = vadd.f32 0.0, %v363
    %v365 = vpop.f32.mrf.mxu0
    %366 = vdwg.mxu0
    %v367 = vld [vmem:[%s3 + $0x3] ss:$0 sm:$0xff]
    %v368 = vadd.f32 %v271, %v367
    %v369 = vadd.f32 %v277, %v367
    %v370 = vadd.f32 %v283, %v367
    %v371 = vld [vmem:[%s3 + $0x4] ss:$0 sm:$0xff]
    %v372 = vadd.f32 %v273, %v371
    %v373 = vadd.f32 %v279, %v371
    %v374 = vadd.f32 %v285, %v371
    %v375 = vld [vmem:[%s3 + $0x5] ss:$0 sm:$0xff]
    %v376 = vadd.f32 %v354, %v375
    %v377 = vadd.f32 %v359, %v375
    %v378 = vadd.f32 %v364, %v375
    %379 = vmatprep.subr.mxu0 0.0
    %380 = vmatpush1.xpose.msra.mxu0 0.0
    %381 = vmatprep.subr.mxu0 0.0
    %382 = vmatpush1.xpose.msra.mxu0 0.0
    %383 = vmatprep.subr.mxu0 0.0
    %384 = vmatpush1.xpose.msra.mxu0 0.0
    %385 = vmatprep.subr.mxu0 0.0
    %386 = vmatpush1.xpose.msra.mxu0 0.0
    %387 = vmatprep.subr.mxu0 0.0
    %388 = vmatpush1.xpose.msra.mxu0 0.0
    %389 = vmatprep.subr.mxu0 0.0
    %390 = vmatpush1.xpose.msra.mxu0 0.0
    %391 = vmatprep.subr.mxu0 0.0
    %392 = vmatpush1.xpose.msra.mxu0 0.0
    %393 = vmatprep.subr.mxu0 0.0
    %394 = vmatpush1.xpose.msra.mxu0 0.0
    %395 = vmatprep.subr.mxu0 0.0
    %396 = vmatpush1.xpose.msra.mxu0 0.0
    %397 = vmatprep.subr.mxu0 0.0
    %398 = vmatpush1.xpose.msra.mxu0 0.0
    %399 = vmatprep.subr.mxu0 0.0
    %400 = vmatpush1.xpose.msra.mxu0 0.0
    %401 = vmatprep.subr.mxu0 0.0
    %402 = vmatpush1.xpose.msra.mxu0 0.0
    %403 = vmatprep.subr.mxu0 0.0
    %404 = vmatpush1.xpose.msra.mxu0 0.0
    %405 = vmatprep.subr.mxu0 0.0
    %406 = vmatpush1.xpose.msra.mxu0 %v374
    %407 = vmatprep.subr.mxu0 0.0
    %408 = vmatpush1.xpose.msra.mxu0 %v373
    %409 = vmatprep.subr.mxu0 0.0
    %410 = vmatpush1.xpose.msra.mxu0 %v372
    %411 = vmatprep.subr.mxu0 0.0
    %412 = vmatpush2.xpose.msra.mxu0 0.0
    %413 = vmatprep.subr.mxu0 0.0
    %414 = vmatpush2.xpose.msra.mxu0 0.0
    %415 = vmatprep.subr.mxu0 0.0
    %416 = vmatpush2.xpose.msra.mxu0 0.0
    %417 = vmatprep.subr.mxu0 0.0
    %418 = vmatpush2.xpose.msra.mxu0 0.0
    %419 = vmatprep.subr.mxu0 0.0
    %420 = vmatpush2.xpose.msra.mxu0 0.0
    %421 = vmatprep.subr.mxu0 0.0
    %422 = vmatpush2.xpose.msra.mxu0 0.0
    %423 = vmatprep.subr.mxu0 0.0
    %424 = vmatpush2.xpose.msra.mxu0 0.0
    %425 = vmatprep.subr.mxu0 0.0
    %426 = vmatpush2.xpose.msra.mxu0 0.0
    %427 = vmatprep.subr.mxu0 0.0
    %428 = vmatpush2.xpose.msra.mxu0 0.0
    %429 = vmatprep.subr.mxu0 0.0
    %430 = vmatpush2.xpose.msra.mxu0 0.0
    %431 = vmatprep.subr.mxu0 0.0
    %432 = vmatpush2.xpose.msra.mxu0 0.0
    %433 = vmatprep.subr.mxu0 0.0
    %434 = vmatpush2.xpose.msra.mxu0 0.0
    %435 = vmatprep.subr.mxu0 0.0
    %436 = vmatpush2.xpose.msra.mxu0 0.0
    %437 = vmatprep.subr.mxu0 0.0
    %438 = vmatpush2.xpose.msra.mxu0 0.0
    %439 = vmatprep.subr.mxu0 0.0
    %440 = vmatpush2.xpose.msra.mxu0 0.0
    %441 = vmatprep.subr.mxu0 0.0
    %442 = vmatpush2.xpose.msra.mxu0 0.0
    %443 = vmatprep.mubr.f32.mxu0 0.0
    %444 = vmatmul.mubr.f32.gmra.mxu0 %v368
    %v445 = vpop.f32.mrf.mxu0
    %v446 = vadd.f32 0.0, %v445
    %v447 = vpop.f32.mrf.mxu0
    %448 = vmatprep.mubr.f32.mxu0 0.0
    %449 = vmatmul.mubr.f32.gmra.mxu0 %v369
    %v450 = vpop.f32.mrf.mxu0
    %v451 = vadd.f32 0.0, %v450
    %v452 = vpop.f32.mrf.mxu0
    %453 = vmatprep.mubr.f32.mxu0 0.0
    %454 = vmatmul.mubr.f32.gmra.mxu0 %v370
    %v455 = vpop.f32.mrf.mxu0
    %v456 = vadd.f32 0.0, %v455
    %v457 = vpop.f32.mrf.mxu0
    %458 = vdwg.mxu0
    %v459 = vmul.f32 %v446, 0.17677669
    %v460 = vmul.f32 %v451, 0.17677669
    %v461 = vmul.f32 %v456, 0.17677669
    %v462 = vlaneseq
    %v463 = vshrl.u32 %v462, 7
    %v464 = vadd.s32 %v463, 8
    %v465 = vadd.s32 %v463, 16
    %v466 = vlaneseq
    %v467 = vand.u32 %v466, 127
    %vm468 = vcmp.lt.s32.totalorder %v463, 0
    %v469 = vsub.s32 0, %v463
    %v470 = vsel %vm468, %v469, %v463
    %v471 = vshrl.u32 %v470, 3
    %v472 = vand.u32 %v470, 7
    %v473 = vsub.s32 0, %v472
    %v474 = vsel %vm468, %v473, %v472
    %vm475 = vcmp.lt.s32.totalorder %v464, 0
    %v476 = vsub.s32 0, %v464
    %v477 = vsel %vm475, %v476, %v464
    %v478 = vshrl.u32 %v477, 3
    %v479 = vand.u32 %v477, 7
    %v480 = vsub.s32 0, %v479
    %v481 = vsel %vm475, %v480, %v479
    %vm482 = vcmp.lt.s32.totalorder %v465, 0
    %v483 = vsub.s32 0, %v465
    %v484 = vsel %vm482, %v483, %v465
    %v485 = vshrl.u32 %v484, 3
    %v486 = vand.u32 %v484, 7
    %v487 = vsub.s32 0, %v486
    %v488 = vsel %vm482, %v487, %v486
    %vm489 = vcmp.ne.s32.totalorder %v474, 0
    %vm490 = vcmp.ne.s32.totalorder %v481, 0
    %vm491 = vcmp.ne.s32.totalorder %v488, 0
    %vm492 = vcmp.lt.s32.totalorder %v474, 0
    %vm493 = vcmp.lt.s32.totalorder %v481, 0
    %vm494 = vcmp.lt.s32.totalorder %v488, 0
    %vm495 = vmand %vm492, %vm489
    %vm496 = vmand %vm493, %vm490
    %vm497 = vmand %vm494, %vm491
    %v498 = vadd.s32 %v474, 8
    %v499 = vadd.s32 %v481, 8
    %v500 = vadd.s32 %v488, 8
    %v501 = vsel %vm495, %v498, %v474
    %v502 = vsel %vm496, %v499, %v481
    %v503 = vsel %vm497, %v500, %v488
    %vm504 = vcmp.lt.s32.totalorder %v467, 0
    %v505 = vsub.s32 0, %v467
    %v506 = vsel %vm504, %v505, %v467
    %v507 = vshrl.u32 %v506, 3
    %v508 = vand.u32 %v506, 7
    %v509 = vsub.s32 0, %v508
    %v510 = vsel %vm504, %v509, %v508
    %vm511 = vcmp.ne.s32.totalorder %v510, 0
    %vm512 = vcmp.lt.s32.totalorder %v510, 0
    %vm513 = vmand %vm512, %vm511
    %v514 = vadd.s32 %v510, 8
    %v515 = vsel %vm513, %v514, %v510
    %vm516 = vcmp.eq.s32.totalorder %v501, %v515
    %vm517 = vcmp.eq.s32.totalorder %v502, %v515
    %vm518 = vcmp.eq.s32.totalorder %v503, %v515
    %v519 = vsel %vm516, %v459, -1e+09
    %v520 = vsel %vm517, %v460, -1e+09
    %v521 = vsel %vm518, %v461, -1e+09
    %vm522 = vcmask 195584
    %v523 = vsel %vm522, %v519, -inf
    %524 = vmax.xlane.f32.xlu0 %v523
    %v525 = vpop.xlane.xlu0 %524
    %v526 = vsel %vm522, %v520, -inf
    %527 = vmax.xlane.f32.xlu0 %v526
    %v528 = vpop.xlane.xlu0 %527
    %v529 = vsel %vm522, %v521, -inf
    %530 = vmax.xlane.f32.xlu0 %v529
    %v531 = vpop.xlane.xlu0 %530
    %v532 = vsub.f32 %v519, %v525
    %v533 = vsub.f32 %v520, %v528
    %v534 = vsub.f32 %v521, %v531
    %v535 = vmul.f32 %v532, 1.442695
    %v536 = vpow.pop %v535
    %v537 = vmul.f32 %v533, 1.442695
    %v538 = vpow.pop %v537
    %v539 = vmul.f32 %v534, 1.442695
    %v540 = vpow.pop %v539
    %v541 = vsel %vm522, %v536, 0.0
    %542 = vadd.xlane.f32.xlu0 %v541
    %v543 = vpop.xlane.xlu0 %542
    %v544 = vsel %vm522, %v538, 0.0
    %545 = vadd.xlane.f32.xlu0 %v544
    %v546 = vpop.xlane.xlu0 %545
    %v547 = vsel %vm522, %v540, 0.0
    %548 = vadd.xlane.f32.xlu0 %v547
    %v549 = vpop.xlane.xlu0 %548
    %v550 = vrcp.pop %v543
    %v551 = vrcp.pop %v546
    %v552 = vrcp.pop %v549
    %v553 = vmul.f32 %v536, %v550
    %v554 = vmul.f32 %v538, %v551
    %v555 = vmul.f32 %v540, %v552
    %v557 = vsel %vm522, %v553, 0
    %v560 = vsel %vm522, %v554, 0
    %v563 = vsel %vm522, %v555, 0
    %565 = vmatprep.subr.mxu0 0.0
    %566 = vmatpush1.msra.mxu0 0.0
    %567 = vmatprep.subr.mxu0 0.0
    %568 = vmatpush1.msra.mxu0 0.0
    %569 = vmatprep.subr.mxu0 0.0
    %570 = vmatpush1.msra.mxu0 0.0
    %571 = vmatprep.subr.mxu0 0.0
    %572 = vmatpush1.msra.mxu0 0.0
    %573 = vmatprep.subr.mxu0 0.0
    %574 = vmatpush1.msra.mxu0 0.0
    %575 = vmatprep.subr.mxu0 0.0
    %576 = vmatpush1.msra.mxu0 0.0
    %577 = vmatprep.subr.mxu0 0.0
    %578 = vmatpush1.msra.mxu0 0.0
    %579 = vmatprep.subr.mxu0 0.0
    %580 = vmatpush1.msra.mxu0 0.0
    %581 = vmatprep.subr.mxu0 0.0
    %582 = vmatpush1.msra.mxu0 0.0
    %583 = vmatprep.subr.mxu0 0.0
    %584 = vmatpush1.msra.mxu0 0.0
    %585 = vmatprep.subr.mxu0 0.0
    %586 = vmatpush1.msra.mxu0 0.0
    %587 = vmatprep.subr.mxu0 0.0
    %588 = vmatpush1.msra.mxu0 0.0
    %589 = vmatprep.subr.mxu0 0.0
    %590 = vmatpush1.msra.mxu0 0.0
    %591 = vmatprep.subr.mxu0 0.0
    %592 = vmatpush1.msra.mxu0 %v378
    %593 = vmatprep.subr.mxu0 0.0
    %594 = vmatpush1.msra.mxu0 %v377
    %595 = vmatprep.subr.mxu0 0.0
    %596 = vmatpush1.msra.mxu0 %v376
    %597 = vmatprep.subr.mxu0 0.0
    %598 = vmatpush2.msra.mxu0 0.0
    %599 = vmatprep.subr.mxu0 0.0
    %600 = vmatpush2.msra.mxu0 0.0
    %601 = vmatprep.subr.mxu0 0.0
    %602 = vmatpush2.msra.mxu0 0.0
    %603 = vmatprep.subr.mxu0 0.0
    %604 = vmatpush2.msra.mxu0 0.0
    %605 = vmatprep.subr.mxu0 0.0
    %606 = vmatpush2.msra.mxu0 0.0
    %607 = vmatprep.subr.mxu0 0.0
    %608 = vmatpush2.msra.mxu0 0.0
    %609 = vmatprep.subr.mxu0 0.0
    %610 = vmatpush2.msra.mxu0 0.0
    %611 = vmatprep.subr.mxu0 0.0
    %612 = vmatpush2.msra.mxu0 0.0
    %613 = vmatprep.subr.mxu0 0.0
    %614 = vmatpush2.msra.mxu0 0.0
    %615 = vmatprep.subr.mxu0 0.0
    %616 = vmatpush2.msra.mxu0 0.0
    %617 = vmatprep.subr.mxu0 0.0
    %618 = vmatpush2.msra.mxu0 0.0
    %619 = vmatprep.subr.mxu0 0.0
    %620 = vmatpush2.msra.mxu0 0.0
    %621 = vmatprep.subr.mxu0 0.0
    %622 = vmatpush2.msra.mxu0 0.0
    %623 = vmatprep.subr.mxu0 0.0
    %624 = vmatpush2.msra.mxu0 0.0
    %625 = vmatprep.subr.mxu0 0.0
    %626 = vmatpush2.msra.mxu0 0.0
    %627 = vmatprep.subr.mxu0 0.0
    %628 = vmatpush2.msra.mxu0 0.0
    %629 = vmatprep.mubr.f32.mxu0 0.0
    %630 = vmatmul.mubr.f32.gmra.mxu0 %v557
    %v631 = vpop.f32.mrf.mxu0
    %v632 = vadd.f32 0.0, %v631
    %v633 = vpop.f32.mrf.mxu0
    %634 = vmatprep.mubr.f32.mxu0 0.0
    %635 = vmatmul.mubr.f32.gmra.mxu0 %v560
    %v636 = vpop.f32.mrf.mxu0
    %v637 = vadd.f32 0.0, %v636
    %v638 = vpop.f32.mrf.mxu0
    %639 = vmatprep.mubr.f32.mxu0 0.0
    %640 = vmatmul.mubr.f32.gmra.mxu0 %v563
    %v641 = vpop.f32.mrf.mxu0
    %v642 = vadd.f32 0.0, %v641
    %v643 = vpop.f32.mrf.mxu0
    %644 = vdwg.mxu0
    %v645 = vld [vmem:[%s2 + $0x20] sm:$0xff]
    %v646 = vld [vmem:[%s2 + $0x50] sm:$0xff]
    %v647 = vld [vmem:[%s2 + $0x80] sm:$0xff]
    %v648 = vld [vmem:[%s2 + $0xb0] sm:$0xff]
    %v649 = vld [vmem:[%s3 + $0x6] ss:$0 sm:$0xff]
    %v651 = vsel %vm36, %v632, 0
    %v654 = vsel %vm36, %v637, 0
    %v657 = vsel %vm36, %v642, 0
    %659 = vmatprep.subr.mxu0 0.0
    %660 = vmatpush1.msra.mxu0 0.0
    %661 = vmatprep.subr.mxu0 0.0
    %662 = vmatpush1.msra.mxu0 0.0
    %663 = vmatprep.subr.mxu0 0.0
    %664 = vmatpush1.msra.mxu0 0.0
    %665 = vmatprep.subr.mxu0 0.0
    %666 = vmatpush1.msra.mxu0 0.0
    %667 = vmatprep.subr.mxu0 0.0
    %668 = vmatpush1.msra.mxu0 0.0
    %669 = vmatprep.subr.mxu0 0.0
    %670 = vmatpush1.msra.mxu0 0.0
    %671 = vmatprep.subr.mxu0 0.0
    %672 = vmatpush1.msra.mxu0 0.0
    %673 = vmatprep.subr.mxu0 0.0
    %674 = vmatpush1.msra.mxu0 0.0
    %675 = vmatprep.subr.mxu0 0.0
    %676 = vmatpush1.msra.mxu0 0.0
    %677 = vmatprep.subr.mxu0 0.0
    %678 = vmatpush1.msra.mxu0 0.0
    %679 = vmatprep.subr.mxu0 0.0
    %680 = vmatpush1.msra.mxu0 0.0
    %681 = vmatprep.subr.mxu0 0.0
    %682 = vmatpush1.msra.mxu0 0.0
    %683 = vmatprep.subr.mxu0 0.0
    %684 = vmatpush1.msra.mxu0 %v648
    %685 = vmatprep.subr.mxu0 0.0
    %686 = vmatpush1.msra.mxu0 %v647
    %687 = vmatprep.subr.mxu0 0.0
    %688 = vmatpush1.msra.mxu0 %v646
    %689 = vmatprep.subr.mxu0 0.0
    %690 = vmatpush1.msra.mxu0 %v645
    %691 = vmatprep.subr.mxu0 0.0
    %692 = vmatpush2.msra.mxu0 0.0
    %693 = vmatprep.subr.mxu0 0.0
    %694 = vmatpush2.msra.mxu0 0.0
    %695 = vmatprep.subr.mxu0 0.0
    %696 = vmatpush2.msra.mxu0 0.0
    %697 = vmatprep.subr.mxu0 0.0
    %698 = vmatpush2.msra.mxu0 0.0
    %699 = vmatprep.subr.mxu0 0.0
    %700 = vmatpush2.msra.mxu0 0.0
    %701 = vmatprep.subr.mxu0 0.0
    %702 = vmatpush2.msra.mxu0 0.0
    %703 = vmatprep.subr.mxu0 0.0
    %704 = vmatpush2.msra.mxu0 0.0
    %705 = vmatprep.subr.mxu0 0.0
    %706 = vmatpush2.msra.mxu0 0.0
    %707 = vmatprep.subr.mxu0 0.0
    %708 = vmatpush2.msra.mxu0 0.0
    %709 = vmatprep.subr.mxu0 0.0
    %710 = vmatpush2.msra.mxu0 0.0
    %711 = vmatprep.subr.mxu0 0.0
    %712 = vmatpush2.msra.mxu0 0.0
    %713 = vmatprep.subr.mxu0 0.0
    %714 = vmatpush2.msra.mxu0 0.0
    %715 = vmatprep.subr.mxu0 0.0
    %716 = vmatpush2.msra.mxu0 0.0
    %717 = vmatprep.subr.mxu0 0.0
    %718 = vmatpush2.msra.mxu0 0.0
    %719 = vmatprep.subr.mxu0 0.0
    %720 = vmatpush2.msra.mxu0 0.0
    %721 = vmatprep.subr.mxu0 0.0
    %722 = vmatpush2.msra.mxu0 0.0
    %723 = vmatprep.mubr.f32.mxu0 0.0
    %724 = vmatmul.mubr.f32.gmra.mxu0 %v651
    %v725 = vpop.f32.mrf.mxu0
    %v726 = vadd.f32 %v649, %v725
    %v727 = vpop.f32.mrf.mxu0
    %728 = vmatprep.mubr.f32.mxu0 0.0
    %729 = vmatmul.mubr.f32.gmra.mxu0 %v654
    %v730 = vpop.f32.mrf.mxu0
    %v731 = vadd.f32 %v649, %v730
    %v732 = vpop.f32.mrf.mxu0
    %733 = vmatprep.mubr.f32.mxu0 0.0
    %734 = vmatmul.mubr.f32.gmra.mxu0 %v657
    %v735 = vpop.f32.mrf.mxu0
    %v736 = vadd.f32 %v649, %v735
    %v737 = vpop.f32.mrf.mxu0
    %738 = vdwg.mxu0
    %v739 = vadd.f32 %v180, %v726
    %v740 = vadd.f32 %v181, %v731
    %v741 = vadd.f32 %v182, %v736
    %v742 = vld [vmem:[%s3 + $0x7] ss:$0 sm:$0xff]
    %v743 = vld [vmem:[%s3 + $0x80] ss:$0 sm:$0xff]
    %v744 = vsel %vm36, %v739, 0.0
    %745 = vadd.xlane.f32.xlu0 %v744
    %v746 = vpop.xlane.xlu0 %745
    %v747 = vsel %vm36, %v740, 0.0
    %748 = vadd.xlane.f32.xlu0 %v747
    %v749 = vpop.xlane.xlu0 %748
    %v750 = vsel %vm36, %v741, 0.0
    %751 = vadd.xlane.f32.xlu0 %v750
    %v752 = vpop.xlane.xlu0 %751
    %v753 = vmul.f32 %v746, %v137
    %v754 = vmul.f32 %v749, %v137
    %v755 = vmul.f32 %v752, %v137
    %v756 = vsub.f32 %v739, %v753
    %v757 = vsub.f32 %v740, %v754
    %v758 = vsub.f32 %v741, %v755
    %v759 = vmul.f32 %v756, %v756
    %v760 = vmul.f32 %v757, %v757
    %v761 = vmul.f32 %v758, %v758
    %v762 = vsel %vm36, %v759, 0.0
    %763 = vadd.xlane.f32.xlu0 %v762
    %v764 = vpop.xlane.xlu0 %763
    %v765 = vsel %vm36, %v760, 0.0
    %766 = vadd.xlane.f32.xlu0 %v765
    %v767 = vpop.xlane.xlu0 %766
    %v768 = vsel %vm36, %v761, 0.0
    %769 = vadd.xlane.f32.xlu0 %v768
    %v770 = vpop.xlane.xlu0 %769
    %v771 = vmul.f32 %v764, %v137
    %v772 = vmul.f32 %v767, %v137
    %v773 = vmul.f32 %v770, %v137
    %v774 = vadd.f32 %v771, 1e-05
    %v775 = vadd.f32 %v772, 1e-05
    %v776 = vadd.f32 %v773, 1e-05
    %v777 = vrsqrt.pop %v774
    %v778 = vrsqrt.pop %v775
    %v779 = vrsqrt.pop %v776
    %v780 = vmul.f32 %v756, %v777
    %v781 = vmul.f32 %v757, %v778
    %v782 = vmul.f32 %v758, %v779
    %v783 = vmul.f32 %v780, %v742
    %v784 = vmul.f32 %v781, %v742
    %v785 = vmul.f32 %v782, %v742
    %v786 = vadd.f32 %v783, %v743
    %v787 = vadd.f32 %v784, %v743
    %v788 = vadd.f32 %v785, %v743
    %v789 = vpack.c.bf16 %v787, %v786
    %v790 = vpack.c.bf16 %v788, %v788
    %v791 = vld [vmem:[%s4] sm:$0xff]
    %v792 = vld [vmem:[%s4 + $0x8] sm:$0xff]
    %v793 = vld [vmem:[%s4 + $0x10] sm:$0xff]
    %v794 = vld [vmem:[%s4 + $0x18] sm:$0xff]
    %v795 = vld [vmem:[%s4 + $0x20] sm:$0xff]
    %v796 = vld [vmem:[%s4 + $0x28] sm:$0xff]
    %v797 = vld [vmem:[%s4 + $0x30] sm:$0xff]
    %v798 = vld [vmem:[%s4 + $0x38] sm:$0xff]
    %v799 = vld [vmem:[%s4 + $0x40] sm:$0xff]
    %v800 = vld [vmem:[%s4 + $0x48] sm:$0xff]
    %v801 = vld [vmem:[%s4 + $0x50] sm:$0xff]
    %v802 = vld [vmem:[%s4 + $0x58] sm:$0xff]
    %v803 = vld [vmem:[%s4 + $0x60] sm:$0xff]
    %v804 = vld [vmem:[%s4 + $0x68] sm:$0xff]
    %v805 = vld [vmem:[%s4 + $0x70] sm:$0xff]
    %v806 = vld [vmem:[%s4 + $0x78] sm:$0xff]
    %v807 = vld [vmem:[%s4 + $0x80] sm:$0xff]
    %v808 = vld [vmem:[%s4 + $0x88] sm:$0xff]
    %v809 = vld [vmem:[%s4 + $0x90] sm:$0xff]
    %v810 = vld [vmem:[%s4 + $0x98] sm:$0xff]
    %v811 = vld [vmem:[%s4 + $0xa0] sm:$0xff]
    %v812 = vld [vmem:[%s4 + $0xa8] sm:$0xff]
    %v813 = vld [vmem:[%s4 + $0xb0] sm:$0xff]
    %v814 = vld [vmem:[%s4 + $0xb8] sm:$0xff]
    %v815 = vld [vmem:[%s4 + $0xc0] sm:$0xff]
    %v816 = vld [vmem:[%s4 + $0xc8] sm:$0xff]
    %v817 = vld [vmem:[%s4 + $0xd0] sm:$0xff]
    %v818 = vld [vmem:[%s4 + $0xd8] sm:$0xff]
    %v819 = vld [vmem:[%s4 + $0xe0] sm:$0xff]
    %v820 = vld [vmem:[%s4 + $0xe8] sm:$0xff]
    %v821 = vld [vmem:[%s4 + $0xf0] sm:$0xff]
    %v822 = vld [vmem:[%s4 + $0xf8] sm:$0xff]
    %s823 = scalar_lea.vmem %s3, 133
    %v824 = vld [vmem:[%s823] ss:$8 sm:$0xf]
    %v825 = vld [vmem:[%s823] ss:$8 sm:$0xf0]
    %v826 = vor.u32 %v824, %v825
    %s827 = scalar_lea.vmem %s3, 197
    %v828 = vld [vmem:[%s827] ss:$8 sm:$0xf]
    %v829 = vld [vmem:[%s827] ss:$8 sm:$0xf0]
    %v830 = vor.u32 %v828, %v829
    %v833 = vlaneseq
    %v834 = vshrl.u32 %v833, 7
    %v835 = vsub.s32 0, %v834
    %v836 = vrot.slane %v826, %v835
    %v837 = vlaneseq
    %v838 = vshrl.u32 %v837, 7
    %v839 = vsub.s32 1, %v838
    %v840 = vrot.slane %v826, %v839
    %v841 = vlaneseq
    %v842 = vshrl.u32 %v841, 7
    %v843 = vsub.s32 2, %v842
    %v844 = vrot.slane %v826, %v843
    %v845 = vlaneseq
    %v846 = vshrl.u32 %v845, 7
    %v847 = vsub.s32 3, %v846
    %v848 = vrot.slane %v826, %v847
    %v849 = vlaneseq
    %v850 = vshrl.u32 %v849, 7
    %v851 = vsub.s32 4, %v850
    %v852 = vrot.slane %v826, %v851
    %v853 = vlaneseq
    %v854 = vshrl.u32 %v853, 7
    %v855 = vsub.s32 5, %v854
    %v856 = vrot.slane %v826, %v855
    %v857 = vlaneseq
    %v858 = vshrl.u32 %v857, 7
    %v859 = vsub.s32 6, %v858
    %v860 = vrot.slane %v826, %v859
    %v861 = vlaneseq
    %v862 = vshrl.u32 %v861, 7
    %v863 = vsub.s32 7, %v862
    %v864 = vrot.slane %v826, %v863
    %v865 = vlaneseq
    %v866 = vshrl.u32 %v865, 7
    %v867 = vsub.s32 0, %v866
    %v868 = vrot.slane %v830, %v867
    %v869 = vlaneseq
    %v870 = vshrl.u32 %v869, 7
    %v871 = vsub.s32 1, %v870
    %v872 = vrot.slane %v830, %v871
    %v873 = vlaneseq
    %v874 = vshrl.u32 %v873, 7
    %v875 = vsub.s32 2, %v874
    %v876 = vrot.slane %v830, %v875
    %v877 = vlaneseq
    %v878 = vshrl.u32 %v877, 7
    %v879 = vsub.s32 3, %v878
    %v880 = vrot.slane %v830, %v879
    %v881 = vlaneseq
    %v882 = vshrl.u32 %v881, 7
    %v883 = vsub.s32 4, %v882
    %v884 = vrot.slane %v830, %v883
    %v885 = vlaneseq
    %v886 = vshrl.u32 %v885, 7
    %v887 = vsub.s32 5, %v886
    %v888 = vrot.slane %v830, %v887
    %v889 = vlaneseq
    %v890 = vshrl.u32 %v889, 7
    %v891 = vsub.s32 6, %v890
    %v892 = vrot.slane %v830, %v891
    %v893 = vlaneseq
    %v894 = vshrl.u32 %v893, 7
    %v895 = vsub.s32 7, %v894
    %v896 = vrot.slane %v830, %v895
    %v945 = vunpack.c.l.b16 %v791
    %v946 = vunpack.c.h.b16 %v791
    %v947 = vunpack.c.l.b16 %v792
    %v948 = vunpack.c.h.b16 %v792
    %v949 = vunpack.c.l.b16 %v793
    %v950 = vunpack.c.h.b16 %v793
    %v951 = vunpack.c.l.b16 %v794
    %v952 = vunpack.c.h.b16 %v794
    %v953 = vunpack.c.l.b16 %v795
    %v954 = vunpack.c.h.b16 %v795
    %v955 = vunpack.c.l.b16 %v796
    %v956 = vunpack.c.h.b16 %v796
    %v957 = vunpack.c.l.b16 %v797
    %v958 = vunpack.c.h.b16 %v797
    %v959 = vunpack.c.l.b16 %v798
    %v960 = vunpack.c.h.b16 %v798
    %v961 = vunpack.c.l.b16 %v799
    %v962 = vunpack.c.h.b16 %v799
    %v963 = vunpack.c.l.b16 %v800
    %v964 = vunpack.c.h.b16 %v800
    %v965 = vunpack.c.l.b16 %v801
    %v966 = vunpack.c.h.b16 %v801
    %v967 = vunpack.c.l.b16 %v802
    %v968 = vunpack.c.h.b16 %v802
    %v969 = vunpack.c.l.b16 %v803
    %v970 = vunpack.c.h.b16 %v803
    %v971 = vunpack.c.l.b16 %v804
    %v972 = vunpack.c.h.b16 %v804
    %v973 = vunpack.c.l.b16 %v805
    %v974 = vunpack.c.h.b16 %v805
    %v975 = vunpack.c.l.b16 %v806
    %v976 = vunpack.c.h.b16 %v806
    %v977 = vunpack.c.l.b16 %v807
    %v978 = vunpack.c.h.b16 %v807
    %v979 = vunpack.c.l.b16 %v808
    %v980 = vunpack.c.h.b16 %v808
    %v981 = vunpack.c.l.b16 %v809
    %v982 = vunpack.c.h.b16 %v809
    %v983 = vunpack.c.l.b16 %v810
    %v984 = vunpack.c.h.b16 %v810
    %v985 = vunpack.c.l.b16 %v811
    %v986 = vunpack.c.h.b16 %v811
    %v987 = vunpack.c.l.b16 %v812
    %v988 = vunpack.c.h.b16 %v812
    %v989 = vunpack.c.l.b16 %v813
    %v990 = vunpack.c.h.b16 %v813
    %v991 = vunpack.c.l.b16 %v814
    %v992 = vunpack.c.h.b16 %v814
    %v993 = vunpack.c.l.b16 %v815
    %v994 = vunpack.c.h.b16 %v815
    %v995 = vunpack.c.l.b16 %v816
    %v996 = vunpack.c.h.b16 %v816
    %v997 = vunpack.c.l.b16 %v817
    %v998 = vunpack.c.h.b16 %v817
    %v999 = vunpack.c.l.b16 %v818
    %v1000 = vunpack.c.h.b16 %v818
    %v1001 = vunpack.c.l.b16 %v819
    %v1002 = vunpack.c.h.b16 %v819
    %v1003 = vunpack.c.l.b16 %v820
    %v1004 = vunpack.c.h.b16 %v820
    %v1005 = vunpack.c.l.b16 %v821
    %v1006 = vunpack.c.h.b16 %v821
    %v1007 = vunpack.c.l.b16 %v822
    %v1008 = vunpack.c.h.b16 %v822
    %v1009 = vpack.c.b16 %v961, %v945
    %v1010 = vpack.c.b16 %v962, %v946
    %v1011 = vpack.c.b16 %v963, %v947
    %v1012 = vpack.c.b16 %v964, %v948
    %v1013 = vpack.c.b16 %v965, %v949
    %v1014 = vpack.c.b16 %v966, %v950
    %v1015 = vpack.c.b16 %v967, %v951
    %v1016 = vpack.c.b16 %v968, %v952
    %v1017 = vpack.c.b16 %v969, %v953
    %v1018 = vpack.c.b16 %v970, %v954
    %v1019 = vpack.c.b16 %v971, %v955
    %v1020 = vpack.c.b16 %v972, %v956
    %v1021 = vpack.c.b16 %v973, %v957
    %v1022 = vpack.c.b16 %v974, %v958
    %v1023 = vpack.c.b16 %v975, %v959
    %v1024 = vpack.c.b16 %v976, %v960
    %v1025 = vpack.c.b16 %v993, %v977
    %v1026 = vpack.c.b16 %v994, %v978
    %v1027 = vpack.c.b16 %v995, %v979
    %v1028 = vpack.c.b16 %v996, %v980
    %v1029 = vpack.c.b16 %v997, %v981
    %v1030 = vpack.c.b16 %v998, %v982
    %v1031 = vpack.c.b16 %v999, %v983
    %v1032 = vpack.c.b16 %v1000, %v984
    %v1033 = vpack.c.b16 %v1001, %v985
    %v1034 = vpack.c.b16 %v1002, %v986
    %v1035 = vpack.c.b16 %v1003, %v987
    %v1036 = vpack.c.b16 %v1004, %v988
    %v1037 = vpack.c.b16 %v1005, %v989
    %v1038 = vpack.c.b16 %v1006, %v990
    %v1039 = vpack.c.b16 %v1007, %v991
    %v1040 = vpack.c.b16 %v1008, %v992
    %v1074 = vsel %vm36, %v789, 0
    %v1077 = vsel %vm36, %v790, 0
    %1079 = vmatprep.subr.bf16.mxu0 0
    %1080 = vmatpush1.bf16.msra.mxu0 0
    %1081 = vmatprep.subr.bf16.mxu0 0
    %1082 = vmatpush1.bf16.msra.mxu0 0
    %1083 = vmatprep.subr.bf16.mxu0 0
    %1084 = vmatpush1.bf16.msra.mxu0 0
    %1085 = vmatprep.subr.bf16.mxu0 0
    %1086 = vmatpush1.bf16.msra.mxu0 0
    %1087 = vmatprep.subr.bf16.mxu0 0
    %1088 = vmatpush1.bf16.msra.mxu0 0
    %1089 = vmatprep.subr.bf16.mxu0 0
    %1090 = vmatpush1.bf16.msra.mxu0 0
    %1091 = vmatprep.subr.bf16.mxu0 %v1026
    %1092 = vmatpush1.bf16.msra.mxu0 %v1025
    %1093 = vmatprep.subr.bf16.mxu0 %v1010
    %1094 = vmatpush1.bf16.msra.mxu0 %v1009
    %1095 = vmatprep.subr.bf16.mxu0 0
    %1096 = vmatpush2.bf16.msra.mxu0 0
    %1097 = vmatprep.subr.bf16.mxu0 0
    %1098 = vmatpush2.bf16.msra.mxu0 0
    %1099 = vmatprep.subr.bf16.mxu0 0
    %1100 = vmatpush2.bf16.msra.mxu0 0
    %1101 = vmatprep.subr.bf16.mxu0 0
    %1102 = vmatpush2.bf16.msra.mxu0 0
    %1103 = vmatprep.subr.bf16.mxu0 0
    %1104 = vmatpush2.bf16.msra.mxu0 0
    %1105 = vmatprep.subr.bf16.mxu0 0
    %1106 = vmatpush2.bf16.msra.mxu0 0
    %1107 = vmatprep.subr.bf16.mxu0 0
    %1108 = vmatpush2.bf16.msra.mxu0 0
    %1109 = vmatprep.subr.bf16.mxu0 0
    %1110 = vmatpush2.bf16.msra.mxu0 0
    %1111 = vmatprep.mubr.bf16.mxu0 0
    %1112 = vmatmul.mubr.bf16.gmra.mxu0 %v1074
    %v1113 = vpop.f32.mrf.mxu0
    %v1114 = vadd.f32 %v836, %v1113
    %v1115 = vpop.f32.mrf.mxu0
    %v1116 = vadd.f32 %v840, %v1115
    %v1117 = vpop.f32.mrf.mxu0
    %v1118 = vadd.f32 %v836, %v1117
    %v1119 = vpop.f32.mrf.mxu0
    %v1120 = vadd.f32 %v840, %v1119
    %1121 = vmatprep.mubr.bf16.mxu0 0
    %1122 = vmatmul.mubr.bf16.gmra.mxu0 %v1077
    %v1123 = vpop.f32.mrf.mxu0
    %v1124 = vadd.f32 %v836, %v1123
    %v1125 = vpop.f32.mrf.mxu0
    %v1126 = vadd.f32 %v840, %v1125
    %v1127 = vpop.f32.mrf.mxu0
    %v1128 = vpop.f32.mrf.mxu0
    %1129 = vdwg.mxu0
    %1130 = vmatprep.subr.bf16.mxu0 0
    %1131 = vmatpush1.bf16.msra.mxu0 0
    %1132 = vmatprep.subr.bf16.mxu0 0
    %1133 = vmatpush1.bf16.msra.mxu0 0
    %1134 = vmatprep.subr.bf16.mxu0 0
    %1135 = vmatpush1.bf16.msra.mxu0 0
    %1136 = vmatprep.subr.bf16.mxu0 0
    %1137 = vmatpush1.bf16.msra.mxu0 0
    %1138 = vmatprep.subr.bf16.mxu0 0
    %1139 = vmatpush1.bf16.msra.mxu0 0
    %1140 = vmatprep.subr.bf16.mxu0 0
    %1141 = vmatpush1.bf16.msra.mxu0 0
    %1142 = vmatprep.subr.bf16.mxu0 %v1028
    %1143 = vmatpush1.bf16.msra.mxu0 %v1027
    %1144 = vmatprep.subr.bf16.mxu0 %v1012
    %1145 = vmatpush1.bf16.msra.mxu0 %v1011
    %1146 = vmatprep.subr.bf16.mxu0 0
    %1147 = vmatpush2.bf16.msra.mxu0 0
    %1148 = vmatprep.subr.bf16.mxu0 0
    %1149 = vmatpush2.bf16.msra.mxu0 0
    %1150 = vmatprep.subr.bf16.mxu0 0
    %1151 = vmatpush2.bf16.msra.mxu0 0
    %1152 = vmatprep.subr.bf16.mxu0 0
    %1153 = vmatpush2.bf16.msra.mxu0 0
    %1154 = vmatprep.subr.bf16.mxu0 0
    %1155 = vmatpush2.bf16.msra.mxu0 0
    %1156 = vmatprep.subr.bf16.mxu0 0
    %1157 = vmatpush2.bf16.msra.mxu0 0
    %1158 = vmatprep.subr.bf16.mxu0 0
    %1159 = vmatpush2.bf16.msra.mxu0 0
    %1160 = vmatprep.subr.bf16.mxu0 0
    %1161 = vmatpush2.bf16.msra.mxu0 0
    %1162 = vmatprep.mubr.bf16.mxu0 0
    %1163 = vmatmul.mubr.bf16.gmra.mxu0 %v1074
    %v1164 = vpop.f32.mrf.mxu0
    %v1165 = vadd.f32 %v844, %v1164
    %v1166 = vpop.f32.mrf.mxu0
    %v1167 = vadd.f32 %v848, %v1166
    %v1168 = vpop.f32.mrf.mxu0
    %v1169 = vadd.f32 %v844, %v1168
    %v1170 = vpop.f32.mrf.mxu0
    %v1171 = vadd.f32 %v848, %v1170
    %1172 = vmatprep.mubr.bf16.mxu0 0
    %1173 = vmatmul.mubr.bf16.gmra.mxu0 %v1077
    %v1174 = vpop.f32.mrf.mxu0
    %v1175 = vadd.f32 %v844, %v1174
    %v1176 = vpop.f32.mrf.mxu0
    %v1177 = vadd.f32 %v848, %v1176
    %v1178 = vpop.f32.mrf.mxu0
    %v1179 = vpop.f32.mrf.mxu0
    %1180 = vdwg.mxu0
    %1181 = vmatprep.subr.bf16.mxu0 0
    %1182 = vmatpush1.bf16.msra.mxu0 0
    %1183 = vmatprep.subr.bf16.mxu0 0
    %1184 = vmatpush1.bf16.msra.mxu0 0
    %1185 = vmatprep.subr.bf16.mxu0 0
    %1186 = vmatpush1.bf16.msra.mxu0 0
    %1187 = vmatprep.subr.bf16.mxu0 0
    %1188 = vmatpush1.bf16.msra.mxu0 0
    %1189 = vmatprep.subr.bf16.mxu0 0
    %1190 = vmatpush1.bf16.msra.mxu0 0
    %1191 = vmatprep.subr.bf16.mxu0 0
    %1192 = vmatpush1.bf16.msra.mxu0 0
    %1193 = vmatprep.subr.bf16.mxu0 %v1030
    %1194 = vmatpush1.bf16.msra.mxu0 %v1029
    %1195 = vmatprep.subr.bf16.mxu0 %v1014
    %1196 = vmatpush1.bf16.msra.mxu0 %v1013
    %1197 = vmatprep.subr.bf16.mxu0 0
    %1198 = vmatpush2.bf16.msra.mxu0 0
    %1199 = vmatprep.subr.bf16.mxu0 0
    %1200 = vmatpush2.bf16.msra.mxu0 0
    %1201 = vmatprep.subr.bf16.mxu0 0
    %1202 = vmatpush2.bf16.msra.mxu0 0
    %1203 = vmatprep.subr.bf16.mxu0 0
    %1204 = vmatpush2.bf16.msra.mxu0 0
    %1205 = vmatprep.subr.bf16.mxu0 0
    %1206 = vmatpush2.bf16.msra.mxu0 0
    %1207 = vmatprep.subr.bf16.mxu0 0
    %1208 = vmatpush2.bf16.msra.mxu0 0
    %1209 = vmatprep.subr.bf16.mxu0 0
    %1210 = vmatpush2.bf16.msra.mxu0 0
    %1211 = vmatprep.subr.bf16.mxu0 0
    %1212 = vmatpush2.bf16.msra.mxu0 0
    %1213 = vmatprep.mubr.bf16.mxu0 0
    %1214 = vmatmul.mubr.bf16.gmra.mxu0 %v1074
    %v1215 = vpop.f32.mrf.mxu0
    %v1216 = vadd.f32 %v852, %v1215
    %v1217 = vpop.f32.mrf.mxu0
    %v1218 = vadd.f32 %v856, %v1217
    %v1219 = vpop.f32.mrf.mxu0
    %v1220 = vadd.f32 %v852, %v1219
    %v1221 = vpop.f32.mrf.mxu0
    %v1222 = vadd.f32 %v856, %v1221
    %1223 = vmatprep.mubr.bf16.mxu0 0
    %1224 = vmatmul.mubr.bf16.gmra.mxu0 %v1077
    %v1225 = vpop.f32.mrf.mxu0
    %v1226 = vadd.f32 %v852, %v1225
    %v1227 = vpop.f32.mrf.mxu0
    %v1228 = vadd.f32 %v856, %v1227
    %v1229 = vpop.f32.mrf.mxu0
    %v1230 = vpop.f32.mrf.mxu0
    %1231 = vdwg.mxu0
    %1232 = vmatprep.subr.bf16.mxu0 0
    %1233 = vmatpush1.bf16.msra.mxu0 0
    %1234 = vmatprep.subr.bf16.mxu0 0
    %1235 = vmatpush1.bf16.msra.mxu0 0
    %1236 = vmatprep.subr.bf16.mxu0 0
    %1237 = vmatpush1.bf16.msra.mxu0 0
    %1238 = vmatprep.subr.bf16.mxu0 0
    %1239 = vmatpush1.bf16.msra.mxu0 0
    %1240 = vmatprep.subr.bf16.mxu0 0
    %1241 = vmatpush1.bf16.msra.mxu0 0
    %1242 = vmatprep.subr.bf16.mxu0 0
    %1243 = vmatpush1.bf16.msra.mxu0 0
    %1244 = vmatprep.subr.bf16.mxu0 %v1032
    %1245 = vmatpush1.bf16.msra.mxu0 %v1031
    %1246 = vmatprep.subr.bf16.mxu0 %v1016
    %1247 = vmatpush1.bf16.msra.mxu0 %v1015
    %1248 = vmatprep.subr.bf16.mxu0 0
    %1249 = vmatpush2.bf16.msra.mxu0 0
    %1250 = vmatprep.subr.bf16.mxu0 0
    %1251 = vmatpush2.bf16.msra.mxu0 0
    %1252 = vmatprep.subr.bf16.mxu0 0
    %1253 = vmatpush2.bf16.msra.mxu0 0
    %1254 = vmatprep.subr.bf16.mxu0 0
    %1255 = vmatpush2.bf16.msra.mxu0 0
    %1256 = vmatprep.subr.bf16.mxu0 0
    %1257 = vmatpush2.bf16.msra.mxu0 0
    %1258 = vmatprep.subr.bf16.mxu0 0
    %1259 = vmatpush2.bf16.msra.mxu0 0
    %1260 = vmatprep.subr.bf16.mxu0 0
    %1261 = vmatpush2.bf16.msra.mxu0 0
    %1262 = vmatprep.subr.bf16.mxu0 0
    %1263 = vmatpush2.bf16.msra.mxu0 0
    %1264 = vmatprep.mubr.bf16.mxu0 0
    %1265 = vmatmul.mubr.bf16.gmra.mxu0 %v1074
    %v1266 = vpop.f32.mrf.mxu0
    %v1267 = vadd.f32 %v860, %v1266
    %v1268 = vpop.f32.mrf.mxu0
    %v1269 = vadd.f32 %v864, %v1268
    %v1270 = vpop.f32.mrf.mxu0
    %v1271 = vadd.f32 %v860, %v1270
    %v1272 = vpop.f32.mrf.mxu0
    %v1273 = vadd.f32 %v864, %v1272
    %1274 = vmatprep.mubr.bf16.mxu0 0
    %1275 = vmatmul.mubr.bf16.gmra.mxu0 %v1077
    %v1276 = vpop.f32.mrf.mxu0
    %v1277 = vadd.f32 %v860, %v1276
    %v1278 = vpop.f32.mrf.mxu0
    %v1279 = vadd.f32 %v864, %v1278
    %v1280 = vpop.f32.mrf.mxu0
    %v1281 = vpop.f32.mrf.mxu0
    %1282 = vdwg.mxu0
    %1283 = vmatprep.subr.bf16.mxu0 0
    %1284 = vmatpush1.bf16.msra.mxu0 0
    %1285 = vmatprep.subr.bf16.mxu0 0
    %1286 = vmatpush1.bf16.msra.mxu0 0
    %1287 = vmatprep.subr.bf16.mxu0 0
    %1288 = vmatpush1.bf16.msra.mxu0 0
    %1289 = vmatprep.subr.bf16.mxu0 0
    %1290 = vmatpush1.bf16.msra.mxu0 0
    %1291 = vmatprep.subr.bf16.mxu0 0
    %1292 = vmatpush1.bf16.msra.mxu0 0
    %1293 = vmatprep.subr.bf16.mxu0 0
    %1294 = vmatpush1.bf16.msra.mxu0 0
    %1295 = vmatprep.subr.bf16.mxu0 %v1034
    %1296 = vmatpush1.bf16.msra.mxu0 %v1033
    %1297 = vmatprep.subr.bf16.mxu0 %v1018
    %1298 = vmatpush1.bf16.msra.mxu0 %v1017
    %1299 = vmatprep.subr.bf16.mxu0 0
    %1300 = vmatpush2.bf16.msra.mxu0 0
    %1301 = vmatprep.subr.bf16.mxu0 0
    %1302 = vmatpush2.bf16.msra.mxu0 0
    %1303 = vmatprep.subr.bf16.mxu0 0
    %1304 = vmatpush2.bf16.msra.mxu0 0
    %1305 = vmatprep.subr.bf16.mxu0 0
    %1306 = vmatpush2.bf16.msra.mxu0 0
    %1307 = vmatprep.subr.bf16.mxu0 0
    %1308 = vmatpush2.bf16.msra.mxu0 0
    %1309 = vmatprep.subr.bf16.mxu0 0
    %1310 = vmatpush2.bf16.msra.mxu0 0
    %1311 = vmatprep.subr.bf16.mxu0 0
    %1312 = vmatpush2.bf16.msra.mxu0 0
    %1313 = vmatprep.subr.bf16.mxu0 0
    %1314 = vmatpush2.bf16.msra.mxu0 0
    %1315 = vmatprep.mubr.bf16.mxu0 0
    %1316 = vmatmul.mubr.bf16.gmra.mxu0 %v1074
    %v1317 = vpop.f32.mrf.mxu0
    %v1318 = vadd.f32 %v868, %v1317
    %v1319 = vpop.f32.mrf.mxu0
    %v1320 = vadd.f32 %v872, %v1319
    %v1321 = vpop.f32.mrf.mxu0
    %v1322 = vadd.f32 %v868, %v1321
    %v1323 = vpop.f32.mrf.mxu0
    %v1324 = vadd.f32 %v872, %v1323
    %1325 = vmatprep.mubr.bf16.mxu0 0
    %1326 = vmatmul.mubr.bf16.gmra.mxu0 %v1077
    %v1327 = vpop.f32.mrf.mxu0
    %v1328 = vadd.f32 %v868, %v1327
    %v1329 = vpop.f32.mrf.mxu0
    %v1330 = vadd.f32 %v872, %v1329
    %v1331 = vpop.f32.mrf.mxu0
    %v1332 = vpop.f32.mrf.mxu0
    %1333 = vdwg.mxu0
    %1334 = vmatprep.subr.bf16.mxu0 0
    %1335 = vmatpush1.bf16.msra.mxu0 0
    %1336 = vmatprep.subr.bf16.mxu0 0
    %1337 = vmatpush1.bf16.msra.mxu0 0
    %1338 = vmatprep.subr.bf16.mxu0 0
    %1339 = vmatpush1.bf16.msra.mxu0 0
    %1340 = vmatprep.subr.bf16.mxu0 0
    %1341 = vmatpush1.bf16.msra.mxu0 0
    %1342 = vmatprep.subr.bf16.mxu0 0
    %1343 = vmatpush1.bf16.msra.mxu0 0
    %1344 = vmatprep.subr.bf16.mxu0 0
    %1345 = vmatpush1.bf16.msra.mxu0 0
    %1346 = vmatprep.subr.bf16.mxu0 %v1036
    %1347 = vmatpush1.bf16.msra.mxu0 %v1035
    %1348 = vmatprep.subr.bf16.mxu0 %v1020
    %1349 = vmatpush1.bf16.msra.mxu0 %v1019
    %1350 = vmatprep.subr.bf16.mxu0 0
    %1351 = vmatpush2.bf16.msra.mxu0 0
    %1352 = vmatprep.subr.bf16.mxu0 0
    %1353 = vmatpush2.bf16.msra.mxu0 0
    %1354 = vmatprep.subr.bf16.mxu0 0
    %1355 = vmatpush2.bf16.msra.mxu0 0
    %1356 = vmatprep.subr.bf16.mxu0 0
    %1357 = vmatpush2.bf16.msra.mxu0 0
    %1358 = vmatprep.subr.bf16.mxu0 0
    %1359 = vmatpush2.bf16.msra.mxu0 0
    %1360 = vmatprep.subr.bf16.mxu0 0
    %1361 = vmatpush2.bf16.msra.mxu0 0
    %1362 = vmatprep.subr.bf16.mxu0 0
    %1363 = vmatpush2.bf16.msra.mxu0 0
    %1364 = vmatprep.subr.bf16.mxu0 0
    %1365 = vmatpush2.bf16.msra.mxu0 0
    %1366 = vmatprep.mubr.bf16.mxu0 0
    %1367 = vmatmul.mubr.bf16.gmra.mxu0 %v1074
    %v1368 = vpop.f32.mrf.mxu0
    %v1369 = vadd.f32 %v876, %v1368
    %v1370 = vpop.f32.mrf.mxu0
    %v1371 = vadd.f32 %v880, %v1370
    %v1372 = vpop.f32.mrf.mxu0
    %v1373 = vadd.f32 %v876, %v1372
    %v1374 = vpop.f32.mrf.mxu0
    %v1375 = vadd.f32 %v880, %v1374
    %1376 = vmatprep.mubr.bf16.mxu0 0
    %1377 = vmatmul.mubr.bf16.gmra.mxu0 %v1077
    %v1378 = vpop.f32.mrf.mxu0
    %v1379 = vadd.f32 %v876, %v1378
    %v1380 = vpop.f32.mrf.mxu0
    %v1381 = vadd.f32 %v880, %v1380
    %v1382 = vpop.f32.mrf.mxu0
    %v1383 = vpop.f32.mrf.mxu0
    %1384 = vdwg.mxu0
    %1385 = vmatprep.subr.bf16.mxu0 0
    %1386 = vmatpush1.bf16.msra.mxu0 0
    %1387 = vmatprep.subr.bf16.mxu0 0
    %1388 = vmatpush1.bf16.msra.mxu0 0
    %1389 = vmatprep.subr.bf16.mxu0 0
    %1390 = vmatpush1.bf16.msra.mxu0 0
    %1391 = vmatprep.subr.bf16.mxu0 0
    %1392 = vmatpush1.bf16.msra.mxu0 0
    %1393 = vmatprep.subr.bf16.mxu0 0
    %1394 = vmatpush1.bf16.msra.mxu0 0
    %1395 = vmatprep.subr.bf16.mxu0 0
    %1396 = vmatpush1.bf16.msra.mxu0 0
    %1397 = vmatprep.subr.bf16.mxu0 %v1038
    %1398 = vmatpush1.bf16.msra.mxu0 %v1037
    %1399 = vmatprep.subr.bf16.mxu0 %v1022
    %1400 = vmatpush1.bf16.msra.mxu0 %v1021
    %1401 = vmatprep.subr.bf16.mxu0 0
    %1402 = vmatpush2.bf16.msra.mxu0 0
    %1403 = vmatprep.subr.bf16.mxu0 0
    %1404 = vmatpush2.bf16.msra.mxu0 0
    %1405 = vmatprep.subr.bf16.mxu0 0
    %1406 = vmatpush2.bf16.msra.mxu0 0
    %1407 = vmatprep.subr.bf16.mxu0 0
    %1408 = vmatpush2.bf16.msra.mxu0 0
    %1409 = vmatprep.subr.bf16.mxu0 0
    %1410 = vmatpush2.bf16.msra.mxu0 0
    %1411 = vmatprep.subr.bf16.mxu0 0
    %1412 = vmatpush2.bf16.msra.mxu0 0
    %1413 = vmatprep.subr.bf16.mxu0 0
    %1414 = vmatpush2.bf16.msra.mxu0 0
    %1415 = vmatprep.subr.bf16.mxu0 0
    %1416 = vmatpush2.bf16.msra.mxu0 0
    %1417 = vmatprep.mubr.bf16.mxu0 0
    %1418 = vmatmul.mubr.bf16.gmra.mxu0 %v1074
    %v1419 = vpop.f32.mrf.mxu0
    %v1420 = vadd.f32 %v884, %v1419
    %v1421 = vpop.f32.mrf.mxu0
    %v1422 = vadd.f32 %v888, %v1421
    %v1423 = vpop.f32.mrf.mxu0
    %v1424 = vadd.f32 %v884, %v1423
    %v1425 = vpop.f32.mrf.mxu0
    %v1426 = vadd.f32 %v888, %v1425
    %1427 = vmatprep.mubr.bf16.mxu0 0
    %1428 = vmatmul.mubr.bf16.gmra.mxu0 %v1077
    %v1429 = vpop.f32.mrf.mxu0
    %v1430 = vadd.f32 %v884, %v1429
    %v1431 = vpop.f32.mrf.mxu0
    %v1432 = vadd.f32 %v888, %v1431
    %v1433 = vpop.f32.mrf.mxu0
    %v1434 = vpop.f32.mrf.mxu0
    %1435 = vdwg.mxu0
    %1436 = vmatprep.subr.bf16.mxu0 0
    %1437 = vmatpush1.bf16.msra.mxu0 0
    %1438 = vmatprep.subr.bf16.mxu0 0
    %1439 = vmatpush1.bf16.msra.mxu0 0
    %1440 = vmatprep.subr.bf16.mxu0 0
    %1441 = vmatpush1.bf16.msra.mxu0 0
    %1442 = vmatprep.subr.bf16.mxu0 0
    %1443 = vmatpush1.bf16.msra.mxu0 0
    %1444 = vmatprep.subr.bf16.mxu0 0
    %1445 = vmatpush1.bf16.msra.mxu0 0
    %1446 = vmatprep.subr.bf16.mxu0 0
    %1447 = vmatpush1.bf16.msra.mxu0 0
    %1448 = vmatprep.subr.bf16.mxu0 %v1040
    %1449 = vmatpush1.bf16.msra.mxu0 %v1039
    %1450 = vmatprep.subr.bf16.mxu0 %v1024
    %1451 = vmatpush1.bf16.msra.mxu0 %v1023
    %1452 = vmatprep.subr.bf16.mxu0 0
    %1453 = vmatpush2.bf16.msra.mxu0 0
    %1454 = vmatprep.subr.bf16.mxu0 0
    %1455 = vmatpush2.bf16.msra.mxu0 0
    %1456 = vmatprep.subr.bf16.mxu0 0
    %1457 = vmatpush2.bf16.msra.mxu0 0
    %1458 = vmatprep.subr.bf16.mxu0 0
    %1459 = vmatpush2.bf16.msra.mxu0 0
    %1460 = vmatprep.subr.bf16.mxu0 0
    %1461 = vmatpush2.bf16.msra.mxu0 0
    %1462 = vmatprep.subr.bf16.mxu0 0
    %1463 = vmatpush2.bf16.msra.mxu0 0
    %1464 = vmatprep.subr.bf16.mxu0 0
    %1465 = vmatpush2.bf16.msra.mxu0 0
    %1466 = vmatprep.subr.bf16.mxu0 0
    %1467 = vmatpush2.bf16.msra.mxu0 0
    %1468 = vmatprep.mubr.bf16.mxu0 0
    %1469 = vmatmul.mubr.bf16.gmra.mxu0 %v1074
    %v1470 = vpop.f32.mrf.mxu0
    %v1471 = vadd.f32 %v892, %v1470
    %v1472 = vpop.f32.mrf.mxu0
    %v1473 = vadd.f32 %v896, %v1472
    %v1474 = vpop.f32.mrf.mxu0
    %v1475 = vadd.f32 %v892, %v1474
    %v1476 = vpop.f32.mrf.mxu0
    %v1477 = vadd.f32 %v896, %v1476
    %1478 = vmatprep.mubr.bf16.mxu0 0
    %1479 = vmatmul.mubr.bf16.gmra.mxu0 %v1077
    %v1480 = vpop.f32.mrf.mxu0
    %v1481 = vadd.f32 %v892, %v1480
    %v1482 = vpop.f32.mrf.mxu0
    %v1483 = vadd.f32 %v896, %v1482
    %v1484 = vpop.f32.mrf.mxu0
    %v1485 = vpop.f32.mrf.mxu0
    %1486 = vdwg.mxu0
    %v1487 = vmax.f32 %v1114, 0.0
    %v1488 = vmax.f32 %v1116, 0.0
    %v1489 = vmax.f32 %v1165, 0.0
    %v1490 = vmax.f32 %v1167, 0.0
    %v1491 = vmax.f32 %v1216, 0.0
    %v1492 = vmax.f32 %v1218, 0.0
    %v1493 = vmax.f32 %v1267, 0.0
    %v1494 = vmax.f32 %v1269, 0.0
    %v1495 = vmax.f32 %v1318, 0.0
    %v1496 = vmax.f32 %v1320, 0.0
    %v1497 = vmax.f32 %v1369, 0.0
    %v1498 = vmax.f32 %v1371, 0.0
    %v1499 = vmax.f32 %v1420, 0.0
    %v1500 = vmax.f32 %v1422, 0.0
    %v1501 = vmax.f32 %v1471, 0.0
    %v1502 = vmax.f32 %v1473, 0.0
    %v1503 = vmax.f32 %v1118, 0.0
    %v1504 = vmax.f32 %v1120, 0.0
    %v1505 = vmax.f32 %v1169, 0.0
    %v1506 = vmax.f32 %v1171, 0.0
    %v1507 = vmax.f32 %v1220, 0.0
    %v1508 = vmax.f32 %v1222, 0.0
    %v1509 = vmax.f32 %v1271, 0.0
    %v1510 = vmax.f32 %v1273, 0.0
    %v1511 = vmax.f32 %v1322, 0.0
    %v1512 = vmax.f32 %v1324, 0.0
    %v1513 = vmax.f32 %v1373, 0.0
    %v1514 = vmax.f32 %v1375, 0.0
    %v1515 = vmax.f32 %v1424, 0.0
    %v1516 = vmax.f32 %v1426, 0.0
    %v1517 = vmax.f32 %v1475, 0.0
    %v1518 = vmax.f32 %v1477, 0.0
    %v1519 = vmax.f32 %v1124, 0.0
    %v1520 = vmax.f32 %v1126, 0.0
    %v1521 = vmax.f32 %v1175, 0.0
    %v1522 = vmax.f32 %v1177, 0.0
    %v1523 = vmax.f32 %v1226, 0.0
    %v1524 = vmax.f32 %v1228, 0.0
    %v1525 = vmax.f32 %v1277, 0.0
    %v1526 = vmax.f32 %v1279, 0.0
    %v1527 = vmax.f32 %v1328, 0.0
    %v1528 = vmax.f32 %v1330, 0.0
    %v1529 = vmax.f32 %v1379, 0.0
    %v1530 = vmax.f32 %v1381, 0.0
    %v1531 = vmax.f32 %v1430, 0.0
    %v1532 = vmax.f32 %v1432, 0.0
    %v1533 = vmax.f32 %v1481, 0.0
    %v1534 = vmax.f32 %v1483, 0.0
    %v1535 = vpack.c.bf16 %v1503, %v1487
    %v1536 = vpack.c.bf16 %v1504, %v1488
    %v1537 = vpack.c.bf16 %v1505, %v1489
    %v1538 = vpack.c.bf16 %v1506, %v1490
    %v1539 = vpack.c.bf16 %v1507, %v1491
    %v1540 = vpack.c.bf16 %v1508, %v1492
    %v1541 = vpack.c.bf16 %v1509, %v1493
    %v1542 = vpack.c.bf16 %v1510, %v1494
    %v1543 = vpack.c.bf16 %v1511, %v1495
    %v1544 = vpack.c.bf16 %v1512, %v1496
    %v1545 = vpack.c.bf16 %v1513, %v1497
    %v1546 = vpack.c.bf16 %v1514, %v1498
    %v1547 = vpack.c.bf16 %v1515, %v1499
    %v1548 = vpack.c.bf16 %v1516, %v1500
    %v1549 = vpack.c.bf16 %v1517, %v1501
    %v1550 = vpack.c.bf16 %v1518, %v1502
    %v1551 = vpack.c.bf16 %v1519, %v1519
    %v1552 = vpack.c.bf16 %v1520, %v1520
    %v1553 = vpack.c.bf16 %v1521, %v1521
    %v1554 = vpack.c.bf16 %v1522, %v1522
    %v1555 = vpack.c.bf16 %v1523, %v1523
    %v1556 = vpack.c.bf16 %v1524, %v1524
    %v1557 = vpack.c.bf16 %v1525, %v1525
    %v1558 = vpack.c.bf16 %v1526, %v1526
    %v1559 = vpack.c.bf16 %v1527, %v1527
    %v1560 = vpack.c.bf16 %v1528, %v1528
    %v1561 = vpack.c.bf16 %v1529, %v1529
    %v1562 = vpack.c.bf16 %v1530, %v1530
    %v1563 = vpack.c.bf16 %v1531, %v1531
    %v1564 = vpack.c.bf16 %v1532, %v1532
    %v1565 = vpack.c.bf16 %v1533, %v1533
    %v1566 = vpack.c.bf16 %v1534, %v1534
    %v1567 = vld [vmem:[%s5] sm:$0xf]
    %v1568 = vld [vmem:[%s5 + $0x4] sm:$0xf]
    %v1569 = vld [vmem:[%s5 + $0x8] sm:$0xf]
    %v1570 = vld [vmem:[%s5 + $0xc] sm:$0xf]
    %v1571 = vld [vmem:[%s5 + $0x10] sm:$0xf]
    %v1572 = vld [vmem:[%s5 + $0x14] sm:$0xf]
    %v1573 = vld [vmem:[%s5 + $0x18] sm:$0xf]
    %v1574 = vld [vmem:[%s5 + $0x1c] sm:$0xf]
    %v1575 = vld [vmem:[%s5 + $0x20] sm:$0xf]
    %v1576 = vld [vmem:[%s5 + $0x24] sm:$0xf]
    %v1577 = vld [vmem:[%s5 + $0x28] sm:$0xf]
    %v1578 = vld [vmem:[%s5 + $0x2c] sm:$0xf]
    %v1579 = vld [vmem:[%s5 + $0x30] sm:$0xf]
    %v1580 = vld [vmem:[%s5 + $0x34] sm:$0xf]
    %v1581 = vld [vmem:[%s5 + $0x38] sm:$0xf]
    %v1582 = vld [vmem:[%s5 + $0x3c] sm:$0xf]
    %v1583 = vld [vmem:[%s5 + $0x40] sm:$0xf]
    %v1584 = vld [vmem:[%s5 + $0x44] sm:$0xf]
    %v1585 = vld [vmem:[%s5 + $0x48] sm:$0xf]
    %v1586 = vld [vmem:[%s5 + $0x4c] sm:$0xf]
    %v1587 = vld [vmem:[%s5 + $0x50] sm:$0xf]
    %v1588 = vld [vmem:[%s5 + $0x54] sm:$0xf]
    %v1589 = vld [vmem:[%s5 + $0x58] sm:$0xf]
    %v1590 = vld [vmem:[%s5 + $0x5c] sm:$0xf]
    %v1591 = vld [vmem:[%s5 + $0x60] sm:$0xf]
    %v1592 = vld [vmem:[%s5 + $0x64] sm:$0xf]
    %v1593 = vld [vmem:[%s5 + $0x68] sm:$0xf]
    %v1594 = vld [vmem:[%s5 + $0x6c] sm:$0xf]
    %v1595 = vld [vmem:[%s5 + $0x70] sm:$0xf]
    %v1596 = vld [vmem:[%s5 + $0x74] sm:$0xf]
    %v1597 = vld [vmem:[%s5 + $0x78] sm:$0xf]
    %v1598 = vld [vmem:[%s5 + $0x7c] sm:$0xf]
    %v1599 = vld [vmem:[%s5 + $0x80] sm:$0xf]
    %v1600 = vld [vmem:[%s5 + $0x84] sm:$0xf]
    %v1601 = vld [vmem:[%s5 + $0x88] sm:$0xf]
    %v1602 = vld [vmem:[%s5 + $0x8c] sm:$0xf]
    %v1603 = vld [vmem:[%s5 + $0x90] sm:$0xf]
    %v1604 = vld [vmem:[%s5 + $0x94] sm:$0xf]
    %v1605 = vld [vmem:[%s5 + $0x98] sm:$0xf]
    %v1606 = vld [vmem:[%s5 + $0x9c] sm:$0xf]
    %v1607 = vld [vmem:[%s5 + $0xa0] sm:$0xf]
    %v1608 = vld [vmem:[%s5 + $0xa4] sm:$0xf]
    %v1609 = vld [vmem:[%s5 + $0xa8] sm:$0xf]
    %v1610 = vld [vmem:[%s5 + $0xac] sm:$0xf]
    %v1611 = vld [vmem:[%s5 + $0xb0] sm:$0xf]
    %v1612 = vld [vmem:[%s5 + $0xb4] sm:$0xf]
    %v1613 = vld [vmem:[%s5 + $0xb8] sm:$0xf]
    %v1614 = vld [vmem:[%s5 + $0xbc] sm:$0xf]
    %v1615 = vld [vmem:[%s5 + $0xc0] sm:$0xf]
    %v1616 = vld [vmem:[%s5 + $0xc4] sm:$0xf]
    %v1617 = vld [vmem:[%s5 + $0xc8] sm:$0xf]
    %v1618 = vld [vmem:[%s5 + $0xcc] sm:$0xf]
    %v1619 = vld [vmem:[%s5 + $0xd0] sm:$0xf]
    %v1620 = vld [vmem:[%s5 + $0xd4] sm:$0xf]
    %v1621 = vld [vmem:[%s5 + $0xd8] sm:$0xf]
    %v1622 = vld [vmem:[%s5 + $0xdc] sm:$0xf]
    %v1623 = vld [vmem:[%s5 + $0xe0] sm:$0xf]
    %v1624 = vld [vmem:[%s5 + $0xe4] sm:$0xf]
    %v1625 = vld [vmem:[%s5 + $0xe8] sm:$0xf]
    %v1626 = vld [vmem:[%s5 + $0xec] sm:$0xf]
    %v1627 = vld [vmem:[%s5 + $0xf0] sm:$0xf]
    %v1628 = vld [vmem:[%s5 + $0xf4] sm:$0xf]
    %v1629 = vld [vmem:[%s5 + $0xf8] sm:$0xf]
    %v1630 = vld [vmem:[%s5 + $0xfc] sm:$0xf]
    %v1631 = vld [vmem:[%s5 + $0x100] sm:$0xf]
    %v1632 = vld [vmem:[%s5 + $0x104] sm:$0xf]
    %v1633 = vld [vmem:[%s5 + $0x108] sm:$0xf]
    %v1634 = vld [vmem:[%s5 + $0x10c] sm:$0xf]
    %v1635 = vld [vmem:[%s5 + $0x110] sm:$0xf]
    %v1636 = vld [vmem:[%s5 + $0x114] sm:$0xf]
    %v1637 = vld [vmem:[%s5 + $0x118] sm:$0xf]
    %v1638 = vld [vmem:[%s5 + $0x11c] sm:$0xf]
    %v1639 = vld [vmem:[%s5 + $0x120] sm:$0xf]
    %v1640 = vld [vmem:[%s5 + $0x124] sm:$0xf]
    %v1641 = vld [vmem:[%s5 + $0x128] sm:$0xf]
    %v1642 = vld [vmem:[%s5 + $0x12c] sm:$0xf]
    %v1643 = vld [vmem:[%s5 + $0x130] sm:$0xf]
    %v1644 = vld [vmem:[%s5 + $0x134] sm:$0xf]
    %v1645 = vld [vmem:[%s5 + $0x138] sm:$0xf]
    %v1646 = vld [vmem:[%s5 + $0x13c] sm:$0xf]
    %v1647 = vld [vmem:[%s5 + $0x140] sm:$0xf]
    %v1648 = vld [vmem:[%s5 + $0x144] sm:$0xf]
    %v1649 = vld [vmem:[%s5 + $0x148] sm:$0xf]
    %v1650 = vld [vmem:[%s5 + $0x14c] sm:$0xf]
    %v1651 = vld [vmem:[%s5 + $0x150] sm:$0xf]
    %v1652 = vld [vmem:[%s5 + $0x154] sm:$0xf]
    %v1653 = vld [vmem:[%s5 + $0x158] sm:$0xf]
    %v1654 = vld [vmem:[%s5 + $0x15c] sm:$0xf]
    %v1655 = vld [vmem:[%s5 + $0x160] sm:$0xf]
    %v1656 = vld [vmem:[%s5 + $0x164] sm:$0xf]
    %v1657 = vld [vmem:[%s5 + $0x168] sm:$0xf]
    %v1658 = vld [vmem:[%s5 + $0x16c] sm:$0xf]
    %v1659 = vld [vmem:[%s5 + $0x170] sm:$0xf]
    %v1660 = vld [vmem:[%s5 + $0x174] sm:$0xf]
    %v1661 = vld [vmem:[%s5 + $0x178] sm:$0xf]
    %v1662 = vld [vmem:[%s5 + $0x17c] sm:$0xf]
    %v1663 = vld [vmem:[%s5 + $0x180] sm:$0xf]
    %v1664 = vld [vmem:[%s5 + $0x184] sm:$0xf]
    %v1665 = vld [vmem:[%s5 + $0x188] sm:$0xf]
    %v1666 = vld [vmem:[%s5 + $0x18c] sm:$0xf]
    %v1667 = vld [vmem:[%s5 + $0x190] sm:$0xf]
    %v1668 = vld [vmem:[%s5 + $0x194] sm:$0xf]
    %v1669 = vld [vmem:[%s5 + $0x198] sm:$0xf]
    %v1670 = vld [vmem:[%s5 + $0x19c] sm:$0xf]
    %v1671 = vld [vmem:[%s5 + $0x1a0] sm:$0xf]
    %v1672 = vld [vmem:[%s5 + $0x1a4] sm:$0xf]
    %v1673 = vld [vmem:[%s5 + $0x1a8] sm:$0xf]
    %v1674 = vld [vmem:[%s5 + $0x1ac] sm:$0xf]
    %v1675 = vld [vmem:[%s5 + $0x1b0] sm:$0xf]
    %v1676 = vld [vmem:[%s5 + $0x1b4] sm:$0xf]
    %v1677 = vld [vmem:[%s5 + $0x1b8] sm:$0xf]
    %v1678 = vld [vmem:[%s5 + $0x1bc] sm:$0xf]
    %v1679 = vld [vmem:[%s5 + $0x1c0] sm:$0xf]
    %v1680 = vld [vmem:[%s5 + $0x1c4] sm:$0xf]
    %v1681 = vld [vmem:[%s5 + $0x1c8] sm:$0xf]
    %v1682 = vld [vmem:[%s5 + $0x1cc] sm:$0xf]
    %v1683 = vld [vmem:[%s5 + $0x1d0] sm:$0xf]
    %v1684 = vld [vmem:[%s5 + $0x1d4] sm:$0xf]
    %v1685 = vld [vmem:[%s5 + $0x1d8] sm:$0xf]
    %v1686 = vld [vmem:[%s5 + $0x1dc] sm:$0xf]
    %v1687 = vld [vmem:[%s5 + $0x1e0] sm:$0xf]
    %v1688 = vld [vmem:[%s5 + $0x1e4] sm:$0xf]
    %v1689 = vld [vmem:[%s5 + $0x1e8] sm:$0xf]
    %v1690 = vld [vmem:[%s5 + $0x1ec] sm:$0xf]
    %v1691 = vld [vmem:[%s5 + $0x1f0] sm:$0xf]
    %v1692 = vld [vmem:[%s5 + $0x1f4] sm:$0xf]
    %v1693 = vld [vmem:[%s5 + $0x1f8] sm:$0xf]
    %v1694 = vld [vmem:[%s5 + $0x1fc] sm:$0xf]
    %v1695 = vld [vmem:[%s5 + $0x200] sm:$0xf]
    %v1696 = vld [vmem:[%s5 + $0x204] sm:$0xf]
    %v1697 = vld [vmem:[%s5 + $0x208] sm:$0xf]
    %v1698 = vld [vmem:[%s5 + $0x20c] sm:$0xf]
    %v1699 = vld [vmem:[%s5 + $0x210] sm:$0xf]
    %v1700 = vld [vmem:[%s5 + $0x214] sm:$0xf]
    %v1701 = vld [vmem:[%s5 + $0x218] sm:$0xf]
    %v1702 = vld [vmem:[%s5 + $0x21c] sm:$0xf]
    %v1703 = vld [vmem:[%s5 + $0x220] sm:$0xf]
    %v1704 = vld [vmem:[%s5 + $0x224] sm:$0xf]
    %v1705 = vld [vmem:[%s5 + $0x228] sm:$0xf]
    %v1706 = vld [vmem:[%s5 + $0x22c] sm:$0xf]
    %v1707 = vld [vmem:[%s5 + $0x230] sm:$0xf]
    %v1708 = vld [vmem:[%s5 + $0x234] sm:$0xf]
    %v1709 = vld [vmem:[%s5 + $0x238] sm:$0xf]
    %v1710 = vld [vmem:[%s5 + $0x23c] sm:$0xf]
    %v1711 = vld [vmem:[%s5 + $0x240] sm:$0xf]
    %v1712 = vld [vmem:[%s5 + $0x244] sm:$0xf]
    %v1713 = vld [vmem:[%s5 + $0x248] sm:$0xf]
    %v1714 = vld [vmem:[%s5 + $0x24c] sm:$0xf]
    %v1715 = vld [vmem:[%s5 + $0x250] sm:$0xf]
    %v1716 = vld [vmem:[%s5 + $0x254] sm:$0xf]
    %v1717 = vld [vmem:[%s5 + $0x258] sm:$0xf]
    %v1718 = vld [vmem:[%s5 + $0x25c] sm:$0xf]
    %v1719 = vld [vmem:[%s5 + $0x260] sm:$0xf]
    %v1720 = vld [vmem:[%s5 + $0x264] sm:$0xf]
    %v1721 = vld [vmem:[%s5 + $0x268] sm:$0xf]
    %v1722 = vld [vmem:[%s5 + $0x26c] sm:$0xf]
    %v1723 = vld [vmem:[%s5 + $0x270] sm:$0xf]
    %v1724 = vld [vmem:[%s5 + $0x274] sm:$0xf]
    %v1725 = vld [vmem:[%s5 + $0x278] sm:$0xf]
    %v1726 = vld [vmem:[%s5 + $0x27c] sm:$0xf]
    %v1727 = vld [vmem:[%s5 + $0x280] sm:$0xf]
    %v1728 = vld [vmem:[%s5 + $0x284] sm:$0xf]
    %v1729 = vld [vmem:[%s5 + $0x288] sm:$0xf]
    %v1730 = vld [vmem:[%s5 + $0x28c] sm:$0xf]
    %v1731 = vld [vmem:[%s5 + $0x290] sm:$0xf]
    %v1732 = vld [vmem:[%s5 + $0x294] sm:$0xf]
    %v1733 = vld [vmem:[%s5 + $0x298] sm:$0xf]
    %v1734 = vld [vmem:[%s5 + $0x29c] sm:$0xf]
    %v1735 = vld [vmem:[%s5 + $0x2a0] sm:$0xf]
    %v1736 = vld [vmem:[%s5 + $0x2a4] sm:$0xf]
    %v1737 = vld [vmem:[%s5 + $0x2a8] sm:$0xf]
    %v1738 = vld [vmem:[%s5 + $0x2ac] sm:$0xf]
    %v1739 = vld [vmem:[%s5 + $0x2b0] sm:$0xf]
    %v1740 = vld [vmem:[%s5 + $0x2b4] sm:$0xf]
    %v1741 = vld [vmem:[%s5 + $0x2b8] sm:$0xf]
    %v1742 = vld [vmem:[%s5 + $0x2bc] sm:$0xf]
    %v1743 = vld [vmem:[%s5 + $0x2c0] sm:$0xf]
    %v1744 = vld [vmem:[%s5 + $0x2c4] sm:$0xf]
    %v1745 = vld [vmem:[%s5 + $0x2c8] sm:$0xf]
    %v1746 = vld [vmem:[%s5 + $0x2cc] sm:$0xf]
    %v1747 = vld [vmem:[%s5 + $0x2d0] sm:$0xf]
    %v1748 = vld [vmem:[%s5 + $0x2d4] sm:$0xf]
    %v1749 = vld [vmem:[%s5 + $0x2d8] sm:$0xf]
    %v1750 = vld [vmem:[%s5 + $0x2dc] sm:$0xf]
    %v1751 = vld [vmem:[%s5 + $0x2e0] sm:$0xf]
    %v1752 = vld [vmem:[%s5 + $0x2e4] sm:$0xf]
    %v1753 = vld [vmem:[%s5 + $0x2e8] sm:$0xf]
    %v1754 = vld [vmem:[%s5 + $0x2ec] sm:$0xf]
    %v1755 = vld [vmem:[%s5 + $0x2f0] sm:$0xf]
    %v1756 = vld [vmem:[%s5 + $0x2f4] sm:$0xf]
    %v1757 = vld [vmem:[%s5 + $0x2f8] sm:$0xf]
    %v1758 = vld [vmem:[%s5 + $0x2fc] sm:$0xf]
    %v1759 = vld [vmem:[%s5 + $0x300] sm:$0xf]
    %v1760 = vld [vmem:[%s5 + $0x304] sm:$0xf]
    %v1761 = vld [vmem:[%s5 + $0x308] sm:$0xf]
    %v1762 = vld [vmem:[%s5 + $0x30c] sm:$0xf]
    %v1763 = vld [vmem:[%s5 + $0x310] sm:$0xf]
    %v1764 = vld [vmem:[%s5 + $0x314] sm:$0xf]
    %v1765 = vld [vmem:[%s5 + $0x318] sm:$0xf]
    %v1766 = vld [vmem:[%s5 + $0x31c] sm:$0xf]
    %v1767 = vld [vmem:[%s5 + $0x320] sm:$0xf]
    %v1768 = vld [vmem:[%s5 + $0x324] sm:$0xf]
    %v1769 = vld [vmem:[%s5 + $0x328] sm:$0xf]
    %v1770 = vld [vmem:[%s5 + $0x32c] sm:$0xf]
    %v1771 = vld [vmem:[%s5 + $0x330] sm:$0xf]
    %v1772 = vld [vmem:[%s5 + $0x334] sm:$0xf]
    %v1773 = vld [vmem:[%s5 + $0x338] sm:$0xf]
    %v1774 = vld [vmem:[%s5 + $0x33c] sm:$0xf]
    %v1775 = vld [vmem:[%s5 + $0x340] sm:$0xf]
    %v1776 = vld [vmem:[%s5 + $0x344] sm:$0xf]
    %v1777 = vld [vmem:[%s5 + $0x348] sm:$0xf]
    %v1778 = vld [vmem:[%s5 + $0x34c] sm:$0xf]
    %v1779 = vld [vmem:[%s5 + $0x350] sm:$0xf]
    %v1780 = vld [vmem:[%s5 + $0x354] sm:$0xf]
    %v1781 = vld [vmem:[%s5 + $0x358] sm:$0xf]
    %v1782 = vld [vmem:[%s5 + $0x35c] sm:$0xf]
    %v1783 = vld [vmem:[%s5 + $0x360] sm:$0xf]
    %v1784 = vld [vmem:[%s5 + $0x364] sm:$0xf]
    %v1785 = vld [vmem:[%s5 + $0x368] sm:$0xf]
    %v1786 = vld [vmem:[%s5 + $0x36c] sm:$0xf]
    %v1787 = vld [vmem:[%s5 + $0x370] sm:$0xf]
    %v1788 = vld [vmem:[%s5 + $0x374] sm:$0xf]
    %v1789 = vld [vmem:[%s5 + $0x378] sm:$0xf]
    %v1790 = vld [vmem:[%s5 + $0x37c] sm:$0xf]
    %v1791 = vld [vmem:[%s5 + $0x380] sm:$0xf]
    %v1792 = vld [vmem:[%s5 + $0x384] sm:$0xf]
    %v1793 = vld [vmem:[%s5 + $0x388] sm:$0xf]
    %v1794 = vld [vmem:[%s5 + $0x38c] sm:$0xf]
    %v1795 = vld [vmem:[%s5 + $0x390] sm:$0xf]
    %v1796 = vld [vmem:[%s5 + $0x394] sm:$0xf]
    %v1797 = vld [vmem:[%s5 + $0x398] sm:$0xf]
    %v1798 = vld [vmem:[%s5 + $0x39c] sm:$0xf]
    %v1799 = vld [vmem:[%s5 + $0x3a0] sm:$0xf]
    %v1800 = vld [vmem:[%s5 + $0x3a4] sm:$0xf]
    %v1801 = vld [vmem:[%s5 + $0x3a8] sm:$0xf]
    %v1802 = vld [vmem:[%s5 + $0x3ac] sm:$0xf]
    %v1803 = vld [vmem:[%s5 + $0x3b0] sm:$0xf]
    %v1804 = vld [vmem:[%s5 + $0x3b4] sm:$0xf]
    %v1805 = vld [vmem:[%s5 + $0x3b8] sm:$0xf]
    %v1806 = vld [vmem:[%s5 + $0x3bc] sm:$0xf]
    %v1807 = vld [vmem:[%s5 + $0x3c0] sm:$0xf]
    %v1808 = vld [vmem:[%s5 + $0x3c4] sm:$0xf]
    %v1809 = vld [vmem:[%s5 + $0x3c8] sm:$0xf]
    %v1810 = vld [vmem:[%s5 + $0x3cc] sm:$0xf]
    %v1811 = vld [vmem:[%s5 + $0x3d0] sm:$0xf]
    %v1812 = vld [vmem:[%s5 + $0x3d4] sm:$0xf]
    %v1813 = vld [vmem:[%s5 + $0x3d8] sm:$0xf]
    %v1814 = vld [vmem:[%s5 + $0x3dc] sm:$0xf]
    %v1815 = vld [vmem:[%s5 + $0x3e0] sm:$0xf]
    %v1816 = vld [vmem:[%s5 + $0x3e4] sm:$0xf]
    %v1817 = vld [vmem:[%s5 + $0x3e8] sm:$0xf]
    %v1818 = vld [vmem:[%s5 + $0x3ec] sm:$0xf]
    %v1819 = vld [vmem:[%s5 + $0x3f0] sm:$0xf]
    %v1820 = vld [vmem:[%s5 + $0x3f4] sm:$0xf]
    %v1821 = vld [vmem:[%s5 + $0x3f8] sm:$0xf]
    %v1822 = vld [vmem:[%s5 + $0x3fc] sm:$0xf]
    %v1823 = vld [vmem:[%s3 + $0x81] ss:$0 sm:$0xff]
    %v2080 = vunpack.c.l.b16 %v1567
    %v2081 = vunpack.c.l.b16 %v1568
    %v2082 = vunpack.c.l.b16 %v1569
    %v2083 = vunpack.c.l.b16 %v1570
    %v2084 = vunpack.c.l.b16 %v1571
    %v2085 = vunpack.c.l.b16 %v1572
    %v2086 = vunpack.c.l.b16 %v1573
    %v2087 = vunpack.c.l.b16 %v1574
    %v2088 = vunpack.c.l.b16 %v1575
    %v2089 = vunpack.c.l.b16 %v1576
    %v2090 = vunpack.c.l.b16 %v1577
    %v2091 = vunpack.c.l.b16 %v1578
    %v2092 = vunpack.c.l.b16 %v1579
    %v2093 = vunpack.c.l.b16 %v1580
    %v2094 = vunpack.c.l.b16 %v1581
    %v2095 = vunpack.c.l.b16 %v1582
    %v2096 = vunpack.c.l.b16 %v1583
    %v2097 = vunpack.c.l.b16 %v1584
    %v2098 = vunpack.c.l.b16 %v1585
    %v2099 = vunpack.c.l.b16 %v1586
    %v2100 = vunpack.c.l.b16 %v1587
    %v2101 = vunpack.c.l.b16 %v1588
    %v2102 = vunpack.c.l.b16 %v1589
    %v2103 = vunpack.c.l.b16 %v1590
    %v2104 = vunpack.c.l.b16 %v1591
    %v2105 = vunpack.c.l.b16 %v1592
    %v2106 = vunpack.c.l.b16 %v1593
    %v2107 = vunpack.c.l.b16 %v1594
    %v2108 = vunpack.c.l.b16 %v1595
    %v2109 = vunpack.c.l.b16 %v1596
    %v2110 = vunpack.c.l.b16 %v1597
    %v2111 = vunpack.c.l.b16 %v1598
    %v2112 = vunpack.c.l.b16 %v1599
    %v2113 = vunpack.c.l.b16 %v1600
    %v2114 = vunpack.c.l.b16 %v1601
    %v2115 = vunpack.c.l.b16 %v1602
    %v2116 = vunpack.c.l.b16 %v1603
    %v2117 = vunpack.c.l.b16 %v1604
    %v2118 = vunpack.c.l.b16 %v1605
    %v2119 = vunpack.c.l.b16 %v1606
    %v2120 = vunpack.c.l.b16 %v1607
    %v2121 = vunpack.c.l.b16 %v1608
    %v2122 = vunpack.c.l.b16 %v1609
    %v2123 = vunpack.c.l.b16 %v1610
    %v2124 = vunpack.c.l.b16 %v1611
    %v2125 = vunpack.c.l.b16 %v1612
    %v2126 = vunpack.c.l.b16 %v1613
    %v2127 = vunpack.c.l.b16 %v1614
    %v2128 = vunpack.c.l.b16 %v1615
    %v2129 = vunpack.c.l.b16 %v1616
    %v2130 = vunpack.c.l.b16 %v1617
    %v2131 = vunpack.c.l.b16 %v1618
    %v2132 = vunpack.c.l.b16 %v1619
    %v2133 = vunpack.c.l.b16 %v1620
    %v2134 = vunpack.c.l.b16 %v1621
    %v2135 = vunpack.c.l.b16 %v1622
    %v2136 = vunpack.c.l.b16 %v1623
    %v2137 = vunpack.c.l.b16 %v1624
    %v2138 = vunpack.c.l.b16 %v1625
    %v2139 = vunpack.c.l.b16 %v1626
    %v2140 = vunpack.c.l.b16 %v1627
    %v2141 = vunpack.c.l.b16 %v1628
    %v2142 = vunpack.c.l.b16 %v1629
    %v2143 = vunpack.c.l.b16 %v1630
    %v2144 = vunpack.c.l.b16 %v1631
    %v2145 = vunpack.c.l.b16 %v1632
    %v2146 = vunpack.c.l.b16 %v1633
    %v2147 = vunpack.c.l.b16 %v1634
    %v2148 = vunpack.c.l.b16 %v1635
    %v2149 = vunpack.c.l.b16 %v1636
    %v2150 = vunpack.c.l.b16 %v1637
    %v2151 = vunpack.c.l.b16 %v1638
    %v2152 = vunpack.c.l.b16 %v1639
    %v2153 = vunpack.c.l.b16 %v1640
    %v2154 = vunpack.c.l.b16 %v1641
    %v2155 = vunpack.c.l.b16 %v1642
    %v2156 = vunpack.c.l.b16 %v1643
    %v2157 = vunpack.c.l.b16 %v1644
    %v2158 = vunpack.c.l.b16 %v1645
    %v2159 = vunpack.c.l.b16 %v1646
    %v2160 = vunpack.c.l.b16 %v1647
    %v2161 = vunpack.c.l.b16 %v1648
    %v2162 = vunpack.c.l.b16 %v1649
    %v2163 = vunpack.c.l.b16 %v1650
    %v2164 = vunpack.c.l.b16 %v1651
    %v2165 = vunpack.c.l.b16 %v1652
    %v2166 = vunpack.c.l.b16 %v1653
    %v2167 = vunpack.c.l.b16 %v1654
    %v2168 = vunpack.c.l.b16 %v1655
    %v2169 = vunpack.c.l.b16 %v1656
    %v2170 = vunpack.c.l.b16 %v1657
    %v2171 = vunpack.c.l.b16 %v1658
    %v2172 = vunpack.c.l.b16 %v1659
    %v2173 = vunpack.c.l.b16 %v1660
    %v2174 = vunpack.c.l.b16 %v1661
    %v2175 = vunpack.c.l.b16 %v1662
    %v2176 = vunpack.c.l.b16 %v1663
    %v2177 = vunpack.c.l.b16 %v1664
    %v2178 = vunpack.c.l.b16 %v1665
    %v2179 = vunpack.c.l.b16 %v1666
    %v2180 = vunpack.c.l.b16 %v1667
    %v2181 = vunpack.c.l.b16 %v1668
    %v2182 = vunpack.c.l.b16 %v1669
    %v2183 = vunpack.c.l.b16 %v1670
    %v2184 = vunpack.c.l.b16 %v1671
    %v2185 = vunpack.c.l.b16 %v1672
    %v2186 = vunpack.c.l.b16 %v1673
    %v2187 = vunpack.c.l.b16 %v1674
    %v2188 = vunpack.c.l.b16 %v1675
    %v2189 = vunpack.c.l.b16 %v1676
    %v2190 = vunpack.c.l.b16 %v1677
    %v2191 = vunpack.c.l.b16 %v1678
    %v2192 = vunpack.c.l.b16 %v1679
    %v2193 = vunpack.c.l.b16 %v1680
    %v2194 = vunpack.c.l.b16 %v1681
    %v2195 = vunpack.c.l.b16 %v1682
    %v2196 = vunpack.c.l.b16 %v1683
    %v2197 = vunpack.c.l.b16 %v1684
    %v2198 = vunpack.c.l.b16 %v1685
    %v2199 = vunpack.c.l.b16 %v1686
    %v2200 = vunpack.c.l.b16 %v1687
    %v2201 = vunpack.c.l.b16 %v1688
    %v2202 = vunpack.c.l.b16 %v1689
    %v2203 = vunpack.c.l.b16 %v1690
    %v2204 = vunpack.c.l.b16 %v1691
    %v2205 = vunpack.c.l.b16 %v1692
    %v2206 = vunpack.c.l.b16 %v1693
    %v2207 = vunpack.c.l.b16 %v1694
    %v2208 = vunpack.c.l.b16 %v1695
    %v2209 = vunpack.c.l.b16 %v1696
    %v2210 = vunpack.c.l.b16 %v1697
    %v2211 = vunpack.c.l.b16 %v1698
    %v2212 = vunpack.c.l.b16 %v1699
    %v2213 = vunpack.c.l.b16 %v1700
    %v2214 = vunpack.c.l.b16 %v1701
    %v2215 = vunpack.c.l.b16 %v1702
    %v2216 = vunpack.c.l.b16 %v1703
    %v2217 = vunpack.c.l.b16 %v1704
    %v2218 = vunpack.c.l.b16 %v1705
    %v2219 = vunpack.c.l.b16 %v1706
    %v2220 = vunpack.c.l.b16 %v1707
    %v2221 = vunpack.c.l.b16 %v1708
    %v2222 = vunpack.c.l.b16 %v1709
    %v2223 = vunpack.c.l.b16 %v1710
    %v2224 = vunpack.c.l.b16 %v1711
    %v2225 = vunpack.c.l.b16 %v1712
    %v2226 = vunpack.c.l.b16 %v1713
    %v2227 = vunpack.c.l.b16 %v1714
    %v2228 = vunpack.c.l.b16 %v1715
    %v2229 = vunpack.c.l.b16 %v1716
    %v2230 = vunpack.c.l.b16 %v1717
    %v2231 = vunpack.c.l.b16 %v1718
    %v2232 = vunpack.c.l.b16 %v1719
    %v2233 = vunpack.c.l.b16 %v1720
    %v2234 = vunpack.c.l.b16 %v1721
    %v2235 = vunpack.c.l.b16 %v1722
    %v2236 = vunpack.c.l.b16 %v1723
    %v2237 = vunpack.c.l.b16 %v1724
    %v2238 = vunpack.c.l.b16 %v1725
    %v2239 = vunpack.c.l.b16 %v1726
    %v2240 = vunpack.c.l.b16 %v1727
    %v2241 = vunpack.c.l.b16 %v1728
    %v2242 = vunpack.c.l.b16 %v1729
    %v2243 = vunpack.c.l.b16 %v1730
    %v2244 = vunpack.c.l.b16 %v1731
    %v2245 = vunpack.c.l.b16 %v1732
    %v2246 = vunpack.c.l.b16 %v1733
    %v2247 = vunpack.c.l.b16 %v1734
    %v2248 = vunpack.c.l.b16 %v1735
    %v2249 = vunpack.c.l.b16 %v1736
    %v2250 = vunpack.c.l.b16 %v1737
    %v2251 = vunpack.c.l.b16 %v1738
    %v2252 = vunpack.c.l.b16 %v1739
    %v2253 = vunpack.c.l.b16 %v1740
    %v2254 = vunpack.c.l.b16 %v1741
    %v2255 = vunpack.c.l.b16 %v1742
    %v2256 = vunpack.c.l.b16 %v1743
    %v2257 = vunpack.c.l.b16 %v1744
    %v2258 = vunpack.c.l.b16 %v1745
    %v2259 = vunpack.c.l.b16 %v1746
    %v2260 = vunpack.c.l.b16 %v1747
    %v2261 = vunpack.c.l.b16 %v1748
    %v2262 = vunpack.c.l.b16 %v1749
    %v2263 = vunpack.c.l.b16 %v1750
    %v2264 = vunpack.c.l.b16 %v1751
    %v2265 = vunpack.c.l.b16 %v1752
    %v2266 = vunpack.c.l.b16 %v1753
    %v2267 = vunpack.c.l.b16 %v1754
    %v2268 = vunpack.c.l.b16 %v1755
    %v2269 = vunpack.c.l.b16 %v1756
    %v2270 = vunpack.c.l.b16 %v1757
    %v2271 = vunpack.c.l.b16 %v1758
    %v2272 = vunpack.c.l.b16 %v1759
    %v2273 = vunpack.c.l.b16 %v1760
    %v2274 = vunpack.c.l.b16 %v1761
    %v2275 = vunpack.c.l.b16 %v1762
    %v2276 = vunpack.c.l.b16 %v1763
    %v2277 = vunpack.c.l.b16 %v1764
    %v2278 = vunpack.c.l.b16 %v1765
    %v2279 = vunpack.c.l.b16 %v1766
    %v2280 = vunpack.c.l.b16 %v1767
    %v2281 = vunpack.c.l.b16 %v1768
    %v2282 = vunpack.c.l.b16 %v1769
    %v2283 = vunpack.c.l.b16 %v1770
    %v2284 = vunpack.c.l.b16 %v1771
    %v2285 = vunpack.c.l.b16 %v1772
    %v2286 = vunpack.c.l.b16 %v1773
    %v2287 = vunpack.c.l.b16 %v1774
    %v2288 = vunpack.c.l.b16 %v1775
    %v2289 = vunpack.c.l.b16 %v1776
    %v2290 = vunpack.c.l.b16 %v1777
    %v2291 = vunpack.c.l.b16 %v1778
    %v2292 = vunpack.c.l.b16 %v1779
    %v2293 = vunpack.c.l.b16 %v1780
    %v2294 = vunpack.c.l.b16 %v1781
    %v2295 = vunpack.c.l.b16 %v1782
    %v2296 = vunpack.c.l.b16 %v1783
    %v2297 = vunpack.c.l.b16 %v1784
    %v2298 = vunpack.c.l.b16 %v1785
    %v2299 = vunpack.c.l.b16 %v1786
    %v2300 = vunpack.c.l.b16 %v1787
    %v2301 = vunpack.c.l.b16 %v1788
    %v2302 = vunpack.c.l.b16 %v1789
    %v2303 = vunpack.c.l.b16 %v1790
    %v2304 = vunpack.c.l.b16 %v1791
    %v2305 = vunpack.c.l.b16 %v1792
    %v2306 = vunpack.c.l.b16 %v1793
    %v2307 = vunpack.c.l.b16 %v1794
    %v2308 = vunpack.c.l.b16 %v1795
    %v2309 = vunpack.c.l.b16 %v1796
    %v2310 = vunpack.c.l.b16 %v1797
    %v2311 = vunpack.c.l.b16 %v1798
    %v2312 = vunpack.c.l.b16 %v1799
    %v2313 = vunpack.c.l.b16 %v1800
    %v2314 = vunpack.c.l.b16 %v1801
    %v2315 = vunpack.c.l.b16 %v1802
    %v2316 = vunpack.c.l.b16 %v1803
    %v2317 = vunpack.c.l.b16 %v1804
    %v2318 = vunpack.c.l.b16 %v1805
    %v2319 = vunpack.c.l.b16 %v1806
    %v2320 = vunpack.c.l.b16 %v1807
    %v2321 = vunpack.c.l.b16 %v1808
    %v2322 = vunpack.c.l.b16 %v1809
    %v2323 = vunpack.c.l.b16 %v1810
    %v2324 = vunpack.c.l.b16 %v1811
    %v2325 = vunpack.c.l.b16 %v1812
    %v2326 = vunpack.c.l.b16 %v1813
    %v2327 = vunpack.c.l.b16 %v1814
    %v2328 = vunpack.c.l.b16 %v1815
    %v2329 = vunpack.c.l.b16 %v1816
    %v2330 = vunpack.c.l.b16 %v1817
    %v2331 = vunpack.c.l.b16 %v1818
    %v2332 = vunpack.c.l.b16 %v1819
    %v2333 = vunpack.c.l.b16 %v1820
    %v2334 = vunpack.c.l.b16 %v1821
    %v2335 = vunpack.c.l.b16 %v1822
    %v2336 = vpack.c.b16 %v2081, %v2080
    %v2337 = vpack.c.b16 %v2083, %v2082
    %v2338 = vpack.c.b16 %v2085, %v2084
    %v2339 = vpack.c.b16 %v2087, %v2086
    %v2340 = vpack.c.b16 %v2089, %v2088
    %v2341 = vpack.c.b16 %v2091, %v2090
    %v2342 = vpack.c.b16 %v2093, %v2092
    %v2343 = vpack.c.b16 %v2095, %v2094
    %v2344 = vpack.c.b16 %v2097, %v2096
    %v2345 = vpack.c.b16 %v2099, %v2098
    %v2346 = vpack.c.b16 %v2101, %v2100
    %v2347 = vpack.c.b16 %v2103, %v2102
    %v2348 = vpack.c.b16 %v2105, %v2104
    %v2349 = vpack.c.b16 %v2107, %v2106
    %v2350 = vpack.c.b16 %v2109, %v2108
    %v2351 = vpack.c.b16 %v2111, %v2110
    %v2352 = vpack.c.b16 %v2113, %v2112
    %v2353 = vpack.c.b16 %v2115, %v2114
    %v2354 = vpack.c.b16 %v2117, %v2116
    %v2355 = vpack.c.b16 %v2119, %v2118
    %v2356 = vpack.c.b16 %v2121, %v2120
    %v2357 = vpack.c.b16 %v2123, %v2122
    %v2358 = vpack.c.b16 %v2125, %v2124
    %v2359 = vpack.c.b16 %v2127, %v2126
    %v2360 = vpack.c.b16 %v2129, %v2128
    %v2361 = vpack.c.b16 %v2131, %v2130
    %v2362 = vpack.c.b16 %v2133, %v2132
    %v2363 = vpack.c.b16 %v2135, %v2134
    %v2364 = vpack.c.b16 %v2137, %v2136
    %v2365 = vpack.c.b16 %v2139, %v2138
    %v2366 = vpack.c.b16 %v2141, %v2140
    %v2367 = vpack.c.b16 %v2143, %v2142
    %v2368 = vpack.c.b16 %v2145, %v2144
    %v2369 = vpack.c.b16 %v2147, %v2146
    %v2370 = vpack.c.b16 %v2149, %v2148
    %v2371 = vpack.c.b16 %v2151, %v2150
    %v2372 = vpack.c.b16 %v2153, %v2152
    %v2373 = vpack.c.b16 %v2155, %v2154
    %v2374 = vpack.c.b16 %v2157, %v2156
    %v2375 = vpack.c.b16 %v2159, %v2158
    %v2376 = vpack.c.b16 %v2161, %v2160
    %v2377 = vpack.c.b16 %v2163, %v2162
    %v2378 = vpack.c.b16 %v2165, %v2164
    %v2379 = vpack.c.b16 %v2167, %v2166
    %v2380 = vpack.c.b16 %v2169, %v2168
    %v2381 = vpack.c.b16 %v2171, %v2170
    %v2382 = vpack.c.b16 %v2173, %v2172
    %v2383 = vpack.c.b16 %v2175, %v2174
    %v2384 = vpack.c.b16 %v2177, %v2176
    %v2385 = vpack.c.b16 %v2179, %v2178
    %v2386 = vpack.c.b16 %v2181, %v2180
    %v2387 = vpack.c.b16 %v2183, %v2182
    %v2388 = vpack.c.b16 %v2185, %v2184
    %v2389 = vpack.c.b16 %v2187, %v2186
    %v2390 = vpack.c.b16 %v2189, %v2188
    %v2391 = vpack.c.b16 %v2191, %v2190
    %v2392 = vpack.c.b16 %v2193, %v2192
    %v2393 = vpack.c.b16 %v2195, %v2194
    %v2394 = vpack.c.b16 %v2197, %v2196
    %v2395 = vpack.c.b16 %v2199, %v2198
    %v2396 = vpack.c.b16 %v2201, %v2200
    %v2397 = vpack.c.b16 %v2203, %v2202
    %v2398 = vpack.c.b16 %v2205, %v2204
    %v2399 = vpack.c.b16 %v2207, %v2206
    %v2400 = vpack.c.b16 %v2209, %v2208
    %v2401 = vpack.c.b16 %v2211, %v2210
    %v2402 = vpack.c.b16 %v2213, %v2212
    %v2403 = vpack.c.b16 %v2215, %v2214
    %v2404 = vpack.c.b16 %v2217, %v2216
    %v2405 = vpack.c.b16 %v2219, %v2218
    %v2406 = vpack.c.b16 %v2221, %v2220
    %v2407 = vpack.c.b16 %v2223, %v2222
    %v2408 = vpack.c.b16 %v2225, %v2224
    %v2409 = vpack.c.b16 %v2227, %v2226
    %v2410 = vpack.c.b16 %v2229, %v2228
    %v2411 = vpack.c.b16 %v2231, %v2230
    %v2412 = vpack.c.b16 %v2233, %v2232
    %v2413 = vpack.c.b16 %v2235, %v2234
    %v2414 = vpack.c.b16 %v2237, %v2236
    %v2415 = vpack.c.b16 %v2239, %v2238
    %v2416 = vpack.c.b16 %v2241, %v2240
    %v2417 = vpack.c.b16 %v2243, %v2242
    %v2418 = vpack.c.b16 %v2245, %v2244
    %v2419 = vpack.c.b16 %v2247, %v2246
    %v2420 = vpack.c.b16 %v2249, %v2248
    %v2421 = vpack.c.b16 %v2251, %v2250
    %v2422 = vpack.c.b16 %v2253, %v2252
    %v2423 = vpack.c.b16 %v2255, %v2254
    %v2424 = vpack.c.b16 %v2257, %v2256
    %v2425 = vpack.c.b16 %v2259, %v2258
    %v2426 = vpack.c.b16 %v2261, %v2260
    %v2427 = vpack.c.b16 %v2263, %v2262
    %v2428 = vpack.c.b16 %v2265, %v2264
    %v2429 = vpack.c.b16 %v2267, %v2266
    %v2430 = vpack.c.b16 %v2269, %v2268
    %v2431 = vpack.c.b16 %v2271, %v2270
    %v2432 = vpack.c.b16 %v2273, %v2272
    %v2433 = vpack.c.b16 %v2275, %v2274
    %v2434 = vpack.c.b16 %v2277, %v2276
    %v2435 = vpack.c.b16 %v2279, %v2278
    %v2436 = vpack.c.b16 %v2281, %v2280
    %v2437 = vpack.c.b16 %v2283, %v2282
    %v2438 = vpack.c.b16 %v2285, %v2284
    %v2439 = vpack.c.b16 %v2287, %v2286
    %v2440 = vpack.c.b16 %v2289, %v2288
    %v2441 = vpack.c.b16 %v2291, %v2290
    %v2442 = vpack.c.b16 %v2293, %v2292
    %v2443 = vpack.c.b16 %v2295, %v2294
    %v2444 = vpack.c.b16 %v2297, %v2296
    %v2445 = vpack.c.b16 %v2299, %v2298
    %v2446 = vpack.c.b16 %v2301, %v2300
    %v2447 = vpack.c.b16 %v2303, %v2302
    %v2448 = vpack.c.b16 %v2305, %v2304
    %v2449 = vpack.c.b16 %v2307, %v2306
    %v2450 = vpack.c.b16 %v2309, %v2308
    %v2451 = vpack.c.b16 %v2311, %v2310
    %v2452 = vpack.c.b16 %v2313, %v2312
    %v2453 = vpack.c.b16 %v2315, %v2314
    %v2454 = vpack.c.b16 %v2317, %v2316
    %v2455 = vpack.c.b16 %v2319, %v2318
    %v2456 = vpack.c.b16 %v2321, %v2320
    %v2457 = vpack.c.b16 %v2323, %v2322
    %v2458 = vpack.c.b16 %v2325, %v2324
    %v2459 = vpack.c.b16 %v2327, %v2326
    %v2460 = vpack.c.b16 %v2329, %v2328
    %v2461 = vpack.c.b16 %v2331, %v2330
    %v2462 = vpack.c.b16 %v2333, %v2332
    %v2463 = vpack.c.b16 %v2335, %v2334
    %2592 = vmatprep.subr.bf16.mxu0 0
    %2593 = vmatpush1.bf16.msra.mxu0 %v2343
    %2594 = vmatprep.subr.bf16.mxu0 0
    %2595 = vmatpush1.bf16.msra.mxu0 %v2342
    %2596 = vmatprep.subr.bf16.mxu0 0
    %2597 = vmatpush1.bf16.msra.mxu0 %v2341
    %2598 = vmatprep.subr.bf16.mxu0 0
    %2599 = vmatpush1.bf16.msra.mxu0 %v2340
    %2600 = vmatprep.subr.bf16.mxu0 0
    %2601 = vmatpush1.bf16.msra.mxu0 %v2339
    %2602 = vmatprep.subr.bf16.mxu0 0
    %2603 = vmatpush1.bf16.msra.mxu0 %v2338
    %2604 = vmatprep.subr.bf16.mxu0 0
    %2605 = vmatpush1.bf16.msra.mxu0 %v2337
    %2606 = vmatprep.subr.bf16.mxu0 0
    %2607 = vmatpush1.bf16.msra.mxu0 %v2336
    %2608 = vmatprep.subr.bf16.mxu0 0
    %2609 = vmatpush2.bf16.msra.mxu0 %v2351
    %2610 = vmatprep.subr.bf16.mxu0 0
    %2611 = vmatpush2.bf16.msra.mxu0 %v2350
    %2612 = vmatprep.subr.bf16.mxu0 0
    %2613 = vmatpush2.bf16.msra.mxu0 %v2349
    %2614 = vmatprep.subr.bf16.mxu0 0
    %2615 = vmatpush2.bf16.msra.mxu0 %v2348
    %2616 = vmatprep.subr.bf16.mxu0 0
    %2617 = vmatpush2.bf16.msra.mxu0 %v2347
    %2618 = vmatprep.subr.bf16.mxu0 0
    %2619 = vmatpush2.bf16.msra.mxu0 %v2346
    %2620 = vmatprep.subr.bf16.mxu0 0
    %2621 = vmatpush2.bf16.msra.mxu0 %v2345
    %2622 = vmatprep.subr.bf16.mxu0 0
    %2623 = vmatpush2.bf16.msra.mxu0 %v2344
    %2624 = vmatprep.mubr.bf16.mxu0 %v1536
    %2625 = vmatmul.mubr.bf16.gmra.mxu0 %v1535
    %v2626 = vpop.f32.mrf.mxu0
    %v2627 = vadd.f32 %v1823, %v2626
    %v2628 = vpop.f32.mrf.mxu0
    %v2629 = vpop.f32.mrf.mxu0
    %v2630 = vadd.f32 %v1823, %v2629
    %v2631 = vpop.f32.mrf.mxu0
    %2632 = vmatprep.mubr.bf16.mxu0 %v1552
    %2633 = vmatmul.mubr.bf16.gmra.mxu0 %v1551
    %v2634 = vpop.f32.mrf.mxu0
    %v2635 = vadd.f32 %v1823, %v2634
    %v2636 = vpop.f32.mrf.mxu0
    %v2637 = vpop.f32.mrf.mxu0
    %v2638 = vpop.f32.mrf.mxu0
    %2639 = vdwg.mxu0
    %2640 = vmatprep.subr.bf16.mxu0 0
    %2641 = vmatpush1.bf16.msra.mxu0 %v2359
    %2642 = vmatprep.subr.bf16.mxu0 0
    %2643 = vmatpush1.bf16.msra.mxu0 %v2358
    %2644 = vmatprep.subr.bf16.mxu0 0
    %2645 = vmatpush1.bf16.msra.mxu0 %v2357
    %2646 = vmatprep.subr.bf16.mxu0 0
    %2647 = vmatpush1.bf16.msra.mxu0 %v2356
    %2648 = vmatprep.subr.bf16.mxu0 0
    %2649 = vmatpush1.bf16.msra.mxu0 %v2355
    %2650 = vmatprep.subr.bf16.mxu0 0
    %2651 = vmatpush1.bf16.msra.mxu0 %v2354
    %2652 = vmatprep.subr.bf16.mxu0 0
    %2653 = vmatpush1.bf16.msra.mxu0 %v2353
    %2654 = vmatprep.subr.bf16.mxu0 0
    %2655 = vmatpush1.bf16.msra.mxu0 %v2352
    %2656 = vmatprep.subr.bf16.mxu0 0
    %2657 = vmatpush2.bf16.msra.mxu0 %v2367
    %2658 = vmatprep.subr.bf16.mxu0 0
    %2659 = vmatpush2.bf16.msra.mxu0 %v2366
    %2660 = vmatprep.subr.bf16.mxu0 0
    %2661 = vmatpush2.bf16.msra.mxu0 %v2365
    %2662 = vmatprep.subr.bf16.mxu0 0
    %2663 = vmatpush2.bf16.msra.mxu0 %v2364
    %2664 = vmatprep.subr.bf16.mxu0 0
    %2665 = vmatpush2.bf16.msra.mxu0 %v2363
    %2666 = vmatprep.subr.bf16.mxu0 0
    %2667 = vmatpush2.bf16.msra.mxu0 %v2362
    %2668 = vmatprep.subr.bf16.mxu0 0
    %2669 = vmatpush2.bf16.msra.mxu0 %v2361
    %2670 = vmatprep.subr.bf16.mxu0 0
    %2671 = vmatpush2.bf16.msra.mxu0 %v2360
    %2672 = vmatprep.mubr.bf16.mxu0 %v1538
    %2673 = vmatmul.mubr.bf16.gmra.mxu0 %v1537
    %v2674 = vpop.f32.mrf.mxu0
    %v2675 = vadd.f32 %v2627, %v2674
    %v2676 = vpop.f32.mrf.mxu0
    %v2677 = vpop.f32.mrf.mxu0
    %v2678 = vadd.f32 %v2630, %v2677
    %v2679 = vpop.f32.mrf.mxu0
    %2680 = vmatprep.mubr.bf16.mxu0 %v1554
    %2681 = vmatmul.mubr.bf16.gmra.mxu0 %v1553
    %v2682 = vpop.f32.mrf.mxu0
    %v2683 = vadd.f32 %v2635, %v2682
    %v2684 = vpop.f32.mrf.mxu0
    %v2685 = vpop.f32.mrf.mxu0
    %v2686 = vpop.f32.mrf.mxu0
    %2687 = vdwg.mxu0
    %2688 = vmatprep.subr.bf16.mxu0 0
    %2689 = vmatpush1.bf16.msra.mxu0 %v2375
    %2690 = vmatprep.subr.bf16.mxu0 0
    %2691 = vmatpush1.bf16.msra.mxu0 %v2374
    %2692 = vmatprep.subr.bf16.mxu0 0
    %2693 = vmatpush1.bf16.msra.mxu0 %v2373
    %2694 = vmatprep.subr.bf16.mxu0 0
    %2695 = vmatpush1.bf16.msra.mxu0 %v2372
    %2696 = vmatprep.subr.bf16.mxu0 0
    %2697 = vmatpush1.bf16.msra.mxu0 %v2371
    %2698 = vmatprep.subr.bf16.mxu0 0
    %2699 = vmatpush1.bf16.msra.mxu0 %v2370
    %2700 = vmatprep.subr.bf16.mxu0 0
    %2701 = vmatpush1.bf16.msra.mxu0 %v2369
    %2702 = vmatprep.subr.bf16.mxu0 0
    %2703 = vmatpush1.bf16.msra.mxu0 %v2368
    %2704 = vmatprep.subr.bf16.mxu0 0
    %2705 = vmatpush2.bf16.msra.mxu0 %v2383
    %2706 = vmatprep.subr.bf16.mxu0 0
    %2707 = vmatpush2.bf16.msra.mxu0 %v2382
    %2708 = vmatprep.subr.bf16.mxu0 0
    %2709 = vmatpush2.bf16.msra.mxu0 %v2381
    %2710 = vmatprep.subr.bf16.mxu0 0
    %2711 = vmatpush2.bf16.msra.mxu0 %v2380
    %2712 = vmatprep.subr.bf16.mxu0 0
    %2713 = vmatpush2.bf16.msra.mxu0 %v2379
    %2714 = vmatprep.subr.bf16.mxu0 0
    %2715 = vmatpush2.bf16.msra.mxu0 %v2378
    %2716 = vmatprep.subr.bf16.mxu0 0
    %2717 = vmatpush2.bf16.msra.mxu0 %v2377
    %2718 = vmatprep.subr.bf16.mxu0 0
    %2719 = vmatpush2.bf16.msra.mxu0 %v2376
    %2720 = vmatprep.mubr.bf16.mxu0 %v1540
    %2721 = vmatmul.mubr.bf16.gmra.mxu0 %v1539
    %v2722 = vpop.f32.mrf.mxu0
    %v2723 = vadd.f32 %v2675, %v2722
    %v2724 = vpop.f32.mrf.mxu0
    %v2725 = vpop.f32.mrf.mxu0
    %v2726 = vadd.f32 %v2678, %v2725
    %v2727 = vpop.f32.mrf.mxu0
    %2728 = vmatprep.mubr.bf16.mxu0 %v1556
    %2729 = vmatmul.mubr.bf16.gmra.mxu0 %v1555
    %v2730 = vpop.f32.mrf.mxu0
    %v2731 = vadd.f32 %v2683, %v2730
    %v2732 = vpop.f32.mrf.mxu0
    %v2733 = vpop.f32.mrf.mxu0
    %v2734 = vpop.f32.mrf.mxu0
    %2735 = vdwg.mxu0
    %2736 = vmatprep.subr.bf16.mxu0 0
    %2737 = vmatpush1.bf16.msra.mxu0 %v2391
    %2738 = vmatprep.subr.bf16.mxu0 0
    %2739 = vmatpush1.bf16.msra.mxu0 %v2390
    %2740 = vmatprep.subr.bf16.mxu0 0
    %2741 = vmatpush1.bf16.msra.mxu0 %v2389
    %2742 = vmatprep.subr.bf16.mxu0 0
    %2743 = vmatpush1.bf16.msra.mxu0 %v2388
    %2744 = vmatprep.subr.bf16.mxu0 0
    %2745 = vmatpush1.bf16.msra.mxu0 %v2387
    %2746 = vmatprep.subr.bf16.mxu0 0
    %2747 = vmatpush1.bf16.msra.mxu0 %v2386
    %2748 = vmatprep.subr.bf16.mxu0 0
    %2749 = vmatpush1.bf16.msra.mxu0 %v2385
    %2750 = vmatprep.subr.bf16.mxu0 0
    %2751 = vmatpush1.bf16.msra.mxu0 %v2384
    %2752 = vmatprep.subr.bf16.mxu0 0
    %2753 = vmatpush2.bf16.msra.mxu0 %v2399
    %2754 = vmatprep.subr.bf16.mxu0 0
    %2755 = vmatpush2.bf16.msra.mxu0 %v2398
    %2756 = vmatprep.subr.bf16.mxu0 0
    %2757 = vmatpush2.bf16.msra.mxu0 %v2397
    %2758 = vmatprep.subr.bf16.mxu0 0
    %2759 = vmatpush2.bf16.msra.mxu0 %v2396
    %2760 = vmatprep.subr.bf16.mxu0 0
    %2761 = vmatpush2.bf16.msra.mxu0 %v2395
    %2762 = vmatprep.subr.bf16.mxu0 0
    %2763 = vmatpush2.bf16.msra.mxu0 %v2394
    %2764 = vmatprep.subr.bf16.mxu0 0
    %2765 = vmatpush2.bf16.msra.mxu0 %v2393
    %2766 = vmatprep.subr.bf16.mxu0 0
    %2767 = vmatpush2.bf16.msra.mxu0 %v2392
    %2768 = vmatprep.mubr.bf16.mxu0 %v1542
    %2769 = vmatmul.mubr.bf16.gmra.mxu0 %v1541
    %v2770 = vpop.f32.mrf.mxu0
    %v2771 = vadd.f32 %v2723, %v2770
    %v2772 = vpop.f32.mrf.mxu0
    %v2773 = vpop.f32.mrf.mxu0
    %v2774 = vadd.f32 %v2726, %v2773
    %v2775 = vpop.f32.mrf.mxu0
    %2776 = vmatprep.mubr.bf16.mxu0 %v1558
    %2777 = vmatmul.mubr.bf16.gmra.mxu0 %v1557
    %v2778 = vpop.f32.mrf.mxu0
    %v2779 = vadd.f32 %v2731, %v2778
    %v2780 = vpop.f32.mrf.mxu0
    %v2781 = vpop.f32.mrf.mxu0
    %v2782 = vpop.f32.mrf.mxu0
    %2783 = vdwg.mxu0
    %2784 = vmatprep.subr.bf16.mxu0 0
    %2785 = vmatpush1.bf16.msra.mxu0 %v2407
    %2786 = vmatprep.subr.bf16.mxu0 0
    %2787 = vmatpush1.bf16.msra.mxu0 %v2406
    %2788 = vmatprep.subr.bf16.mxu0 0
    %2789 = vmatpush1.bf16.msra.mxu0 %v2405
    %2790 = vmatprep.subr.bf16.mxu0 0
    %2791 = vmatpush1.bf16.msra.mxu0 %v2404
    %2792 = vmatprep.subr.bf16.mxu0 0
    %2793 = vmatpush1.bf16.msra.mxu0 %v2403
    %2794 = vmatprep.subr.bf16.mxu0 0
    %2795 = vmatpush1.bf16.msra.mxu0 %v2402
    %2796 = vmatprep.subr.bf16.mxu0 0
    %2797 = vmatpush1.bf16.msra.mxu0 %v2401
    %2798 = vmatprep.subr.bf16.mxu0 0
    %2799 = vmatpush1.bf16.msra.mxu0 %v2400
    %2800 = vmatprep.subr.bf16.mxu0 0
    %2801 = vmatpush2.bf16.msra.mxu0 %v2415
    %2802 = vmatprep.subr.bf16.mxu0 0
    %2803 = vmatpush2.bf16.msra.mxu0 %v2414
    %2804 = vmatprep.subr.bf16.mxu0 0
    %2805 = vmatpush2.bf16.msra.mxu0 %v2413
    %2806 = vmatprep.subr.bf16.mxu0 0
    %2807 = vmatpush2.bf16.msra.mxu0 %v2412
    %2808 = vmatprep.subr.bf16.mxu0 0
    %2809 = vmatpush2.bf16.msra.mxu0 %v2411
    %2810 = vmatprep.subr.bf16.mxu0 0
    %2811 = vmatpush2.bf16.msra.mxu0 %v2410
    %2812 = vmatprep.subr.bf16.mxu0 0
    %2813 = vmatpush2.bf16.msra.mxu0 %v2409
    %2814 = vmatprep.subr.bf16.mxu0 0
    %2815 = vmatpush2.bf16.msra.mxu0 %v2408
    %2816 = vmatprep.mubr.bf16.mxu0 %v1544
    %2817 = vmatmul.mubr.bf16.gmra.mxu0 %v1543
    %v2818 = vpop.f32.mrf.mxu0
    %v2819 = vadd.f32 %v2771, %v2818
    %v2820 = vpop.f32.mrf.mxu0
    %v2821 = vpop.f32.mrf.mxu0
    %v2822 = vadd.f32 %v2774, %v2821
    %v2823 = vpop.f32.mrf.mxu0
    %2824 = vmatprep.mubr.bf16.mxu0 %v1560
    %2825 = vmatmul.mubr.bf16.gmra.mxu0 %v1559
    %v2826 = vpop.f32.mrf.mxu0
    %v2827 = vadd.f32 %v2779, %v2826
    %v2828 = vpop.f32.mrf.mxu0
    %v2829 = vpop.f32.mrf.mxu0
    %v2830 = vpop.f32.mrf.mxu0
    %2831 = vdwg.mxu0
    %2832 = vmatprep.subr.bf16.mxu0 0
    %2833 = vmatpush1.bf16.msra.mxu0 %v2423
    %2834 = vmatprep.subr.bf16.mxu0 0
    %2835 = vmatpush1.bf16.msra.mxu0 %v2422
    %2836 = vmatprep.subr.bf16.mxu0 0
    %2837 = vmatpush1.bf16.msra.mxu0 %v2421
    %2838 = vmatprep.subr.bf16.mxu0 0
    %2839 = vmatpush1.bf16.msra.mxu0 %v2420
    %2840 = vmatprep.subr.bf16.mxu0 0
    %2841 = vmatpush1.bf16.msra.mxu0 %v2419
    %2842 = vmatprep.subr.bf16.mxu0 0
    %2843 = vmatpush1.bf16.msra.mxu0 %v2418
    %2844 = vmatprep.subr.bf16.mxu0 0
    %2845 = vmatpush1.bf16.msra.mxu0 %v2417
    %2846 = vmatprep.subr.bf16.mxu0 0
    %2847 = vmatpush1.bf16.msra.mxu0 %v2416
    %2848 = vmatprep.subr.bf16.mxu0 0
    %2849 = vmatpush2.bf16.msra.mxu0 %v2431
    %2850 = vmatprep.subr.bf16.mxu0 0
    %2851 = vmatpush2.bf16.msra.mxu0 %v2430
    %2852 = vmatprep.subr.bf16.mxu0 0
    %2853 = vmatpush2.bf16.msra.mxu0 %v2429
    %2854 = vmatprep.subr.bf16.mxu0 0
    %2855 = vmatpush2.bf16.msra.mxu0 %v2428
    %2856 = vmatprep.subr.bf16.mxu0 0
    %2857 = vmatpush2.bf16.msra.mxu0 %v2427
    %2858 = vmatprep.subr.bf16.mxu0 0
    %2859 = vmatpush2.bf16.msra.mxu0 %v2426
    %2860 = vmatprep.subr.bf16.mxu0 0
    %2861 = vmatpush2.bf16.msra.mxu0 %v2425
    %2862 = vmatprep.subr.bf16.mxu0 0
    %2863 = vmatpush2.bf16.msra.mxu0 %v2424
    %2864 = vmatprep.mubr.bf16.mxu0 %v1546
    %2865 = vmatmul.mubr.bf16.gmra.mxu0 %v1545
    %v2866 = vpop.f32.mrf.mxu0
    %v2867 = vadd.f32 %v2819, %v2866
    %v2868 = vpop.f32.mrf.mxu0
    %v2869 = vpop.f32.mrf.mxu0
    %v2870 = vadd.f32 %v2822, %v2869
    %v2871 = vpop.f32.mrf.mxu0
    %2872 = vmatprep.mubr.bf16.mxu0 %v1562
    %2873 = vmatmul.mubr.bf16.gmra.mxu0 %v1561
    %v2874 = vpop.f32.mrf.mxu0
    %v2875 = vadd.f32 %v2827, %v2874
    %v2876 = vpop.f32.mrf.mxu0
    %v2877 = vpop.f32.mrf.mxu0
    %v2878 = vpop.f32.mrf.mxu0
    %2879 = vdwg.mxu0
    %2880 = vmatprep.subr.bf16.mxu0 0
    %2881 = vmatpush1.bf16.msra.mxu0 %v2439
    %2882 = vmatprep.subr.bf16.mxu0 0
    %2883 = vmatpush1.bf16.msra.mxu0 %v2438
    %2884 = vmatprep.subr.bf16.mxu0 0
    %2885 = vmatpush1.bf16.msra.mxu0 %v2437
    %2886 = vmatprep.subr.bf16.mxu0 0
    %2887 = vmatpush1.bf16.msra.mxu0 %v2436
    %2888 = vmatprep.subr.bf16.mxu0 0
    %2889 = vmatpush1.bf16.msra.mxu0 %v2435
    %2890 = vmatprep.subr.bf16.mxu0 0
    %2891 = vmatpush1.bf16.msra.mxu0 %v2434
    %2892 = vmatprep.subr.bf16.mxu0 0
    %2893 = vmatpush1.bf16.msra.mxu0 %v2433
    %2894 = vmatprep.subr.bf16.mxu0 0
    %2895 = vmatpush1.bf16.msra.mxu0 %v2432
    %2896 = vmatprep.subr.bf16.mxu0 0
    %2897 = vmatpush2.bf16.msra.mxu0 %v2447
    %2898 = vmatprep.subr.bf16.mxu0 0
    %2899 = vmatpush2.bf16.msra.mxu0 %v2446
    %2900 = vmatprep.subr.bf16.mxu0 0
    %2901 = vmatpush2.bf16.msra.mxu0 %v2445
    %2902 = vmatprep.subr.bf16.mxu0 0
    %2903 = vmatpush2.bf16.msra.mxu0 %v2444
    %2904 = vmatprep.subr.bf16.mxu0 0
    %2905 = vmatpush2.bf16.msra.mxu0 %v2443
    %2906 = vmatprep.subr.bf16.mxu0 0
    %2907 = vmatpush2.bf16.msra.mxu0 %v2442
    %2908 = vmatprep.subr.bf16.mxu0 0
    %2909 = vmatpush2.bf16.msra.mxu0 %v2441
    %2910 = vmatprep.subr.bf16.mxu0 0
    %2911 = vmatpush2.bf16.msra.mxu0 %v2440
    %2912 = vmatprep.mubr.bf16.mxu0 %v1548
    %2913 = vmatmul.mubr.bf16.gmra.mxu0 %v1547
    %v2914 = vpop.f32.mrf.mxu0
    %v2915 = vadd.f32 %v2867, %v2914
    %v2916 = vpop.f32.mrf.mxu0
    %v2917 = vpop.f32.mrf.mxu0
    %v2918 = vadd.f32 %v2870, %v2917
    %v2919 = vpop.f32.mrf.mxu0
    %2920 = vmatprep.mubr.bf16.mxu0 %v1564
    %2921 = vmatmul.mubr.bf16.gmra.mxu0 %v1563
    %v2922 = vpop.f32.mrf.mxu0
    %v2923 = vadd.f32 %v2875, %v2922
    %v2924 = vpop.f32.mrf.mxu0
    %v2925 = vpop.f32.mrf.mxu0
    %v2926 = vpop.f32.mrf.mxu0
    %2927 = vdwg.mxu0
    %2928 = vmatprep.subr.bf16.mxu0 0
    %2929 = vmatpush1.bf16.msra.mxu0 %v2455
    %2930 = vmatprep.subr.bf16.mxu0 0
    %2931 = vmatpush1.bf16.msra.mxu0 %v2454
    %2932 = vmatprep.subr.bf16.mxu0 0
    %2933 = vmatpush1.bf16.msra.mxu0 %v2453
    %2934 = vmatprep.subr.bf16.mxu0 0
    %2935 = vmatpush1.bf16.msra.mxu0 %v2452
    %2936 = vmatprep.subr.bf16.mxu0 0
    %2937 = vmatpush1.bf16.msra.mxu0 %v2451
    %2938 = vmatprep.subr.bf16.mxu0 0
    %2939 = vmatpush1.bf16.msra.mxu0 %v2450
    %2940 = vmatprep.subr.bf16.mxu0 0
    %2941 = vmatpush1.bf16.msra.mxu0 %v2449
    %2942 = vmatprep.subr.bf16.mxu0 0
    %2943 = vmatpush1.bf16.msra.mxu0 %v2448
    %2944 = vmatprep.subr.bf16.mxu0 0
    %2945 = vmatpush2.bf16.msra.mxu0 %v2463
    %2946 = vmatprep.subr.bf16.mxu0 0
    %2947 = vmatpush2.bf16.msra.mxu0 %v2462
    %2948 = vmatprep.subr.bf16.mxu0 0
    %2949 = vmatpush2.bf16.msra.mxu0 %v2461
    %2950 = vmatprep.subr.bf16.mxu0 0
    %2951 = vmatpush2.bf16.msra.mxu0 %v2460
    %2952 = vmatprep.subr.bf16.mxu0 0
    %2953 = vmatpush2.bf16.msra.mxu0 %v2459
    %2954 = vmatprep.subr.bf16.mxu0 0
    %2955 = vmatpush2.bf16.msra.mxu0 %v2458
    %2956 = vmatprep.subr.bf16.mxu0 0
    %2957 = vmatpush2.bf16.msra.mxu0 %v2457
    %2958 = vmatprep.subr.bf16.mxu0 0
    %2959 = vmatpush2.bf16.msra.mxu0 %v2456
    %2960 = vmatprep.mubr.bf16.mxu0 %v1550
    %2961 = vmatmul.mubr.bf16.gmra.mxu0 %v1549
    %v2962 = vpop.f32.mrf.mxu0
    %v2963 = vadd.f32 %v2915, %v2962
    %v2964 = vpop.f32.mrf.mxu0
    %v2965 = vpop.f32.mrf.mxu0
    %v2966 = vadd.f32 %v2918, %v2965
    %v2967 = vpop.f32.mrf.mxu0
    %2968 = vmatprep.mubr.bf16.mxu0 %v1566
    %2969 = vmatmul.mubr.bf16.gmra.mxu0 %v1565
    %v2970 = vpop.f32.mrf.mxu0
    %v2971 = vadd.f32 %v2923, %v2970
    %v2972 = vpop.f32.mrf.mxu0
    %v2973 = vpop.f32.mrf.mxu0
    %v2974 = vpop.f32.mrf.mxu0
    %2975 = vdwg.mxu0
    %v2976 = vadd.f32 %v786, %v2963
    %v2977 = vadd.f32 %v787, %v2966
    %v2978 = vadd.f32 %v788, %v2971
    %v2979 = vld [vmem:[%s3 + $0x82] ss:$0 sm:$0xff]
    %v2980 = vld [vmem:[%s3 + $0x83] ss:$0 sm:$0xff]
    %v2981 = vsel %vm36, %v2976, 0.0
    %2982 = vadd.xlane.f32.xlu0 %v2981
    %v2983 = vpop.xlane.xlu0 %2982
    %v2984 = vsel %vm36, %v2977, 0.0
    %2985 = vadd.xlane.f32.xlu0 %v2984
    %v2986 = vpop.xlane.xlu0 %2985
    %v2987 = vsel %vm36, %v2978, 0.0
    %2988 = vadd.xlane.f32.xlu0 %v2987
    %v2989 = vpop.xlane.xlu0 %2988
    %v2990 = vmul.f32 %v2983, %v137
    %v2991 = vmul.f32 %v2986, %v137
    %v2992 = vmul.f32 %v2989, %v137
    %v2993 = vsub.f32 %v2976, %v2990
    %v2994 = vsub.f32 %v2977, %v2991
    %v2995 = vsub.f32 %v2978, %v2992
    %v2996 = vmul.f32 %v2993, %v2993
    %v2997 = vmul.f32 %v2994, %v2994
    %v2998 = vmul.f32 %v2995, %v2995
    %v2999 = vsel %vm36, %v2996, 0.0
    %3000 = vadd.xlane.f32.xlu0 %v2999
    %v3001 = vpop.xlane.xlu0 %3000
    %v3002 = vsel %vm36, %v2997, 0.0
    %3003 = vadd.xlane.f32.xlu0 %v3002
    %v3004 = vpop.xlane.xlu0 %3003
    %v3005 = vsel %vm36, %v2998, 0.0
    %3006 = vadd.xlane.f32.xlu0 %v3005
    %v3007 = vpop.xlane.xlu0 %3006
    %v3008 = vmul.f32 %v3001, %v137
    %v3009 = vmul.f32 %v3004, %v137
    %v3010 = vmul.f32 %v3007, %v137
    %v3011 = vadd.f32 %v3008, 1e-05
    %v3012 = vadd.f32 %v3009, 1e-05
    %v3013 = vadd.f32 %v3010, 1e-05
    %v3014 = vrsqrt.pop %v3011
    %v3015 = vrsqrt.pop %v3012
    %v3016 = vrsqrt.pop %v3013
    %v3017 = vmul.f32 %v2993, %v3014
    %v3018 = vmul.f32 %v2994, %v3015
    %v3019 = vmul.f32 %v2995, %v3016
    %v3020 = vmul.f32 %v3017, %v2979
    %v3021 = vmul.f32 %v3018, %v2979
    %v3022 = vmul.f32 %v3019, %v2979
    %v3023 = vadd.f32 %v3020, %v2980
    %v3024 = vadd.f32 %v3021, %v2980
    %v3025 = vadd.f32 %v3022, %v2980
    %v3026 = vadd.f32 %v3023, %v3024
    %v3027 = vmax.f32 %v3023, %v3024
    %v3028 = vadd.f32 %v3026, %v3025
    %v3029 = vmax.f32 %v3027, %v3025
    %v3030 = vmul.f32 %v3028, 0.33333334
    %v3031 = vld [vmem:[%s2 + $0x28] sm:$0xff]
    %v3032 = vld [vmem:[%s2 + $0x58] sm:$0xff]
    %v3033 = vld [vmem:[%s2 + $0x88] sm:$0xff]
    %v3034 = vld [vmem:[%s2 + $0xb8] sm:$0xff]
    %v3035 = vld [vmem:[%s3 + $0x84] ss:$0 sm:$0xff]
    %v3037 = vsel %vm36, %v3030, 0
    %3039 = vmatprep.subr.mxu0 0.0
    %3040 = vmatpush1.msra.mxu0 0.0
    %3041 = vmatprep.subr.mxu0 0.0
    %3042 = vmatpush1.msra.mxu0 0.0
    %3043 = vmatprep.subr.mxu0 0.0
    %3044 = vmatpush1.msra.mxu0 0.0
    %3045 = vmatprep.subr.mxu0 0.0
    %3046 = vmatpush1.msra.mxu0 0.0
    %3047 = vmatprep.subr.mxu0 0.0
    %3048 = vmatpush1.msra.mxu0 0.0
    %3049 = vmatprep.subr.mxu0 0.0
    %3050 = vmatpush1.msra.mxu0 0.0
    %3051 = vmatprep.subr.mxu0 0.0
    %3052 = vmatpush1.msra.mxu0 0.0
    %3053 = vmatprep.subr.mxu0 0.0
    %3054 = vmatpush1.msra.mxu0 0.0
    %3055 = vmatprep.subr.mxu0 0.0
    %3056 = vmatpush1.msra.mxu0 0.0
    %3057 = vmatprep.subr.mxu0 0.0
    %3058 = vmatpush1.msra.mxu0 0.0
    %3059 = vmatprep.subr.mxu0 0.0
    %3060 = vmatpush1.msra.mxu0 0.0
    %3061 = vmatprep.subr.mxu0 0.0
    %3062 = vmatpush1.msra.mxu0 0.0
    %3063 = vmatprep.subr.mxu0 0.0
    %3064 = vmatpush1.msra.mxu0 %v3034
    %3065 = vmatprep.subr.mxu0 0.0
    %3066 = vmatpush1.msra.mxu0 %v3033
    %3067 = vmatprep.subr.mxu0 0.0
    %3068 = vmatpush1.msra.mxu0 %v3032
    %3069 = vmatprep.subr.mxu0 0.0
    %3070 = vmatpush1.msra.mxu0 %v3031
    %3071 = vmatprep.subr.mxu0 0.0
    %3072 = vmatpush2.msra.mxu0 0.0
    %3073 = vmatprep.subr.mxu0 0.0
    %3074 = vmatpush2.msra.mxu0 0.0
    %3075 = vmatprep.subr.mxu0 0.0
    %3076 = vmatpush2.msra.mxu0 0.0
    %3077 = vmatprep.subr.mxu0 0.0
    %3078 = vmatpush2.msra.mxu0 0.0
    %3079 = vmatprep.subr.mxu0 0.0
    %3080 = vmatpush2.msra.mxu0 0.0
    %3081 = vmatprep.subr.mxu0 0.0
    %3082 = vmatpush2.msra.mxu0 0.0
    %3083 = vmatprep.subr.mxu0 0.0
    %3084 = vmatpush2.msra.mxu0 0.0
    %3085 = vmatprep.subr.mxu0 0.0
    %3086 = vmatpush2.msra.mxu0 0.0
    %3087 = vmatprep.subr.mxu0 0.0
    %3088 = vmatpush2.msra.mxu0 0.0
    %3089 = vmatprep.subr.mxu0 0.0
    %3090 = vmatpush2.msra.mxu0 0.0
    %3091 = vmatprep.subr.mxu0 0.0
    %3092 = vmatpush2.msra.mxu0 0.0
    %3093 = vmatprep.subr.mxu0 0.0
    %3094 = vmatpush2.msra.mxu0 0.0
    %3095 = vmatprep.subr.mxu0 0.0
    %3096 = vmatpush2.msra.mxu0 0.0
    %3097 = vmatprep.subr.mxu0 0.0
    %3098 = vmatpush2.msra.mxu0 0.0
    %3099 = vmatprep.subr.mxu0 0.0
    %3100 = vmatpush2.msra.mxu0 0.0
    %3101 = vmatprep.subr.mxu0 0.0
    %3102 = vmatpush2.msra.mxu0 0.0
    %3103 = vmatprep.mubr.f32.mxu0 0.0
    %3104 = vmatmul.mubr.f32.gmra.mxu0 %v3037
    %v3105 = vpop.f32.mrf.mxu0
    %v3106 = vadd.f32 %v3035, %v3105
    %v3107 = vpop.f32.mrf.mxu0
    %3108 = vdwg.mxu0
    %3109 = vst [vmem:[#allocation2] sm:$0xff] %v3106
    %v3110 = vsel %vm36, %v3029, 0.0
    %3111 = vst [vmem:[#allocation4] sm:$0xff] %v3110
    // Predicated region
    $region26: #{_lambda_.1} parent=1 // pred_check
      _
    $region27: #{_lambda_.1} parent=1 // pred_check_branch
      %3113 = sbr.rel (0) target = $region29
    $region28: #{_lambda_.1} parent=1 // pred_region
      %s3115 = ssub.s32 128, 128
      %3116 = vsyncadd [#allocation3], %s3115
      %s3118 = sshll.u32 [#allocation2], 4
      %s3119 = int_to_ptr.vmem [resolvable:$true] %s3118
      %3121 = dma.vmem_to_hbm [thread:$0]  %s3119, 128, %s6, [#allocation3]
    $region29: #{_lambda_.1} parent=1 // pred_fallthru
      _
    // Predicated region
    $region30: #{_lambda_.1} parent=1 // pred_check
      _
    $region31: #{_lambda_.1} parent=1 // pred_check_branch
      %3123 = sbr.rel (0) target = $region33
    $region32: #{_lambda_.1} parent=1 // pred_region
      %s3125 = ssub.s32 128, 128
      %3126 = vsyncadd [#allocation5], %s3125
      %s3128 = sshll.u32 [#allocation4], 4
      %s3129 = int_to_ptr.vmem [resolvable:$true] %s3128
      %3131 = dma.vmem_to_hbm [thread:$0]  %s3129, 128, %s7, [#allocation5]
    $region33: #{_lambda_.1} parent=1 // pred_fallthru
      _
    // Predicated region
    $region34: #{_lambda_.1} parent=1 // pred_check
      _
    $region35: #{_lambda_.1} parent=1 // pred_check_branch
      %3133 = sbr.rel (0) target = $region37
    $region36: #{_lambda_.1} parent=1 // pred_region
      %3134 = dma.done [#allocation3], 128
    $region37: #{_lambda_.1} parent=1 // pred_fallthru
      _
    // Predicated region
    $region38: #{_lambda_.1} parent=1 // pred_check
      _
    $region39: #{_lambda_.1} parent=1 // pred_check_branch
      %3136 = sbr.rel (0) target = $region41
    $region40: #{_lambda_.1} parent=1 // pred_region
      %3137 = dma.done [#allocation5], 128
    $region41: #{_lambda_.1} parent=1 // pred_fallthru
      _
    %3138 = vsyncpa [#allocation3], 1
    %3139 = vsyncpa [#allocation5], 1

</llo_original>
